<compile_context>
chip_gen: v5e
topology: v5e:2x2
jax: 0.10.0
libtpu: 0.0.40
codegen_flags: <defaults>
</compile_context>

<pallas_src>
import jax
import jax.numpy as jnp
from jax.experimental import pallas as pl
from jax.experimental.pallas import tpu as pltpu

IN, H1, H2, OUT, OUT_PAD = 128, 1024, 2048, 784, 896


def generator_kernel(x_ref, w1_ref, b1_ref, w2_ref, b2_ref, w3_ref, b3_ref,
                     o_ref, h1_ref, acc_ref):
    k = pl.program_id(1)

    # First reduction step for this batch block: compute h1 once, zero the acc.
    @pl.when(k == 0)
    def _():
        h1 = jnp.dot(x_ref[...], w1_ref[...], preferred_element_type=jnp.float32)
        h1_ref[...] = jnp.maximum(h1 + b1_ref[...], 0.0).astype(jnp.bfloat16)
        acc_ref[...] = jnp.zeros_like(acc_ref)

    # Per-step slice of the 2048 hidden dim: h2_k = relu(h1 @ w2[:, k]) then
    # accumulate its contribution to the fc3 output.
    h2 = jnp.dot(h1_ref[...], w2_ref[...], preferred_element_type=jnp.float32)
    h2 = jnp.maximum(h2 + b2_ref[...], 0.0).astype(jnp.bfloat16)
    acc_ref[...] += jnp.dot(h2, w3_ref[...], preferred_element_type=jnp.float32)

    # Last reduction step: bias + tanh, write the (lane-dense, 896-wide) output.
    @pl.when(k == pl.num_programs(1) - 1)
    def _():
        o_ref[...] = jnp.tanh(acc_ref[...] + b3_ref[...])


def generator_forward(x, params, *, tk=512):
    """x: (B, 128) float32 -> (B, 1, 28, 28) float32"""
    w1, b1, w2, b2, w3, b3 = params
    B = x.shape[0]
    # Shard the batch across TensorCores (v7x megacore) once B is a multiple of
    # 128; otherwise keep a single full-B block (always (8,128)-legal since the
    # block then equals the full array dim).
    tb = 128 if (B % 128 == 0) else B
    grid = (B // tb, H2 // tk)

    xb = x.astype(jnp.bfloat16)

    out = pl.pallas_call(
        generator_kernel,
        out_shape=jax.ShapeDtypeStruct((B, OUT_PAD), jnp.float32),
        grid=grid,
        in_specs=[
            pl.BlockSpec((tb, IN), lambda i, k: (i, 0)),        # x  (bf16)
            pl.BlockSpec((IN, H1), lambda i, k: (0, 0)),        # w1 (bf16)
            pl.BlockSpec((1, H1), lambda i, k: (0, 0)),         # b1 (f32)
            pl.BlockSpec((H1, tk), lambda i, k: (0, k)),        # w2 tile (bf16)
            pl.BlockSpec((1, tk), lambda i, k: (0, k)),         # b2 tile (f32)
            pl.BlockSpec((tk, OUT_PAD), lambda i, k: (k, 0)),   # w3 tile (bf16)
            pl.BlockSpec((1, OUT_PAD), lambda i, k: (0, 0)),    # b3 (f32, padded)
        ],
        out_specs=pl.BlockSpec((tb, OUT_PAD), lambda i, k: (i, 0)),
        scratch_shapes=[
            pltpu.VMEM((tb, H1), jnp.bfloat16),    # h1 (kept bf16 for MXU reuse)
            pltpu.VMEM((tb, OUT_PAD), jnp.float32),  # fc3 accumulator
        ],
        compiler_params=pltpu.CompilerParams(
            dimension_semantics=("parallel", "arbitrary"),
            vmem_limit_bytes=32 << 20,  # actual use ~5 MiB; safe on v7x's 64 MiB
        ),
    )(xb, w1, b1, w2, b2, w3, b3)

    # PyTorch: x.view(-1, 1, 28, 28) -- drop the 784->896 lane padding first.
    return out[:, :OUT].reshape(-1, 1, 28, 28)


def init_params(key):
    """nn.Linear-style init (U(-1/sqrt(fan_in), 1/sqrt(fan_in))).

    Weights stored as (in, out) in bf16 (MXU inputs); biases in f32.
    fc3 weight/bias zero-padded 784 -> 896 for (8,128)-aligned, lane-dense tiles.
    """
    dims = [(IN, H1), (H1, H2), (H2, OUT)]
    keys = jax.random.split(key, 2 * len(dims))
    params = []
    for i, (fan_in, fan_out) in enumerate(dims):
        bound = 1.0 / (fan_in ** 0.5)
        w = jax.random.uniform(keys[2 * i], (fan_in, fan_out),
                               minval=-bound, maxval=bound, dtype=jnp.float32)
        b = jax.random.uniform(keys[2 * i + 1], (1, fan_out),
                               minval=-bound, maxval=bound, dtype=jnp.float32)
        params += [w, b]
    w1, b1, w2, b2, w3, b3 = params
    w3 = jnp.pad(w3, ((0, 0), (0, OUT_PAD - OUT)))
    b3 = jnp.pad(b3, ((0, 0), (0, OUT_PAD - OUT)))
    return (w1.astype(jnp.bfloat16), b1,
            w2.astype(jnp.bfloat16), b2,
            w3.astype(jnp.bfloat16), b3)


if __name__ == "__main__":
    key = jax.random.PRNGKey(0)
    k_x, k_p = jax.random.split(key)

    B = 8  # small batch for the smoke test
    x = jax.random.normal(k_x, (B, IN), dtype=jnp.float32)
    params = init_params(k_p)

    y = generator_forward(x, params)
    jax.block_until_ready(y)

    # Reference follows the same bf16-weight / f32-accumulate path as the kernel.
    w1, b1, w2, b2, w3, b3 = params
    h = jnp.maximum(jnp.dot(x.astype(jnp.bfloat16), w1,
                            preferred_element_type=jnp.float32) + b1, 0.0)
    h = jnp.maximum(jnp.dot(h.astype(jnp.bfloat16), w2,
                            preferred_element_type=jnp.float32) + b2, 0.0)
    h3 = jnp.dot(h.astype(jnp.bfloat16), w3,
                 preferred_element_type=jnp.float32) + b3
    ref = jnp.tanh(h3)[:, :OUT].reshape(-1, 1, 28, 28)

    assert y.shape == (B, 1, 28, 28)
    assert jnp.allclose(y, ref, atol=2e-3, rtol=2e-3), \
        float(jnp.max(jnp.abs(y - ref)))

    print("KERNEL_OK")
</pallas_src>

<mosaic_0001>
module attributes {stable_mosaic.version = 11 : i64} {
  func.func @generator_kernel(%arg0: i32, %arg1: i32, %arg2: memref<8x128xbf16, #tpu.memory_space<vmem>>, %arg3: memref<128x1024xbf16, #tpu.memory_space<vmem>>, %arg4: memref<1x1024xf32, #tpu.memory_space<vmem>>, %arg5: memref<1024x512xbf16, #tpu.memory_space<vmem>>, %arg6: memref<1x512xf32, #tpu.memory_space<vmem>>, %arg7: memref<512x896xbf16, #tpu.memory_space<vmem>>, %arg8: memref<1x896xf32, #tpu.memory_space<vmem>>, %arg9: memref<8x896xf32, #tpu.memory_space<vmem>>, %arg10: memref<8x1024xbf16, #tpu.memory_space<vmem>>, %arg11: memref<8x896xf32, #tpu.memory_space<vmem>>) attributes {dimension_semantics = [#tpu.dimension_semantics<parallel>, #tpu.dimension_semantics<arbitrary>], iteration_bounds = array<i64: 1, 4>, scalar_prefetch = 0 : i64, scratch_operands = 2 : i64, tpu.core_type = #tpu.core_type<tc>, window_params = [{transform_indices = @transform_0, window_bounds = array<i64: 8, 128>}, {pipeline_mode = #tpu.pipeline_mode<synchronous>, transform_indices = @transform_1, window_bounds = array<i64: 128, 1024>}, {pipeline_mode = #tpu.pipeline_mode<synchronous>, transform_indices = @transform_2, window_bounds = array<i64: 1, 1024>}, {transform_indices = @transform_3, window_bounds = array<i64: 1024, 512>}, {transform_indices = @transform_4, window_bounds = array<i64: 1, 512>}, {transform_indices = @transform_5, window_bounds = array<i64: 512, 896>}, {pipeline_mode = #tpu.pipeline_mode<synchronous>, transform_indices = @transform_6, window_bounds = array<i64: 1, 896>}, {transform_indices = @transform_7, window_bounds = array<i64: 8, 896>}]} {
    %c0_i32 = arith.constant 0 : i32
    %0 = arith.cmpi eq, %arg1, %c0_i32 : i32
    %1 = arith.extui %0 : i1 to i32
    %c0_i32_0 = arith.constant 0 : i32
    %2 = arith.cmpi ne, %1, %c0_i32_0 : i32
    scf.if %2 {
      %c0_15 = arith.constant 0 : index
      %c0_16 = arith.constant 0 : index
      %20 = vector.load %arg2[%c0_15, %c0_16] : memref<8x128xbf16, #tpu.memory_space<vmem>>, vector<8x128xbf16>
      %c0_17 = arith.constant 0 : index
      %c0_18 = arith.constant 0 : index
      %21 = vector.load %arg3[%c0_17, %c0_18] : memref<128x1024xbf16, #tpu.memory_space<vmem>>, vector<128x1024xbf16>
      %cst_19 = arith.constant dense<0.000000e+00> : vector<8x1024xf32>
      %22 = tpu.matmul %20, %21, %cst_19 {dimension_numbers = #tpu.dot_dimension_numbers<[1], [0], [0], [1], [0, 0, 1, 1], [], []>} : vector<8x128xbf16>, vector<128x1024xbf16>, vector<8x1024xf32> -> vector<8x1024xf32>
      %c0_20 = arith.constant 0 : index
      %c0_21 = arith.constant 0 : index
      %23 = vector.load %arg4[%c0_20, %c0_21] : memref<1x1024xf32, #tpu.memory_space<vmem>>, vector<1x1024xf32>
      %24 = vector.broadcast %23 : vector<1x1024xf32> to vector<8x1024xf32>
      %25 = arith.addf %22, %24 : vector<8x1024xf32>
      %cst_22 = arith.constant 0.000000e+00 : f32
      %26 = vector.broadcast %cst_22 : f32 to vector<8x1024xf32>
      %27 = arith.maximumf %25, %26 : vector<8x1024xf32>
      %28 = arith.truncf %27 : vector<8x1024xf32> to vector<8x1024xbf16>
      %c0_23 = arith.constant 0 : index
      %c0_24 = arith.constant 0 : index
      %29 = vector.load %arg10[%c0_23, %c0_24] : memref<8x1024xbf16, #tpu.memory_space<vmem>>, vector<8x1024xbf16>
      tpu.vector_store %arg10[%c0_23, %c0_24], %28 {strides = array<i32>} : memref<8x1024xbf16, #tpu.memory_space<vmem>>, vector<8x1024xbf16>,
      %cst_25 = arith.constant 0.000000e+00 : f32
      %30 = vector.broadcast %cst_25 : f32 to vector<8x896xf32>
      %c0_26 = arith.constant 0 : index
      %c0_27 = arith.constant 0 : index
      %31 = vector.load %arg11[%c0_26, %c0_27] : memref<8x896xf32, #tpu.memory_space<vmem>>, vector<8x896xf32>
      tpu.vector_store %arg11[%c0_26, %c0_27], %30 {strides = array<i32>} : memref<8x896xf32, #tpu.memory_space<vmem>>, vector<8x896xf32>,
    } else {
    }
    %c0 = arith.constant 0 : index
    %c0_1 = arith.constant 0 : index
    %3 = vector.load %arg10[%c0, %c0_1] : memref<8x1024xbf16, #tpu.memory_space<vmem>>, vector<8x1024xbf16>
    %c0_2 = arith.constant 0 : index
    %c0_3 = arith.constant 0 : index
    %4 = vector.load %arg5[%c0_2, %c0_3] : memref<1024x512xbf16, #tpu.memory_space<vmem>>, vector<1024x512xbf16>
    %cst = arith.constant dense<0.000000e+00> : vector<8x512xf32>
    %5 = tpu.matmul %3, %4, %cst {dimension_numbers = #tpu.dot_dimension_numbers<[1], [0], [0], [1], [0, 0, 1, 1], [], []>} : vector<8x1024xbf16>, vector<1024x512xbf16>, vector<8x512xf32> -> vector<8x512xf32>
    %c0_4 = arith.constant 0 : index
    %c0_5 = arith.constant 0 : index
    %6 = vector.load %arg6[%c0_4, %c0_5] : memref<1x512xf32, #tpu.memory_space<vmem>>, vector<1x512xf32>
    %7 = vector.broadcast %6 : vector<1x512xf32> to vector<8x512xf32>
    %8 = arith.addf %5, %7 : vector<8x512xf32>
    %cst_6 = arith.constant 0.000000e+00 : f32
    %9 = vector.broadcast %cst_6 : f32 to vector<8x512xf32>
    %10 = arith.maximumf %8, %9 : vector<8x512xf32>
    %11 = arith.truncf %10 : vector<8x512xf32> to vector<8x512xbf16>
    %c0_7 = arith.constant 0 : index
    %c0_8 = arith.constant 0 : index
    %12 = vector.load %arg11[%c0_7, %c0_8] : memref<8x896xf32, #tpu.memory_space<vmem>>, vector<8x896xf32>
    %c0_9 = arith.constant 0 : index
    %c0_10 = arith.constant 0 : index
    %13 = vector.load %arg7[%c0_9, %c0_10] : memref<512x896xbf16, #tpu.memory_space<vmem>>, vector<512x896xbf16>
    %cst_11 = arith.constant dense<0.000000e+00> : vector<8x896xf32>
    %14 = tpu.matmul %11, %13, %cst_11 {dimension_numbers = #tpu.dot_dimension_numbers<[1], [0], [0], [1], [0, 0, 1, 1], [], []>} : vector<8x512xbf16>, vector<512x896xbf16>, vector<8x896xf32> -> vector<8x896xf32>
    %15 = arith.addf %12, %14 : vector<8x896xf32>
    %c0_12 = arith.constant 0 : index
    %c0_13 = arith.constant 0 : index
    %16 = vector.load %arg11[%c0_12, %c0_13] : memref<8x896xf32, #tpu.memory_space<vmem>>, vector<8x896xf32>
    tpu.vector_store %arg11[%c0_12, %c0_13], %15 {strides = array<i32>} : memref<8x896xf32, #tpu.memory_space<vmem>>, vector<8x896xf32>,
    %c3_i32 = arith.constant 3 : i32
    %17 = arith.cmpi eq, %arg1, %c3_i32 : i32
    %18 = arith.extui %17 : i1 to i32
    %c0_i32_14 = arith.constant 0 : i32
    %19 = arith.cmpi ne, %18, %c0_i32_14 : i32
    scf.if %19 {
      %c0_15 = arith.constant 0 : index
      %c0_16 = arith.constant 0 : index
      %20 = vector.load %arg11[%c0_15, %c0_16] : memref<8x896xf32, #tpu.memory_space<vmem>>, vector<8x896xf32>
      %c0_17 = arith.constant 0 : index
      %c0_18 = arith.constant 0 : index
      %21 = vector.load %arg8[%c0_17, %c0_18] : memref<1x896xf32, #tpu.memory_space<vmem>>, vector<1x896xf32>
      %22 = vector.broadcast %21 : vector<1x896xf32> to vector<8x896xf32>
      %23 = arith.addf %20, %22 : vector<8x896xf32>
      %24 = math.tanh %23 : vector<8x896xf32>
      %c0_19 = arith.constant 0 : index
      %c0_20 = arith.constant 0 : index
      %25 = vector.load %arg9[%c0_19, %c0_20] : memref<8x896xf32, #tpu.memory_space<vmem>>, vector<8x896xf32>
      tpu.vector_store %arg9[%c0_19, %c0_20], %24 {strides = array<i32>} : memref<8x896xf32, #tpu.memory_space<vmem>>, vector<8x896xf32>,
    } else {
    }
    return
  }
  func.func @transform_0(%arg0: i32, %arg1: i32) -> (i32, i32) {
    %c0_i32 = arith.constant 0 : i32
    %c0_i32_0 = arith.constant 0 : i32
    return %arg0, %c0_i32 : i32, i32
  }
  func.func @transform_1(%arg0: i32, %arg1: i32) -> (i32, i32) {
    %c0_i32 = arith.constant 0 : i32
    %c0_i32_0 = arith.constant 0 : i32
    %c0_i32_1 = arith.constant 0 : i32
    return %c0_i32, %c0_i32_0 : i32, i32
  }
  func.func @transform_2(%arg0: i32, %arg1: i32) -> (i32, i32) {
    %c0_i32 = arith.constant 0 : i32
    %c0_i32_0 = arith.constant 0 : i32
    %c0_i32_1 = arith.constant 0 : i32
    return %c0_i32, %c0_i32_0 : i32, i32
  }
  func.func @transform_3(%arg0: i32, %arg1: i32) -> (i32, i32) {
    %c0_i32 = arith.constant 0 : i32
    %c0_i32_0 = arith.constant 0 : i32
    return %c0_i32, %arg1 : i32, i32
  }
  func.func @transform_4(%arg0: i32, %arg1: i32) -> (i32, i32) {
    %c0_i32 = arith.constant 0 : i32
    %c0_i32_0 = arith.constant 0 : i32
    return %c0_i32, %arg1 : i32, i32
  }
  func.func @transform_5(%arg0: i32, %arg1: i32) -> (i32, i32) {
    %c0_i32 = arith.constant 0 : i32
    %c0_i32_0 = arith.constant 0 : i32
    return %arg1, %c0_i32 : i32, i32
  }
  func.func @transform_6(%arg0: i32, %arg1: i32) -> (i32, i32) {
    %c0_i32 = arith.constant 0 : i32
    %c0_i32_0 = arith.constant 0 : i32
    %c0_i32_1 = arith.constant 0 : i32
    return %c0_i32, %c0_i32_0 : i32, i32
  }
  func.func @transform_7(%arg0: i32, %arg1: i32) -> (i32, i32) {
    %c0_i32 = arith.constant 0 : i32
    %c0_i32_0 = arith.constant 0 : i32
    return %arg0, %c0_i32 : i32, i32
  }
}

</mosaic_0001>

<llo_original>
// kernel: tpu_custom_call.1
$region0: #{tpu_custom_call.1}
  #allocation0 [shape = 'u32[]', space=smem, size = 0x4, offset = 0x4, fixed_abs, tag = 'smem constant byte address 0x4 - core index']
  #allocation1 [shape = 'u32[72,128]{1,0:T(1,128)}', space=vmem, size = 0x9000, scoped, tag = 'internal scratch']
  #allocation2 [shape = 'bf16[8,1024]{1,0:T(8,128)(2,1)}', space=vmem, size = 0x4000, scoped, tag = 'scratch operand']
  #allocation3 [shape = 'f32[8,896]{1,0:T(8,128)}', space=vmem, size = 0x7000, scoped, tag = 'scratch operand']
  %s0 = inlined_call_operand.hbm [shape: bf16[8,128], index: 0, kind: input, shape index: {}]
  %s1 = inlined_call_operand.hbm [shape: bf16[128,1024], index: 1, kind: input, shape index: {}]
  %s2 = inlined_call_operand.hbm [shape: f32[1,1024], index: 2, kind: input, shape index: {}]
  %s3 = inlined_call_operand.hbm [shape: bf16[1024,2048], index: 3, kind: input, shape index: {}]
  %s4 = inlined_call_operand.hbm [shape: f32[1,2048], index: 4, kind: input, shape index: {}]
  %s5 = inlined_call_operand.hbm [shape: bf16[2048,896], index: 5, kind: input, shape index: {}]
  %s6 = inlined_call_operand.hbm [shape: f32[1,896], index: 6, kind: input, shape index: {}]
  %s7 = inlined_call_operand.hbm [shape: f32[8,896], index: 7, kind: output, shape index: {}]
  %s8 = sld [smem:[#allocation0]]
  $region97: #{tpu_custom_call.1} parent=0
    _
  %s10 = ssub.s32 1, %s8
  %s11 = scalar_select 0, %s10, %s8
  $region1: #{tpu_custom_call.1} parent=0
    #allocation4 [shape = 'u8[2048]{0}', space=vmem, size = 0x800, scoped, tag = 'input window, operand 0, single buffered']
    #allocation5 [shape = 's32[2]{0}', space=sflag, size = 0x8, scoped, tag = 'scoped memory for tpu_custom_call.1']
    #allocation6 [shape = 's32[2]{0}', space=sflag, size = 0x8, scoped, tag = 'scoped memory for tpu_custom_call.1']
    #allocation7 [shape = 'u8[262144]{0}', space=vmem, size = 0x40000, scoped, tag = 'input window, operand 1, single buffered']
    #allocation8 [shape = 's32[1]{0}', space=sflag, size = 0x4, scoped, tag = 'scoped memory for tpu_custom_call.1']
    #allocation9 [shape = 'u8[4096]{0}', space=vmem, size = 0x1000, scoped, tag = 'input window, operand 2, single buffered']
    #allocation10 [shape = 'u8[2097152]{0}', space=vmem, size = 0x200000, scoped, tag = 'input window, operand 3']
    #allocation11 [shape = 's32[2]{0}', space=sflag, size = 0x8, scoped, tag = 'scoped memory for tpu_custom_call.1']
    #allocation12 [shape = 'u8[4096]{0}', space=vmem, size = 0x1000, scoped, tag = 'input window, operand 4']
    #allocation13 [shape = 'u8[1835008]{0}', space=vmem, size = 0x1c0000, scoped, tag = 'input window, operand 5']
    #allocation14 [shape = 's32[2]{0}', space=sflag, size = 0x8, scoped, tag = 'scoped memory for tpu_custom_call.1']
    #allocation15 [shape = 'u8[3584]{0}', space=vmem, size = 0x1000, scoped, tag = 'input window, operand 6, single buffered']
    #allocation16 [shape = 'u8[28672]{0}', space=vmem, size = 0x7000, scoped, tag = 'output window, operand 0, single buffered']
    %12 = vsyncpa [#allocation5], 0
    %13 = vsyncpa [#allocation8], 0
    %14 = vsyncpa [#allocation11], 0
    %s15 = scalar_lea.sflag [#allocation11], 1
    %16 = vsyncpa %s15, 0
    %17 = vsyncpa [#allocation14], 0
    %s18 = scalar_lea.sflag [#allocation14], 1
    %19 = vsyncpa %s18, 0
    %20 = vsyncpa [#allocation6], 0
    loop: start=0, step=1, limit=6
    $region2: #{tpu_custom_call.1} parent=1 // loop_pre_header
      _
    $region3: #{tpu_custom_call.1} parent=1 // loop_header
      %s22 = sphi 0, %s26
      %p23 = scmp.ge.s32.totalorder %s22, 6
      %s29 = sphi 0, %s41
      %s30 = sphi 0, %s37
      %s31 = sphi 0, %s29
      %s32 = sphi 0, %s30
      %s33 = sphi 0, %s31
      %s34 = sphi 0, %s32
      %s44 = sphi 0, %s46
      %s47 = sphi 0, %s44
      %s48 = sphi 0, %s47
      %s64 = sphi 0, %s48
      %s68 = sphi 0, %s68
      %s70 = sphi 0, %s68
      %s71 = sphi 0, %s70
      %s85 = sphi 0, %s71
      %s89 = sphi 0, %s89
      %s91 = sphi 0, %s89
      %s92 = sphi 0, %s91
      %s106 = sphi 0, %s92
      %s112 = sphi 0, %s114
      %s115 = sphi 0, %s112
      %s116 = sphi 0, %s115
      %s132 = sphi 0, %s116
      %s138 = sphi 0, %s140
      %s141 = sphi 0, %s138
      %s142 = sphi 0, %s141
      %s158 = sphi 0, %s142
      %s164 = sphi 0, %s166
      %s167 = sphi 0, %s164
      %s168 = sphi 0, %s167
      %s184 = sphi 0, %s168
      %s188 = sphi 0, %s188
      %s190 = sphi 0, %s188
      %s191 = sphi 0, %s190
      %s205 = sphi 0, %s191
      %s211 = sphi 0, %s213
      %s214 = sphi 0, %s211
      %s215 = sphi 0, %s214
      %s231 = sphi 0, %s215
    $region4: #{tpu_custom_call.1} parent=1 // loop_header_branch
      %25 = sbr.rel (%p23) target = $region8
    $region5: #{tpu_custom_call.1} parent=1 // loop_body
      %s27 = ssub.s32 %s22, 1
      %s28 = ssub.s32 %s22, 2
      %s35 = sadd.s32 1, %s30
      %p36 = scmp.ge.s32.totalorder %s35, 4
      %s37 = scalar_select %p36, 0, %s35
      %s38 = sadd.s32 1, %s29
      %s39 = scalar_select %p36, %s38, %s29
      %p40 = scmp.ge.s32.totalorder %s39, 1
      %s41 = scalar_select %p40, 0, %s39
      %s42 = ssub.s32 %s29, %s41
      %p43 = scmp.eq.s32.totalorder %s42, 0
      %s45 = sadd.s32 %s44, 1
      %s46 = scalar_select %p43, %s44, %s45
      %p49 = pneg %p43
      %p50 = scmp.eq.s32.totalorder %s22, 3
      %p51 = por %p49, %p50
      %p52 = scmp.ne.s32.totalorder %s44, %s47
      %p53 = scmp.eq.s32.totalorder %s22, 0
      %p54 = por %p52, %p53
      %p55 = scmp.ne.s32.totalorder %s44, %s47
      %p56 = scmp.eq.s32.totalorder %s27, 3
      %p57 = por %p55, %p56
      %p58 = scmp.ne.s32.totalorder %s47, %s48
      %p59 = scmp.eq.s32.totalorder %s27, 0
      %p60 = por %p58, %p59
      %p61 = scmp.ne.s32.totalorder %s47, %s48
      %p62 = scmp.eq.s32.totalorder %s28, 3
      %p63 = por %p61, %p62
      %p65 = scmp.ne.s32.totalorder %s48, %s64
      %p66 = scmp.eq.s32.totalorder %s28, 0
      %p67 = por %p65, %p66
      %s69 = sadd.s32 %s68, 1
      %p72 = scmp.eq.s32.totalorder %s22, 3
      %p73 = scmp.ne.s32.totalorder %s68, %s70
      %p74 = scmp.eq.s32.totalorder %s22, 0
      %p75 = por %p73, %p74
      %p76 = scmp.ne.s32.totalorder %s68, %s70
      %p77 = scmp.eq.s32.totalorder %s27, 3
      %p78 = por %p76, %p77
      %p79 = scmp.ne.s32.totalorder %s70, %s71
      %p80 = scmp.eq.s32.totalorder %s27, 0
      %p81 = por %p79, %p80
      %p82 = scmp.ne.s32.totalorder %s70, %s71
      %p83 = scmp.eq.s32.totalorder %s28, 3
      %p84 = por %p82, %p83
      %p86 = scmp.ne.s32.totalorder %s71, %s85
      %p87 = scmp.eq.s32.totalorder %s28, 0
      %p88 = por %p86, %p87
      %s90 = sadd.s32 %s89, 1
      %p93 = scmp.eq.s32.totalorder %s22, 3
      %p94 = scmp.ne.s32.totalorder %s89, %s91
      %p95 = scmp.eq.s32.totalorder %s22, 0
      %p96 = por %p94, %p95
      %p97 = scmp.ne.s32.totalorder %s89, %s91
      %p98 = scmp.eq.s32.totalorder %s27, 3
      %p99 = por %p97, %p98
      %p100 = scmp.ne.s32.totalorder %s91, %s92
      %p101 = scmp.eq.s32.totalorder %s27, 0
      %p102 = por %p100, %p101
      %p103 = scmp.ne.s32.totalorder %s91, %s92
      %p104 = scmp.eq.s32.totalorder %s28, 3
      %p105 = por %p103, %p104
      %p107 = scmp.ne.s32.totalorder %s92, %s106
      %p108 = scmp.eq.s32.totalorder %s28, 0
      %p109 = por %p107, %p108
      %s110 = ssub.s32 %s30, %s37
      %p111 = scmp.eq.s32.totalorder %s110, 0
      %s113 = sadd.s32 %s112, 1
      %s114 = scalar_select %p111, %s112, %s113
      %p117 = pneg %p111
      %p118 = scmp.eq.s32.totalorder %s22, 3
      %p119 = por %p117, %p118
      %p120 = scmp.ne.s32.totalorder %s112, %s115
      %p121 = scmp.eq.s32.totalorder %s22, 0
      %p122 = por %p120, %p121
      %p123 = scmp.ne.s32.totalorder %s112, %s115
      %p124 = scmp.eq.s32.totalorder %s27, 3
      %p125 = por %p123, %p124
      %p126 = scmp.ne.s32.totalorder %s115, %s116
      %p127 = scmp.eq.s32.totalorder %s27, 0
      %p128 = por %p126, %p127
      %p129 = scmp.ne.s32.totalorder %s115, %s116
      %p130 = scmp.eq.s32.totalorder %s28, 3
      %p131 = por %p129, %p130
      %p133 = scmp.ne.s32.totalorder %s116, %s132
      %p134 = scmp.eq.s32.totalorder %s28, 0
      %p135 = por %p133, %p134
      %s136 = ssub.s32 %s30, %s37
      %p137 = scmp.eq.s32.totalorder %s136, 0
      %s139 = sadd.s32 %s138, 1
      %s140 = scalar_select %p137, %s138, %s139
      %p143 = pneg %p137
      %p144 = scmp.eq.s32.totalorder %s22, 3
      %p145 = por %p143, %p144
      %p146 = scmp.ne.s32.totalorder %s138, %s141
      %p147 = scmp.eq.s32.totalorder %s22, 0
      %p148 = por %p146, %p147
      %p149 = scmp.ne.s32.totalorder %s138, %s141
      %p150 = scmp.eq.s32.totalorder %s27, 3
      %p151 = por %p149, %p150
      %p152 = scmp.ne.s32.totalorder %s141, %s142
      %p153 = scmp.eq.s32.totalorder %s27, 0
      %p154 = por %p152, %p153
      %p155 = scmp.ne.s32.totalorder %s141, %s142
      %p156 = scmp.eq.s32.totalorder %s28, 3
      %p157 = por %p155, %p156
      %p159 = scmp.ne.s32.totalorder %s142, %s158
      %p160 = scmp.eq.s32.totalorder %s28, 0
      %p161 = por %p159, %p160
      %s162 = ssub.s32 %s30, %s37
      %p163 = scmp.eq.s32.totalorder %s162, 0
      %s165 = sadd.s32 %s164, 1
      %s166 = scalar_select %p163, %s164, %s165
      %p169 = pneg %p163
      %p170 = scmp.eq.s32.totalorder %s22, 3
      %p171 = por %p169, %p170
      %p172 = scmp.ne.s32.totalorder %s164, %s167
      %p173 = scmp.eq.s32.totalorder %s22, 0
      %p174 = por %p172, %p173
      %p175 = scmp.ne.s32.totalorder %s164, %s167
      %p176 = scmp.eq.s32.totalorder %s27, 3
      %p177 = por %p175, %p176
      %p178 = scmp.ne.s32.totalorder %s167, %s168
      %p179 = scmp.eq.s32.totalorder %s27, 0
      %p180 = por %p178, %p179
      %p181 = scmp.ne.s32.totalorder %s167, %s168
      %p182 = scmp.eq.s32.totalorder %s28, 3
      %p183 = por %p181, %p182
      %p185 = scmp.ne.s32.totalorder %s168, %s184
      %p186 = scmp.eq.s32.totalorder %s28, 0
      %p187 = por %p185, %p186
      %s189 = sadd.s32 %s188, 1
      %p192 = scmp.eq.s32.totalorder %s22, 3
      %p193 = scmp.ne.s32.totalorder %s188, %s190
      %p194 = scmp.eq.s32.totalorder %s22, 0
      %p195 = por %p193, %p194
      %p196 = scmp.ne.s32.totalorder %s188, %s190
      %p197 = scmp.eq.s32.totalorder %s27, 3
      %p198 = por %p196, %p197
      %p199 = scmp.ne.s32.totalorder %s190, %s191
      %p200 = scmp.eq.s32.totalorder %s27, 0
      %p201 = por %p199, %p200
      %p202 = scmp.ne.s32.totalorder %s190, %s191
      %p203 = scmp.eq.s32.totalorder %s28, 3
      %p204 = por %p202, %p203
      %p206 = scmp.ne.s32.totalorder %s191, %s205
      %p207 = scmp.eq.s32.totalorder %s28, 0
      %p208 = por %p206, %p207
      %s209 = ssub.s32 %s29, %s41
      %p210 = scmp.eq.s32.totalorder %s209, 0
      %s212 = sadd.s32 %s211, 1
      %s213 = scalar_select %p210, %s211, %s212
      %p216 = pneg %p210
      %p217 = scmp.eq.s32.totalorder %s22, 3
      %p218 = por %p216, %p217
      %p219 = scmp.ne.s32.totalorder %s211, %s214
      %p220 = scmp.eq.s32.totalorder %s22, 0
      %p221 = por %p219, %p220
      %p222 = scmp.ne.s32.totalorder %s211, %s214
      %p223 = scmp.eq.s32.totalorder %s27, 3
      %p224 = por %p222, %p223
      %p225 = scmp.ne.s32.totalorder %s214, %s215
      %p226 = scmp.eq.s32.totalorder %s27, 0
      %p227 = por %p225, %p226
      %p228 = scmp.ne.s32.totalorder %s214, %s215
      %p229 = scmp.eq.s32.totalorder %s28, 3
      %p230 = por %p228, %p229
      %p232 = scmp.ne.s32.totalorder %s215, %s231
      %p233 = scmp.eq.s32.totalorder %s28, 0
      %p234 = por %p232, %p233
      %p235 = scmp.le.s32.totalorder 1, %s22
      %p236 = scmp.lt.s32.totalorder %s22, 5
      %p237 = pnand %p235, %p236
      %p238 = pneg %p237
      // Predicated region
      $region9: #{tpu_custom_call.1} parent=5 // pred_check
        _
      $region10: #{tpu_custom_call.1} parent=5 // pred_check_branch
        %240 = sbr.rel (%p237) target = $region12
      $region11: #{tpu_custom_call.1} parent=5 // pred_region
        %s241 = ssub.s32 %s22, 1
        // Predicated region
        $region13: #{tpu_custom_call.1} parent=11 // pred_check
          %p242 = pneg %p60
        $region14: #{tpu_custom_call.1} parent=11 // pred_check_branch
          %244 = sbr.rel (%p242) target = $region16
        $region15: #{tpu_custom_call.1} parent=11 // pred_region
          %246 = vsyncadd [#allocation5], 0
          %s247 = smul.addr %s31, 4
          %s248 = scalar_lea.hbm %s0, %s247
          %s250 = sshll.u32 %s248, 4
          %s251 = int_to_ptr.hbm [resolvable:$true] %s250
          %s252 = sshll.u32 [#allocation4], 4
          %s253 = int_to_ptr.vmem [resolvable:$true] %s252
          %255 = dma.hbm_to_vmem [thread:$0]  %s251, 64, %s253, [#allocation5]
        $region16: #{tpu_custom_call.1} parent=11 // pred_fallthru
          _
        // Predicated region
        $region17: #{tpu_custom_call.1} parent=11 // pred_check
          %p256 = pneg %p81
        $region18: #{tpu_custom_call.1} parent=11 // pred_check_branch
          %258 = sbr.rel (%p256) target = $region20
        $region19: #{tpu_custom_call.1} parent=11 // pred_region
          %260 = vsyncadd [#allocation8], 0
          %s261 = sshll.u32 %s1, 4
          %s262 = int_to_ptr.hbm [resolvable:$true] %s261
          %s263 = sshll.u32 [#allocation7], 4
          %s264 = int_to_ptr.vmem [resolvable:$true] %s263
          %269 = dma.hbm_to_vmem [thread:$0]  %s262, 8192, %s264, [#allocation8], 512, 512, 32
        $region20: #{tpu_custom_call.1} parent=11 // pred_fallthru
          _
        // Predicated region
        $region21: #{tpu_custom_call.1} parent=11 // pred_check
          %p270 = pneg %p102
        $region22: #{tpu_custom_call.1} parent=11 // pred_check_branch
          %272 = sbr.rel (%p270) target = $region24
        $region23: #{tpu_custom_call.1} parent=11 // pred_region
          %274 = vsyncadd [#allocation8], 0
          %s276 = sshll.u32 %s2, 4
          %s277 = int_to_ptr.hbm [resolvable:$true] %s276
          %s278 = sshll.u32 [#allocation9], 4
          %s279 = int_to_ptr.vmem [resolvable:$true] %s278
          %281 = dma.hbm_to_vmem [thread:$0]  %s277, 128, %s279, [#allocation8]
        $region24: #{tpu_custom_call.1} parent=11 // pred_fallthru
          _
        // Predicated region
        $region25: #{tpu_custom_call.1} parent=11 // pred_check
          %p282 = pneg %p201
        $region26: #{tpu_custom_call.1} parent=11 // pred_check_branch
          %284 = sbr.rel (%p282) target = $region28
        $region27: #{tpu_custom_call.1} parent=11 // pred_region
          %286 = vsyncadd [#allocation14], 0
          %s288 = sshll.u32 %s6, 4
          %s289 = int_to_ptr.hbm [resolvable:$true] %s288
          %s290 = sshll.u32 [#allocation15], 4
          %s291 = int_to_ptr.vmem [resolvable:$true] %s290
          %293 = dma.hbm_to_vmem [thread:$0]  %s289, 112, %s291, [#allocation14]
        $region28: #{tpu_custom_call.1} parent=11 // pred_fallthru
          _
      $region12: #{tpu_custom_call.1} parent=5 // pred_fallthru
        _
      %p294 = scmp.lt.s32.totalorder %s22, 4
      // Predicated region
      $region29: #{tpu_custom_call.1} parent=5 // pred_check
        %p295 = pneg %p294
      $region30: #{tpu_custom_call.1} parent=5 // pred_check_branch
        %297 = sbr.rel (%p295) target = $region32
      $region31: #{tpu_custom_call.1} parent=5 // pred_region
        // Predicated region
        $region33: #{tpu_custom_call.1} parent=31 // pred_check
          %p298 = pneg %p122
        $region34: #{tpu_custom_call.1} parent=31 // pred_check_branch
          %300 = sbr.rel (%p298) target = $region36
        $region35: #{tpu_custom_call.1} parent=31 // pred_region
          %s301 = sand.u32 %s22, 1
          %s302 = scalar_lea.sflag [#allocation11], %s301
          %s303 = sand.u32 %s112, 1
          %s304 = smul.addr %s303, 2048
          %s305 = scalar_lea.vmem [#allocation10], %s304
          %s306 = smul.u32 4, %s30
          %308 = vsyncadd %s302, 0
          %s309 = smul.addr %s306, 4
          %s310 = scalar_lea.hbm %s3, %s309
          %s311 = sshll.u32 %s310, 4
          %s312 = int_to_ptr.hbm [resolvable:$true] %s311
          %s313 = sshll.u32 %s305, 4
          %s314 = int_to_ptr.vmem [resolvable:$true] %s313
          %319 = dma.hbm_to_vmem [thread:$0]  %s312, 32768, %s314, %s302, 1024, 256, 16
        $region36: #{tpu_custom_call.1} parent=31 // pred_fallthru
          _
        // Predicated region
        $region37: #{tpu_custom_call.1} parent=31 // pred_check
          %p320 = pneg %p148
        $region38: #{tpu_custom_call.1} parent=31 // pred_check_branch
          %322 = sbr.rel (%p320) target = $region40
        $region39: #{tpu_custom_call.1} parent=31 // pred_region
          %s323 = sand.u32 %s22, 1
          %s324 = scalar_lea.sflag [#allocation11], %s323
          %s325 = sand.u32 %s138, 1
          %s326 = smul.addr %s325, 4
          %s327 = scalar_lea.vmem [#allocation12], %s326
          %s328 = smul.u32 4, %s30
          %330 = vsyncadd %s324, 0
          %s331 = scalar_lea.hbm %s4, %s328
          %s333 = sshll.u32 %s331, 4
          %s334 = int_to_ptr.hbm [resolvable:$true] %s333
          %s335 = sshll.u32 %s327, 4
          %s336 = int_to_ptr.vmem [resolvable:$true] %s335
          %338 = dma.hbm_to_vmem [thread:$0]  %s334, 64, %s336, %s324
        $region40: #{tpu_custom_call.1} parent=31 // pred_fallthru
          _
        // Predicated region
        $region41: #{tpu_custom_call.1} parent=31 // pred_check
          %p339 = pneg %p174
        $region42: #{tpu_custom_call.1} parent=31 // pred_check_branch
          %341 = sbr.rel (%p339) target = $region44
        $region43: #{tpu_custom_call.1} parent=31 // pred_region
          %s342 = sand.u32 %s22, 1
          %s343 = scalar_lea.sflag [#allocation14], %s342
          %s344 = sand.u32 %s164, 1
          %s345 = smul.addr %s344, 1792
          %s346 = scalar_lea.vmem [#allocation13], %s345
          %s347 = smul.u32 64, %s30
          %349 = vsyncadd %s343, 0
          %s350 = smul.addr %s347, 7
          %s351 = smul.addr %s350, 4
          %s352 = scalar_lea.hbm %s5, %s351
          %s353 = sshll.u32 %s352, 4
          %s354 = int_to_ptr.hbm [resolvable:$true] %s353
          %s355 = sshll.u32 %s346, 4
          %s356 = int_to_ptr.vmem [resolvable:$true] %s355
          %361 = dma.hbm_to_vmem [thread:$0]  %s354, 28672, %s356, %s343, 448, 448, 28
        $region44: #{tpu_custom_call.1} parent=31 // pred_fallthru
          _
      $region32: #{tpu_custom_call.1} parent=5 // pred_fallthru
        _
      %p362 = scmp.le.s32.totalorder 1, %s22
      %p363 = scmp.lt.s32.totalorder %s22, 5
      %p364 = pnand %p362, %p363
      %p365 = pneg %p364
      // Predicated region
      $region45: #{tpu_custom_call.1} parent=5 // pred_check
        _
      $region46: #{tpu_custom_call.1} parent=5 // pred_check_branch
        %367 = sbr.rel (%p364) target = $region48
      $region47: #{tpu_custom_call.1} parent=5 // pred_region
        %s368 = ssub.s32 %s22, 1
        // Predicated region
        $region49: #{tpu_custom_call.1} parent=47 // pred_check
          %p369 = pneg %p60
        $region50: #{tpu_custom_call.1} parent=47 // pred_check_branch
          %371 = sbr.rel (%p369) target = $region52
        $region51: #{tpu_custom_call.1} parent=47 // pred_region
          %373 = dma.done [#allocation5], 64
        $region52: #{tpu_custom_call.1} parent=47 // pred_fallthru
          _
        // Predicated region
        $region53: #{tpu_custom_call.1} parent=47 // pred_check
          %p374 = pneg %p81
        $region54: #{tpu_custom_call.1} parent=47 // pred_check_branch
          %376 = sbr.rel (%p374) target = $region56
        $region55: #{tpu_custom_call.1} parent=47 // pred_region
          %378 = dma.done [#allocation8], 8192
        $region56: #{tpu_custom_call.1} parent=47 // pred_fallthru
          _
        // Predicated region
        $region57: #{tpu_custom_call.1} parent=47 // pred_check
          %p379 = pneg %p102
        $region58: #{tpu_custom_call.1} parent=47 // pred_check_branch
          %381 = sbr.rel (%p379) target = $region60
        $region59: #{tpu_custom_call.1} parent=47 // pred_region
          %383 = dma.done [#allocation8], 128
        $region60: #{tpu_custom_call.1} parent=47 // pred_fallthru
          _
        %s384 = sand.u32 %s27, 1
        %s385 = scalar_lea.sflag [#allocation11], %s384
        %s386 = sand.u32 %s115, 1
        %s387 = smul.addr %s386, 2048
        %s388 = scalar_lea.vmem [#allocation10], %s387
        // Predicated region
        $region61: #{tpu_custom_call.1} parent=47 // pred_check
          %p389 = pneg %p128
        $region62: #{tpu_custom_call.1} parent=47 // pred_check_branch
          %391 = sbr.rel (%p389) target = $region64
        $region63: #{tpu_custom_call.1} parent=47 // pred_region
          %393 = dma.done %s385, 32768
        $region64: #{tpu_custom_call.1} parent=47 // pred_fallthru
          _
        %s394 = sand.u32 %s27, 1
        %s395 = scalar_lea.sflag [#allocation11], %s394
        %s396 = sand.u32 %s141, 1
        %s397 = smul.addr %s396, 4
        %s398 = scalar_lea.vmem [#allocation12], %s397
        // Predicated region
        $region65: #{tpu_custom_call.1} parent=47 // pred_check
          %p399 = pneg %p154
        $region66: #{tpu_custom_call.1} parent=47 // pred_check_branch
          %401 = sbr.rel (%p399) target = $region68
        $region67: #{tpu_custom_call.1} parent=47 // pred_region
          %403 = dma.done %s395, 64
        $region68: #{tpu_custom_call.1} parent=47 // pred_fallthru
          _
        %s404 = sand.u32 %s27, 1
        %s405 = scalar_lea.sflag [#allocation14], %s404
        %s406 = sand.u32 %s167, 1
        %s407 = smul.addr %s406, 1792
        %s408 = scalar_lea.vmem [#allocation13], %s407
        // Predicated region
        $region69: #{tpu_custom_call.1} parent=47 // pred_check
          %p409 = pneg %p180
        $region70: #{tpu_custom_call.1} parent=47 // pred_check_branch
          %411 = sbr.rel (%p409) target = $region72
        $region71: #{tpu_custom_call.1} parent=47 // pred_region
          %413 = dma.done %s405, 28672
        $region72: #{tpu_custom_call.1} parent=47 // pred_fallthru
          _
        // Predicated region
        $region73: #{tpu_custom_call.1} parent=47 // pred_check
          %p414 = pneg %p201
        $region74: #{tpu_custom_call.1} parent=47 // pred_check_branch
          %416 = sbr.rel (%p414) target = $region76
        $region75: #{tpu_custom_call.1} parent=47 // pred_region
          %418 = dma.done [#allocation14], 112
        $region76: #{tpu_custom_call.1} parent=47 // pred_fallthru
          _
        %p419 = pneg %p60
        %p420 = pneg %p57
        %p421 = pneg %p81
        %p422 = pneg %p78
        %p423 = pneg %p102
        %p424 = pneg %p99
        %s425 = sand.u32 %s27, 1
        %s426 = scalar_lea.sflag [#allocation11], %s425
        %s427 = sand.u32 %s115, 1
        %s428 = smul.addr %s427, 2048
        %s429 = scalar_lea.vmem [#allocation10], %s428
        %p430 = pneg %p128
        %p431 = pneg %p125
        %s432 = sand.u32 %s27, 1
        %s433 = scalar_lea.sflag [#allocation11], %s432
        %s434 = sand.u32 %s141, 1
        %s435 = smul.addr %s434, 4
        %s436 = scalar_lea.vmem [#allocation12], %s435
        %p437 = pneg %p154
        %p438 = pneg %p151
        %s439 = sand.u32 %s27, 1
        %s440 = scalar_lea.sflag [#allocation14], %s439
        %s441 = sand.u32 %s167, 1
        %s442 = smul.addr %s441, 1792
        %s443 = scalar_lea.vmem [#allocation13], %s442
        %p444 = pneg %p180
        %p445 = pneg %p177
        %p446 = pneg %p201
        %p447 = pneg %p198
        %p448 = pneg %p227
        %p449 = pneg %p224
        %s450 = smul.u32 4, %s32
        %s451 = smul.u32 4, %s32
        %s452 = smul.u32 64, %s32
        %p453 = scmp.eq.s32.totalorder %s32, 0
        // Predicated region
        $region77: #{tpu_custom_call.1} parent=47 // pred_check
          %p454 = pneg %p453
        $region78: #{tpu_custom_call.1} parent=47 // pred_check_branch
          %456 = sbr.rel (%p454) target = $region80
        $region79: #{tpu_custom_call.1} parent=47 // pred_region
          %v457 = vld [vmem:[#allocation4] sm:$0xf]
          %v458 = vld [vmem:[#allocation7] sm:$0xff]
          %v459 = vld [vmem:[#allocation7 + $0x8] sm:$0xff]
          %v460 = vld [vmem:[#allocation7 + $0x10] sm:$0xff]
          %v461 = vld [vmem:[#allocation7 + $0x18] sm:$0xff]
          %v462 = vld [vmem:[#allocation7 + $0x20] sm:$0xff]
          %v463 = vld [vmem:[#allocation7 + $0x28] sm:$0xff]
          %v464 = vld [vmem:[#allocation7 + $0x30] sm:$0xff]
          %v465 = vld [vmem:[#allocation7 + $0x38] sm:$0xff]
          %v466 = vld [vmem:[#allocation7 + $0x40] sm:$0xff]
          %v467 = vld [vmem:[#allocation7 + $0x48] sm:$0xff]
          %v468 = vld [vmem:[#allocation7 + $0x50] sm:$0xff]
          %v469 = vld [vmem:[#allocation7 + $0x58] sm:$0xff]
          %v470 = vld [vmem:[#allocation7 + $0x60] sm:$0xff]
          %v471 = vld [vmem:[#allocation7 + $0x68] sm:$0xff]
          %v472 = vld [vmem:[#allocation7 + $0x70] sm:$0xff]
          %v473 = vld [vmem:[#allocation7 + $0x78] sm:$0xff]
          %v474 = vld [vmem:[#allocation7 + $0x80] sm:$0xff]
          %v475 = vld [vmem:[#allocation7 + $0x88] sm:$0xff]
          %v476 = vld [vmem:[#allocation7 + $0x90] sm:$0xff]
          %v477 = vld [vmem:[#allocation7 + $0x98] sm:$0xff]
          %v478 = vld [vmem:[#allocation7 + $0xa0] sm:$0xff]
          %v479 = vld [vmem:[#allocation7 + $0xa8] sm:$0xff]
          %v480 = vld [vmem:[#allocation7 + $0xb0] sm:$0xff]
          %v481 = vld [vmem:[#allocation7 + $0xb8] sm:$0xff]
          %v482 = vld [vmem:[#allocation7 + $0xc0] sm:$0xff]
          %v483 = vld [vmem:[#allocation7 + $0xc8] sm:$0xff]
          %v484 = vld [vmem:[#allocation7 + $0xd0] sm:$0xff]
          %v485 = vld [vmem:[#allocation7 + $0xd8] sm:$0xff]
          %v486 = vld [vmem:[#allocation7 + $0xe0] sm:$0xff]
          %v487 = vld [vmem:[#allocation7 + $0xe8] sm:$0xff]
          %v488 = vld [vmem:[#allocation7 + $0xf0] sm:$0xff]
          %v489 = vld [vmem:[#allocation7 + $0xf8] sm:$0xff]
          %v490 = vld [vmem:[#allocation7 + $0x100] sm:$0xff]
          %v491 = vld [vmem:[#allocation7 + $0x108] sm:$0xff]
          %v492 = vld [vmem:[#allocation7 + $0x110] sm:$0xff]
          %v493 = vld [vmem:[#allocation7 + $0x118] sm:$0xff]
          %v494 = vld [vmem:[#allocation7 + $0x120] sm:$0xff]
          %v495 = vld [vmem:[#allocation7 + $0x128] sm:$0xff]
          %v496 = vld [vmem:[#allocation7 + $0x130] sm:$0xff]
          %v497 = vld [vmem:[#allocation7 + $0x138] sm:$0xff]
          %v498 = vld [vmem:[#allocation7 + $0x140] sm:$0xff]
          %v499 = vld [vmem:[#allocation7 + $0x148] sm:$0xff]
          %v500 = vld [vmem:[#allocation7 + $0x150] sm:$0xff]
          %v501 = vld [vmem:[#allocation7 + $0x158] sm:$0xff]
          %v502 = vld [vmem:[#allocation7 + $0x160] sm:$0xff]
          %v503 = vld [vmem:[#allocation7 + $0x168] sm:$0xff]
          %v504 = vld [vmem:[#allocation7 + $0x170] sm:$0xff]
          %v505 = vld [vmem:[#allocation7 + $0x178] sm:$0xff]
          %v506 = vld [vmem:[#allocation7 + $0x180] sm:$0xff]
          %v507 = vld [vmem:[#allocation7 + $0x188] sm:$0xff]
          %v508 = vld [vmem:[#allocation7 + $0x190] sm:$0xff]
          %v509 = vld [vmem:[#allocation7 + $0x198] sm:$0xff]
          %v510 = vld [vmem:[#allocation7 + $0x1a0] sm:$0xff]
          %v511 = vld [vmem:[#allocation7 + $0x1a8] sm:$0xff]
          %v512 = vld [vmem:[#allocation7 + $0x1b0] sm:$0xff]
          %v513 = vld [vmem:[#allocation7 + $0x1b8] sm:$0xff]
          %v514 = vld [vmem:[#allocation7 + $0x1c0] sm:$0xff]
          %v515 = vld [vmem:[#allocation7 + $0x1c8] sm:$0xff]
          %v516 = vld [vmem:[#allocation7 + $0x1d0] sm:$0xff]
          %v517 = vld [vmem:[#allocation7 + $0x1d8] sm:$0xff]
          %v518 = vld [vmem:[#allocation7 + $0x1e0] sm:$0xff]
          %v519 = vld [vmem:[#allocation7 + $0x1e8] sm:$0xff]
          %v520 = vld [vmem:[#allocation7 + $0x1f0] sm:$0xff]
          %v521 = vld [vmem:[#allocation7 + $0x1f8] sm:$0xff]
          %v522 = vld [vmem:[#allocation9] sm:$0xff]
          %v524 = vperm.slane %v522, 0
          %v525 = vperm.slane %v522, 1
          %v526 = vperm.slane %v522, 2
          %v527 = vperm.slane %v522, 3
          %v528 = vperm.slane %v522, 4
          %v529 = vperm.slane %v522, 5
          %v530 = vperm.slane %v522, 6
          %v531 = vperm.slane %v522, 7
          %v604 = vunpack.c.l.b16 %v458
          %v605 = vunpack.c.h.b16 %v458
          %v606 = vunpack.c.l.b16 %v459
          %v607 = vunpack.c.h.b16 %v459
          %v608 = vunpack.c.l.b16 %v460
          %v609 = vunpack.c.h.b16 %v460
          %v610 = vunpack.c.l.b16 %v461
          %v611 = vunpack.c.h.b16 %v461
          %v612 = vunpack.c.l.b16 %v462
          %v613 = vunpack.c.h.b16 %v462
          %v614 = vunpack.c.l.b16 %v463
          %v615 = vunpack.c.h.b16 %v463
          %v616 = vunpack.c.l.b16 %v464
          %v617 = vunpack.c.h.b16 %v464
          %v618 = vunpack.c.l.b16 %v465
          %v619 = vunpack.c.h.b16 %v465
          %v620 = vunpack.c.l.b16 %v466
          %v621 = vunpack.c.h.b16 %v466
          %v622 = vunpack.c.l.b16 %v467
          %v623 = vunpack.c.h.b16 %v467
          %v624 = vunpack.c.l.b16 %v468
          %v625 = vunpack.c.h.b16 %v468
          %v626 = vunpack.c.l.b16 %v469
          %v627 = vunpack.c.h.b16 %v469
          %v628 = vunpack.c.l.b16 %v470
          %v629 = vunpack.c.h.b16 %v470
          %v630 = vunpack.c.l.b16 %v471
          %v631 = vunpack.c.h.b16 %v471
          %v632 = vunpack.c.l.b16 %v472
          %v633 = vunpack.c.h.b16 %v472
          %v634 = vunpack.c.l.b16 %v473
          %v635 = vunpack.c.h.b16 %v473
          %v636 = vunpack.c.l.b16 %v474
          %v637 = vunpack.c.h.b16 %v474
          %v638 = vunpack.c.l.b16 %v475
          %v639 = vunpack.c.h.b16 %v475
          %v640 = vunpack.c.l.b16 %v476
          %v641 = vunpack.c.h.b16 %v476
          %v642 = vunpack.c.l.b16 %v477
          %v643 = vunpack.c.h.b16 %v477
          %v644 = vunpack.c.l.b16 %v478
          %v645 = vunpack.c.h.b16 %v478
          %v646 = vunpack.c.l.b16 %v479
          %v647 = vunpack.c.h.b16 %v479
          %v648 = vunpack.c.l.b16 %v480
          %v649 = vunpack.c.h.b16 %v480
          %v650 = vunpack.c.l.b16 %v481
          %v651 = vunpack.c.h.b16 %v481
          %v652 = vunpack.c.l.b16 %v482
          %v653 = vunpack.c.h.b16 %v482
          %v654 = vunpack.c.l.b16 %v483
          %v655 = vunpack.c.h.b16 %v483
          %v656 = vunpack.c.l.b16 %v484
          %v657 = vunpack.c.h.b16 %v484
          %v658 = vunpack.c.l.b16 %v485
          %v659 = vunpack.c.h.b16 %v485
          %v660 = vunpack.c.l.b16 %v486
          %v661 = vunpack.c.h.b16 %v486
          %v662 = vunpack.c.l.b16 %v487
          %v663 = vunpack.c.h.b16 %v487
          %v664 = vunpack.c.l.b16 %v488
          %v665 = vunpack.c.h.b16 %v488
          %v666 = vunpack.c.l.b16 %v489
          %v667 = vunpack.c.h.b16 %v489
          %v668 = vunpack.c.l.b16 %v490
          %v669 = vunpack.c.h.b16 %v490
          %v670 = vunpack.c.l.b16 %v491
          %v671 = vunpack.c.h.b16 %v491
          %v672 = vunpack.c.l.b16 %v492
          %v673 = vunpack.c.h.b16 %v492
          %v674 = vunpack.c.l.b16 %v493
          %v675 = vunpack.c.h.b16 %v493
          %v676 = vunpack.c.l.b16 %v494
          %v677 = vunpack.c.h.b16 %v494
          %v678 = vunpack.c.l.b16 %v495
          %v679 = vunpack.c.h.b16 %v495
          %v680 = vunpack.c.l.b16 %v496
          %v681 = vunpack.c.h.b16 %v496
          %v682 = vunpack.c.l.b16 %v497
          %v683 = vunpack.c.h.b16 %v497
          %v684 = vunpack.c.l.b16 %v498
          %v685 = vunpack.c.h.b16 %v498
          %v686 = vunpack.c.l.b16 %v499
          %v687 = vunpack.c.h.b16 %v499
          %v688 = vunpack.c.l.b16 %v500
          %v689 = vunpack.c.h.b16 %v500
          %v690 = vunpack.c.l.b16 %v501
          %v691 = vunpack.c.h.b16 %v501
          %v692 = vunpack.c.l.b16 %v502
          %v693 = vunpack.c.h.b16 %v502
          %v694 = vunpack.c.l.b16 %v503
          %v695 = vunpack.c.h.b16 %v503
          %v696 = vunpack.c.l.b16 %v504
          %v697 = vunpack.c.h.b16 %v504
          %v698 = vunpack.c.l.b16 %v505
          %v699 = vunpack.c.h.b16 %v505
          %v700 = vunpack.c.l.b16 %v506
          %v701 = vunpack.c.h.b16 %v506
          %v702 = vunpack.c.l.b16 %v507
          %v703 = vunpack.c.h.b16 %v507
          %v704 = vunpack.c.l.b16 %v508
          %v705 = vunpack.c.h.b16 %v508
          %v706 = vunpack.c.l.b16 %v509
          %v707 = vunpack.c.h.b16 %v509
          %v708 = vunpack.c.l.b16 %v510
          %v709 = vunpack.c.h.b16 %v510
          %v710 = vunpack.c.l.b16 %v511
          %v711 = vunpack.c.h.b16 %v511
          %v712 = vunpack.c.l.b16 %v512
          %v713 = vunpack.c.h.b16 %v512
          %v714 = vunpack.c.l.b16 %v513
          %v715 = vunpack.c.h.b16 %v513
          %v716 = vunpack.c.l.b16 %v514
          %v717 = vunpack.c.h.b16 %v514
          %v718 = vunpack.c.l.b16 %v515
          %v719 = vunpack.c.h.b16 %v515
          %v720 = vunpack.c.l.b16 %v516
          %v721 = vunpack.c.h.b16 %v516
          %v722 = vunpack.c.l.b16 %v517
          %v723 = vunpack.c.h.b16 %v517
          %v724 = vunpack.c.l.b16 %v518
          %v725 = vunpack.c.h.b16 %v518
          %v726 = vunpack.c.l.b16 %v519
          %v727 = vunpack.c.h.b16 %v519
          %v728 = vunpack.c.l.b16 %v520
          %v729 = vunpack.c.h.b16 %v520
          %v730 = vunpack.c.l.b16 %v521
          %v731 = vunpack.c.h.b16 %v521
          %v732 = vpack.c.b16 %v612, %v604
          %v733 = vpack.c.b16 %v613, %v605
          %v734 = vpack.c.b16 %v614, %v606
          %v735 = vpack.c.b16 %v615, %v607
          %v736 = vpack.c.b16 %v616, %v608
          %v737 = vpack.c.b16 %v617, %v609
          %v738 = vpack.c.b16 %v618, %v610
          %v739 = vpack.c.b16 %v619, %v611
          %v740 = vpack.c.b16 %v628, %v620
          %v741 = vpack.c.b16 %v629, %v621
          %v742 = vpack.c.b16 %v630, %v622
          %v743 = vpack.c.b16 %v631, %v623
          %v744 = vpack.c.b16 %v632, %v624
          %v745 = vpack.c.b16 %v633, %v625
          %v746 = vpack.c.b16 %v634, %v626
          %v747 = vpack.c.b16 %v635, %v627
          %v748 = vpack.c.b16 %v644, %v636
          %v749 = vpack.c.b16 %v645, %v637
          %v750 = vpack.c.b16 %v646, %v638
          %v751 = vpack.c.b16 %v647, %v639
          %v752 = vpack.c.b16 %v648, %v640
          %v753 = vpack.c.b16 %v649, %v641
          %v754 = vpack.c.b16 %v650, %v642
          %v755 = vpack.c.b16 %v651, %v643
          %v756 = vpack.c.b16 %v660, %v652
          %v757 = vpack.c.b16 %v661, %v653
          %v758 = vpack.c.b16 %v662, %v654
          %v759 = vpack.c.b16 %v663, %v655
          %v760 = vpack.c.b16 %v664, %v656
          %v761 = vpack.c.b16 %v665, %v657
          %v762 = vpack.c.b16 %v666, %v658
          %v763 = vpack.c.b16 %v667, %v659
          %v764 = vpack.c.b16 %v676, %v668
          %v765 = vpack.c.b16 %v677, %v669
          %v766 = vpack.c.b16 %v678, %v670
          %v767 = vpack.c.b16 %v679, %v671
          %v768 = vpack.c.b16 %v680, %v672
          %v769 = vpack.c.b16 %v681, %v673
          %v770 = vpack.c.b16 %v682, %v674
          %v771 = vpack.c.b16 %v683, %v675
          %v772 = vpack.c.b16 %v692, %v684
          %v773 = vpack.c.b16 %v693, %v685
          %v774 = vpack.c.b16 %v694, %v686
          %v775 = vpack.c.b16 %v695, %v687
          %v776 = vpack.c.b16 %v696, %v688
          %v777 = vpack.c.b16 %v697, %v689
          %v778 = vpack.c.b16 %v698, %v690
          %v779 = vpack.c.b16 %v699, %v691
          %v780 = vpack.c.b16 %v708, %v700
          %v781 = vpack.c.b16 %v709, %v701
          %v782 = vpack.c.b16 %v710, %v702
          %v783 = vpack.c.b16 %v711, %v703
          %v784 = vpack.c.b16 %v712, %v704
          %v785 = vpack.c.b16 %v713, %v705
          %v786 = vpack.c.b16 %v714, %v706
          %v787 = vpack.c.b16 %v715, %v707
          %v788 = vpack.c.b16 %v724, %v716
          %v789 = vpack.c.b16 %v725, %v717
          %v790 = vpack.c.b16 %v726, %v718
          %v791 = vpack.c.b16 %v727, %v719
          %v792 = vpack.c.b16 %v728, %v720
          %v793 = vpack.c.b16 %v729, %v721
          %v794 = vpack.c.b16 %v730, %v722
          %v795 = vpack.c.b16 %v731, %v723
          %860 = vmatpush.bf16.msra.mxu0 %v788
          %861 = vmatpush.bf16.msra.mxu0 %v780
          %862 = vmatpush.bf16.msra.mxu0 %v772
          %863 = vmatpush.bf16.msra.mxu0 %v764
          %864 = vmatpush.bf16.msra.mxu0 %v756
          %865 = vmatpush.bf16.msra.mxu0 %v748
          %866 = vmatpush.bf16.msra.mxu0 %v740
          %867 = vmatpush.bf16.msra.mxu0 %v732
          %868 = vmatmul.bf16.gmra.mxu0 %v457
          %v869 = vpop.f32.mrf.mxu0
          %v870 = vadd.f32 %v524, %v869
          %v871 = vpop.f32.mrf.mxu0
          %872 = vdwg.mxu0
          %873 = vmatpush.bf16.msra.mxu0 %v789
          %874 = vmatpush.bf16.msra.mxu0 %v781
          %875 = vmatpush.bf16.msra.mxu0 %v773
          %876 = vmatpush.bf16.msra.mxu0 %v765
          %877 = vmatpush.bf16.msra.mxu0 %v757
          %878 = vmatpush.bf16.msra.mxu0 %v749
          %879 = vmatpush.bf16.msra.mxu0 %v741
          %880 = vmatpush.bf16.msra.mxu0 %v733
          %881 = vmatmul.bf16.gmra.mxu0 %v457
          %v882 = vpop.f32.mrf.mxu0
          %v883 = vadd.f32 %v525, %v882
          %v884 = vpop.f32.mrf.mxu0
          %885 = vdwg.mxu0
          %886 = vmatpush.bf16.msra.mxu0 %v790
          %887 = vmatpush.bf16.msra.mxu0 %v782
          %888 = vmatpush.bf16.msra.mxu0 %v774
          %889 = vmatpush.bf16.msra.mxu0 %v766
          %890 = vmatpush.bf16.msra.mxu0 %v758
          %891 = vmatpush.bf16.msra.mxu0 %v750
          %892 = vmatpush.bf16.msra.mxu0 %v742
          %893 = vmatpush.bf16.msra.mxu0 %v734
          %894 = vmatmul.bf16.gmra.mxu0 %v457
          %v895 = vpop.f32.mrf.mxu0
          %v896 = vadd.f32 %v526, %v895
          %v897 = vpop.f32.mrf.mxu0
          %898 = vdwg.mxu0
          %899 = vmatpush.bf16.msra.mxu0 %v791
          %900 = vmatpush.bf16.msra.mxu0 %v783
          %901 = vmatpush.bf16.msra.mxu0 %v775
          %902 = vmatpush.bf16.msra.mxu0 %v767
          %903 = vmatpush.bf16.msra.mxu0 %v759
          %904 = vmatpush.bf16.msra.mxu0 %v751
          %905 = vmatpush.bf16.msra.mxu0 %v743
          %906 = vmatpush.bf16.msra.mxu0 %v735
          %907 = vmatmul.bf16.gmra.mxu0 %v457
          %v908 = vpop.f32.mrf.mxu0
          %v909 = vadd.f32 %v527, %v908
          %v910 = vpop.f32.mrf.mxu0
          %911 = vdwg.mxu0
          %912 = vmatpush.bf16.msra.mxu0 %v792
          %913 = vmatpush.bf16.msra.mxu0 %v784
          %914 = vmatpush.bf16.msra.mxu0 %v776
          %915 = vmatpush.bf16.msra.mxu0 %v768
          %916 = vmatpush.bf16.msra.mxu0 %v760
          %917 = vmatpush.bf16.msra.mxu0 %v752
          %918 = vmatpush.bf16.msra.mxu0 %v744
          %919 = vmatpush.bf16.msra.mxu0 %v736
          %920 = vmatmul.bf16.gmra.mxu0 %v457
          %v921 = vpop.f32.mrf.mxu0
          %v922 = vadd.f32 %v528, %v921
          %v923 = vpop.f32.mrf.mxu0
          %924 = vdwg.mxu0
          %925 = vmatpush.bf16.msra.mxu0 %v793
          %926 = vmatpush.bf16.msra.mxu0 %v785
          %927 = vmatpush.bf16.msra.mxu0 %v777
          %928 = vmatpush.bf16.msra.mxu0 %v769
          %929 = vmatpush.bf16.msra.mxu0 %v761
          %930 = vmatpush.bf16.msra.mxu0 %v753
          %931 = vmatpush.bf16.msra.mxu0 %v745
          %932 = vmatpush.bf16.msra.mxu0 %v737
          %933 = vmatmul.bf16.gmra.mxu0 %v457
          %v934 = vpop.f32.mrf.mxu0
          %v935 = vadd.f32 %v529, %v934
          %v936 = vpop.f32.mrf.mxu0
          %937 = vdwg.mxu0
          %938 = vmatpush.bf16.msra.mxu0 %v794
          %939 = vmatpush.bf16.msra.mxu0 %v786
          %940 = vmatpush.bf16.msra.mxu0 %v778
          %941 = vmatpush.bf16.msra.mxu0 %v770
          %942 = vmatpush.bf16.msra.mxu0 %v762
          %943 = vmatpush.bf16.msra.mxu0 %v754
          %944 = vmatpush.bf16.msra.mxu0 %v746
          %945 = vmatpush.bf16.msra.mxu0 %v738
          %946 = vmatmul.bf16.gmra.mxu0 %v457
          %v947 = vpop.f32.mrf.mxu0
          %v948 = vadd.f32 %v530, %v947
          %v949 = vpop.f32.mrf.mxu0
          %950 = vdwg.mxu0
          %951 = vmatpush.bf16.msra.mxu0 %v795
          %952 = vmatpush.bf16.msra.mxu0 %v787
          %953 = vmatpush.bf16.msra.mxu0 %v779
          %954 = vmatpush.bf16.msra.mxu0 %v771
          %955 = vmatpush.bf16.msra.mxu0 %v763
          %956 = vmatpush.bf16.msra.mxu0 %v755
          %957 = vmatpush.bf16.msra.mxu0 %v747
          %958 = vmatpush.bf16.msra.mxu0 %v739
          %959 = vmatmul.bf16.gmra.mxu0 %v457
          %v960 = vpop.f32.mrf.mxu0
          %v961 = vadd.f32 %v531, %v960
          %v962 = vpop.f32.mrf.mxu0
          %963 = vdwg.mxu0
          %v964 = vmax.f32 %v870, 0.0
          %v965 = vmax.f32 %v883, 0.0
          %v966 = vmax.f32 %v896, 0.0
          %v967 = vmax.f32 %v909, 0.0
          %v968 = vmax.f32 %v922, 0.0
          %v969 = vmax.f32 %v935, 0.0
          %v970 = vmax.f32 %v948, 0.0
          %v971 = vmax.f32 %v961, 0.0
          %v972 = vpack.c.bf16 %v965, %v964
          %v973 = vpack.c.bf16 %v967, %v966
          %v974 = vpack.c.bf16 %v969, %v968
          %v975 = vpack.c.bf16 %v971, %v970
          %976 = vst [vmem:[#allocation2] sm:$0xff] %v972
          %977 = vst [vmem:[#allocation2 + $0x8] sm:$0xff] %v973
          %978 = vst [vmem:[#allocation2 + $0x10] sm:$0xff] %v974
          %979 = vst [vmem:[#allocation2 + $0x18] sm:$0xff] %v975
          %980 = vst [vmem:[#allocation3] sm:$0xff] 0.0
          %981 = vst [vmem:[#allocation3 + $0x8] sm:$0xff] 0.0
          %982 = vst [vmem:[#allocation3 + $0x10] sm:$0xff] 0.0
          %983 = vst [vmem:[#allocation3 + $0x18] sm:$0xff] 0.0
          %984 = vst [vmem:[#allocation3 + $0x20] sm:$0xff] 0.0
          %985 = vst [vmem:[#allocation3 + $0x28] sm:$0xff] 0.0
          %986 = vst [vmem:[#allocation3 + $0x30] sm:$0xff] 0.0
        $region80: #{tpu_custom_call.1} parent=47 // pred_fallthru
          _
        %v987 = vld [vmem:[#allocation2] sm:$0xff]
        %v988 = vld [vmem:[#allocation2 + $0x8] sm:$0xff]
        %v989 = vld [vmem:[#allocation2 + $0x10] sm:$0xff]
        %v990 = vld [vmem:[#allocation2 + $0x18] sm:$0xff]
        %v991 = vld [vmem:[%s388] sm:$0xff]
        %v992 = vld [vmem:[%s388 + $0x8] sm:$0xff]
        %v993 = vld [vmem:[%s388 + $0x10] sm:$0xff]
        %v994 = vld [vmem:[%s388 + $0x18] sm:$0xff]
        %v995 = vld [vmem:[%s388 + $0x20] sm:$0xff]
        %v996 = vld [vmem:[%s388 + $0x28] sm:$0xff]
        %v997 = vld [vmem:[%s388 + $0x30] sm:$0xff]
        %v998 = vld [vmem:[%s388 + $0x38] sm:$0xff]
        %v999 = vld [vmem:[%s388 + $0x40] sm:$0xff]
        %v1000 = vld [vmem:[%s388 + $0x48] sm:$0xff]
        %v1001 = vld [vmem:[%s388 + $0x50] sm:$0xff]
        %v1002 = vld [vmem:[%s388 + $0x58] sm:$0xff]
        %v1003 = vld [vmem:[%s388 + $0x60] sm:$0xff]
        %v1004 = vld [vmem:[%s388 + $0x68] sm:$0xff]
        %v1005 = vld [vmem:[%s388 + $0x70] sm:$0xff]
        %v1006 = vld [vmem:[%s388 + $0x78] sm:$0xff]
        %v1007 = vld [vmem:[%s388 + $0x80] sm:$0xff]
        %v1008 = vld [vmem:[%s388 + $0x88] sm:$0xff]
        %v1009 = vld [vmem:[%s388 + $0x90] sm:$0xff]
        %v1010 = vld [vmem:[%s388 + $0x98] sm:$0xff]
        %v1011 = vld [vmem:[%s388 + $0xa0] sm:$0xff]
        %v1012 = vld [vmem:[%s388 + $0xa8] sm:$0xff]
        %v1013 = vld [vmem:[%s388 + $0xb0] sm:$0xff]
        %v1014 = vld [vmem:[%s388 + $0xb8] sm:$0xff]
        %v1015 = vld [vmem:[%s388 + $0xc0] sm:$0xff]
        %v1016 = vld [vmem:[%s388 + $0xc8] sm:$0xff]
        %v1017 = vld [vmem:[%s388 + $0xd0] sm:$0xff]
        %v1018 = vld [vmem:[%s388 + $0xd8] sm:$0xff]
        %v1019 = vld [vmem:[%s388 + $0xe0] sm:$0xff]
        %v1020 = vld [vmem:[%s388 + $0xe8] sm:$0xff]
        %v1021 = vld [vmem:[%s388 + $0xf0] sm:$0xff]
        %v1022 = vld [vmem:[%s388 + $0xf8] sm:$0xff]
        %v1023 = vld [vmem:[%s388 + $0x100] sm:$0xff]
        %v1024 = vld [vmem:[%s388 + $0x108] sm:$0xff]
        %v1025 = vld [vmem:[%s388 + $0x110] sm:$0xff]
        %v1026 = vld [vmem:[%s388 + $0x118] sm:$0xff]
        %v1027 = vld [vmem:[%s388 + $0x120] sm:$0xff]
        %v1028 = vld [vmem:[%s388 + $0x128] sm:$0xff]
        %v1029 = vld [vmem:[%s388 + $0x130] sm:$0xff]
        %v1030 = vld [vmem:[%s388 + $0x138] sm:$0xff]
        %v1031 = vld [vmem:[%s388 + $0x140] sm:$0xff]
        %v1032 = vld [vmem:[%s388 + $0x148] sm:$0xff]
        %v1033 = vld [vmem:[%s388 + $0x150] sm:$0xff]
        %v1034 = vld [vmem:[%s388 + $0x158] sm:$0xff]
        %v1035 = vld [vmem:[%s388 + $0x160] sm:$0xff]
        %v1036 = vld [vmem:[%s388 + $0x168] sm:$0xff]
        %v1037 = vld [vmem:[%s388 + $0x170] sm:$0xff]
        %v1038 = vld [vmem:[%s388 + $0x178] sm:$0xff]
        %v1039 = vld [vmem:[%s388 + $0x180] sm:$0xff]
        %v1040 = vld [vmem:[%s388 + $0x188] sm:$0xff]
        %v1041 = vld [vmem:[%s388 + $0x190] sm:$0xff]
        %v1042 = vld [vmem:[%s388 + $0x198] sm:$0xff]
        %v1043 = vld [vmem:[%s388 + $0x1a0] sm:$0xff]
        %v1044 = vld [vmem:[%s388 + $0x1a8] sm:$0xff]
        %v1045 = vld [vmem:[%s388 + $0x1b0] sm:$0xff]
        %v1046 = vld [vmem:[%s388 + $0x1b8] sm:$0xff]
        %v1047 = vld [vmem:[%s388 + $0x1c0] sm:$0xff]
        %v1048 = vld [vmem:[%s388 + $0x1c8] sm:$0xff]
        %v1049 = vld [vmem:[%s388 + $0x1d0] sm:$0xff]
        %v1050 = vld [vmem:[%s388 + $0x1d8] sm:$0xff]
        %v1051 = vld [vmem:[%s388 + $0x1e0] sm:$0xff]
        %v1052 = vld [vmem:[%s388 + $0x1e8] sm:$0xff]
        %v1053 = vld [vmem:[%s388 + $0x1f0] sm:$0xff]
        %v1054 = vld [vmem:[%s388 + $0x1f8] sm:$0xff]
        %v1055 = vld [vmem:[%s388 + $0x200] sm:$0xff]
        %v1056 = vld [vmem:[%s388 + $0x208] sm:$0xff]
        %v1057 = vld [vmem:[%s388 + $0x210] sm:$0xff]
        %v1058 = vld [vmem:[%s388 + $0x218] sm:$0xff]
        %v1059 = vld [vmem:[%s388 + $0x220] sm:$0xff]
        %v1060 = vld [vmem:[%s388 + $0x228] sm:$0xff]
        %v1061 = vld [vmem:[%s388 + $0x230] sm:$0xff]
        %v1062 = vld [vmem:[%s388 + $0x238] sm:$0xff]
        %v1063 = vld [vmem:[%s388 + $0x240] sm:$0xff]
        %v1064 = vld [vmem:[%s388 + $0x248] sm:$0xff]
        %v1065 = vld [vmem:[%s388 + $0x250] sm:$0xff]
        %v1066 = vld [vmem:[%s388 + $0x258] sm:$0xff]
        %v1067 = vld [vmem:[%s388 + $0x260] sm:$0xff]
        %v1068 = vld [vmem:[%s388 + $0x268] sm:$0xff]
        %v1069 = vld [vmem:[%s388 + $0x270] sm:$0xff]
        %v1070 = vld [vmem:[%s388 + $0x278] sm:$0xff]
        %v1071 = vld [vmem:[%s388 + $0x280] sm:$0xff]
        %v1072 = vld [vmem:[%s388 + $0x288] sm:$0xff]
        %v1073 = vld [vmem:[%s388 + $0x290] sm:$0xff]
        %v1074 = vld [vmem:[%s388 + $0x298] sm:$0xff]
        %v1075 = vld [vmem:[%s388 + $0x2a0] sm:$0xff]
        %v1076 = vld [vmem:[%s388 + $0x2a8] sm:$0xff]
        %v1077 = vld [vmem:[%s388 + $0x2b0] sm:$0xff]
        %v1078 = vld [vmem:[%s388 + $0x2b8] sm:$0xff]
        %v1079 = vld [vmem:[%s388 + $0x2c0] sm:$0xff]
        %v1080 = vld [vmem:[%s388 + $0x2c8] sm:$0xff]
        %v1081 = vld [vmem:[%s388 + $0x2d0] sm:$0xff]
        %v1082 = vld [vmem:[%s388 + $0x2d8] sm:$0xff]
        %v1083 = vld [vmem:[%s388 + $0x2e0] sm:$0xff]
        %v1084 = vld [vmem:[%s388 + $0x2e8] sm:$0xff]
        %v1085 = vld [vmem:[%s388 + $0x2f0] sm:$0xff]
        %v1086 = vld [vmem:[%s388 + $0x2f8] sm:$0xff]
        %v1087 = vld [vmem:[%s388 + $0x300] sm:$0xff]
        %v1088 = vld [vmem:[%s388 + $0x308] sm:$0xff]
        %v1089 = vld [vmem:[%s388 + $0x310] sm:$0xff]
        %v1090 = vld [vmem:[%s388 + $0x318] sm:$0xff]
        %v1091 = vld [vmem:[%s388 + $0x320] sm:$0xff]
        %v1092 = vld [vmem:[%s388 + $0x328] sm:$0xff]
        %v1093 = vld [vmem:[%s388 + $0x330] sm:$0xff]
        %v1094 = vld [vmem:[%s388 + $0x338] sm:$0xff]
        %v1095 = vld [vmem:[%s388 + $0x340] sm:$0xff]
        %v1096 = vld [vmem:[%s388 + $0x348] sm:$0xff]
        %v1097 = vld [vmem:[%s388 + $0x350] sm:$0xff]
        %v1098 = vld [vmem:[%s388 + $0x358] sm:$0xff]
        %v1099 = vld [vmem:[%s388 + $0x360] sm:$0xff]
        %v1100 = vld [vmem:[%s388 + $0x368] sm:$0xff]
        %v1101 = vld [vmem:[%s388 + $0x370] sm:$0xff]
        %v1102 = vld [vmem:[%s388 + $0x378] sm:$0xff]
        %v1103 = vld [vmem:[%s388 + $0x380] sm:$0xff]
        %v1104 = vld [vmem:[%s388 + $0x388] sm:$0xff]
        %v1105 = vld [vmem:[%s388 + $0x390] sm:$0xff]
        %v1106 = vld [vmem:[%s388 + $0x398] sm:$0xff]
        %v1107 = vld [vmem:[%s388 + $0x3a0] sm:$0xff]
        %v1108 = vld [vmem:[%s388 + $0x3a8] sm:$0xff]
        %v1109 = vld [vmem:[%s388 + $0x3b0] sm:$0xff]
        %v1110 = vld [vmem:[%s388 + $0x3b8] sm:$0xff]
        %v1111 = vld [vmem:[%s388 + $0x3c0] sm:$0xff]
        %v1112 = vld [vmem:[%s388 + $0x3c8] sm:$0xff]
        %v1113 = vld [vmem:[%s388 + $0x3d0] sm:$0xff]
        %v1114 = vld [vmem:[%s388 + $0x3d8] sm:$0xff]
        %v1115 = vld [vmem:[%s388 + $0x3e0] sm:$0xff]
        %v1116 = vld [vmem:[%s388 + $0x3e8] sm:$0xff]
        %v1117 = vld [vmem:[%s388 + $0x3f0] sm:$0xff]
        %v1118 = vld [vmem:[%s388 + $0x3f8] sm:$0xff]
        %v1119 = vld [vmem:[%s388 + $0x400] sm:$0xff]
        %v1120 = vld [vmem:[%s388 + $0x408] sm:$0xff]
        %v1121 = vld [vmem:[%s388 + $0x410] sm:$0xff]
        %v1122 = vld [vmem:[%s388 + $0x418] sm:$0xff]
        %v1123 = vld [vmem:[%s388 + $0x420] sm:$0xff]
        %v1124 = vld [vmem:[%s388 + $0x428] sm:$0xff]
        %v1125 = vld [vmem:[%s388 + $0x430] sm:$0xff]
        %v1126 = vld [vmem:[%s388 + $0x438] sm:$0xff]
        %v1127 = vld [vmem:[%s388 + $0x440] sm:$0xff]
        %v1128 = vld [vmem:[%s388 + $0x448] sm:$0xff]
        %v1129 = vld [vmem:[%s388 + $0x450] sm:$0xff]
        %v1130 = vld [vmem:[%s388 + $0x458] sm:$0xff]
        %v1131 = vld [vmem:[%s388 + $0x460] sm:$0xff]
        %v1132 = vld [vmem:[%s388 + $0x468] sm:$0xff]
        %v1133 = vld [vmem:[%s388 + $0x470] sm:$0xff]
        %v1134 = vld [vmem:[%s388 + $0x478] sm:$0xff]
        %v1135 = vld [vmem:[%s388 + $0x480] sm:$0xff]
        %v1136 = vld [vmem:[%s388 + $0x488] sm:$0xff]
        %v1137 = vld [vmem:[%s388 + $0x490] sm:$0xff]
        %v1138 = vld [vmem:[%s388 + $0x498] sm:$0xff]
        %v1139 = vld [vmem:[%s388 + $0x4a0] sm:$0xff]
        %v1140 = vld [vmem:[%s388 + $0x4a8] sm:$0xff]
        %v1141 = vld [vmem:[%s388 + $0x4b0] sm:$0xff]
        %v1142 = vld [vmem:[%s388 + $0x4b8] sm:$0xff]
        %v1143 = vld [vmem:[%s388 + $0x4c0] sm:$0xff]
        %v1144 = vld [vmem:[%s388 + $0x4c8] sm:$0xff]
        %v1145 = vld [vmem:[%s388 + $0x4d0] sm:$0xff]
        %v1146 = vld [vmem:[%s388 + $0x4d8] sm:$0xff]
        %v1147 = vld [vmem:[%s388 + $0x4e0] sm:$0xff]
        %v1148 = vld [vmem:[%s388 + $0x4e8] sm:$0xff]
        %v1149 = vld [vmem:[%s388 + $0x4f0] sm:$0xff]
        %v1150 = vld [vmem:[%s388 + $0x4f8] sm:$0xff]
        %v1151 = vld [vmem:[%s388 + $0x500] sm:$0xff]
        %v1152 = vld [vmem:[%s388 + $0x508] sm:$0xff]
        %v1153 = vld [vmem:[%s388 + $0x510] sm:$0xff]
        %v1154 = vld [vmem:[%s388 + $0x518] sm:$0xff]
        %v1155 = vld [vmem:[%s388 + $0x520] sm:$0xff]
        %v1156 = vld [vmem:[%s388 + $0x528] sm:$0xff]
        %v1157 = vld [vmem:[%s388 + $0x530] sm:$0xff]
        %v1158 = vld [vmem:[%s388 + $0x538] sm:$0xff]
        %v1159 = vld [vmem:[%s388 + $0x540] sm:$0xff]
        %v1160 = vld [vmem:[%s388 + $0x548] sm:$0xff]
        %v1161 = vld [vmem:[%s388 + $0x550] sm:$0xff]
        %v1162 = vld [vmem:[%s388 + $0x558] sm:$0xff]
        %v1163 = vld [vmem:[%s388 + $0x560] sm:$0xff]
        %v1164 = vld [vmem:[%s388 + $0x568] sm:$0xff]
        %v1165 = vld [vmem:[%s388 + $0x570] sm:$0xff]
        %v1166 = vld [vmem:[%s388 + $0x578] sm:$0xff]
        %v1167 = vld [vmem:[%s388 + $0x580] sm:$0xff]
        %v1168 = vld [vmem:[%s388 + $0x588] sm:$0xff]
        %v1169 = vld [vmem:[%s388 + $0x590] sm:$0xff]
        %v1170 = vld [vmem:[%s388 + $0x598] sm:$0xff]
        %v1171 = vld [vmem:[%s388 + $0x5a0] sm:$0xff]
        %v1172 = vld [vmem:[%s388 + $0x5a8] sm:$0xff]
        %v1173 = vld [vmem:[%s388 + $0x5b0] sm:$0xff]
        %v1174 = vld [vmem:[%s388 + $0x5b8] sm:$0xff]
        %v1175 = vld [vmem:[%s388 + $0x5c0] sm:$0xff]
        %v1176 = vld [vmem:[%s388 + $0x5c8] sm:$0xff]
        %v1177 = vld [vmem:[%s388 + $0x5d0] sm:$0xff]
        %v1178 = vld [vmem:[%s388 + $0x5d8] sm:$0xff]
        %v1179 = vld [vmem:[%s388 + $0x5e0] sm:$0xff]
        %v1180 = vld [vmem:[%s388 + $0x5e8] sm:$0xff]
        %v1181 = vld [vmem:[%s388 + $0x5f0] sm:$0xff]
        %v1182 = vld [vmem:[%s388 + $0x5f8] sm:$0xff]
        %v1183 = vld [vmem:[%s388 + $0x600] sm:$0xff]
        %v1184 = vld [vmem:[%s388 + $0x608] sm:$0xff]
        %v1185 = vld [vmem:[%s388 + $0x610] sm:$0xff]
        %v1186 = vld [vmem:[%s388 + $0x618] sm:$0xff]
        %v1187 = vld [vmem:[%s388 + $0x620] sm:$0xff]
        %v1188 = vld [vmem:[%s388 + $0x628] sm:$0xff]
        %v1189 = vld [vmem:[%s388 + $0x630] sm:$0xff]
        %v1190 = vld [vmem:[%s388 + $0x638] sm:$0xff]
        %v1191 = vld [vmem:[%s388 + $0x640] sm:$0xff]
        %v1192 = vld [vmem:[%s388 + $0x648] sm:$0xff]
        %v1193 = vld [vmem:[%s388 + $0x650] sm:$0xff]
        %v1194 = vld [vmem:[%s388 + $0x658] sm:$0xff]
        %v1195 = vld [vmem:[%s388 + $0x660] sm:$0xff]
        %v1196 = vld [vmem:[%s388 + $0x668] sm:$0xff]
        %v1197 = vld [vmem:[%s388 + $0x670] sm:$0xff]
        %v1198 = vld [vmem:[%s388 + $0x678] sm:$0xff]
        %v1199 = vld [vmem:[%s388 + $0x680] sm:$0xff]
        %v1200 = vld [vmem:[%s388 + $0x688] sm:$0xff]
        %v1201 = vld [vmem:[%s388 + $0x690] sm:$0xff]
        %v1202 = vld [vmem:[%s388 + $0x698] sm:$0xff]
        %v1203 = vld [vmem:[%s388 + $0x6a0] sm:$0xff]
        %v1204 = vld [vmem:[%s388 + $0x6a8] sm:$0xff]
        %v1205 = vld [vmem:[%s388 + $0x6b0] sm:$0xff]
        %v1206 = vld [vmem:[%s388 + $0x6b8] sm:$0xff]
        %v1207 = vld [vmem:[%s388 + $0x6c0] sm:$0xff]
        %v1208 = vld [vmem:[%s388 + $0x6c8] sm:$0xff]
        %v1209 = vld [vmem:[%s388 + $0x6d0] sm:$0xff]
        %v1210 = vld [vmem:[%s388 + $0x6d8] sm:$0xff]
        %v1211 = vld [vmem:[%s388 + $0x6e0] sm:$0xff]
        %v1212 = vld [vmem:[%s388 + $0x6e8] sm:$0xff]
        %v1213 = vld [vmem:[%s388 + $0x6f0] sm:$0xff]
        %v1214 = vld [vmem:[%s388 + $0x6f8] sm:$0xff]
        %v1215 = vld [vmem:[%s388 + $0x700] sm:$0xff]
        %v1216 = vld [vmem:[%s388 + $0x708] sm:$0xff]
        %v1217 = vld [vmem:[%s388 + $0x710] sm:$0xff]
        %v1218 = vld [vmem:[%s388 + $0x718] sm:$0xff]
        %v1219 = vld [vmem:[%s388 + $0x720] sm:$0xff]
        %v1220 = vld [vmem:[%s388 + $0x728] sm:$0xff]
        %v1221 = vld [vmem:[%s388 + $0x730] sm:$0xff]
        %v1222 = vld [vmem:[%s388 + $0x738] sm:$0xff]
        %v1223 = vld [vmem:[%s388 + $0x740] sm:$0xff]
        %v1224 = vld [vmem:[%s388 + $0x748] sm:$0xff]
        %v1225 = vld [vmem:[%s388 + $0x750] sm:$0xff]
        %v1226 = vld [vmem:[%s388 + $0x758] sm:$0xff]
        %v1227 = vld [vmem:[%s388 + $0x760] sm:$0xff]
        %v1228 = vld [vmem:[%s388 + $0x768] sm:$0xff]
        %v1229 = vld [vmem:[%s388 + $0x770] sm:$0xff]
        %v1230 = vld [vmem:[%s388 + $0x778] sm:$0xff]
        %v1231 = vld [vmem:[%s388 + $0x780] sm:$0xff]
        %v1232 = vld [vmem:[%s388 + $0x788] sm:$0xff]
        %v1233 = vld [vmem:[%s388 + $0x790] sm:$0xff]
        %v1234 = vld [vmem:[%s388 + $0x798] sm:$0xff]
        %v1235 = vld [vmem:[%s388 + $0x7a0] sm:$0xff]
        %v1236 = vld [vmem:[%s388 + $0x7a8] sm:$0xff]
        %v1237 = vld [vmem:[%s388 + $0x7b0] sm:$0xff]
        %v1238 = vld [vmem:[%s388 + $0x7b8] sm:$0xff]
        %v1239 = vld [vmem:[%s388 + $0x7c0] sm:$0xff]
        %v1240 = vld [vmem:[%s388 + $0x7c8] sm:$0xff]
        %v1241 = vld [vmem:[%s388 + $0x7d0] sm:$0xff]
        %v1242 = vld [vmem:[%s388 + $0x7d8] sm:$0xff]
        %v1243 = vld [vmem:[%s388 + $0x7e0] sm:$0xff]
        %v1244 = vld [vmem:[%s388 + $0x7e8] sm:$0xff]
        %v1245 = vld [vmem:[%s388 + $0x7f0] sm:$0xff]
        %v1246 = vld [vmem:[%s388 + $0x7f8] sm:$0xff]
        %v1247 = vld [vmem:[%s398] sm:$0xf]
        %v1249 = vperm.slane %v1247, 0
        %v1250 = vperm.slane %v1247, 1
        %v1251 = vperm.slane %v1247, 2
        %v1252 = vperm.slane %v1247, 3
        %v1261 = vunpack.c.l.b16 %v987
        %v1262 = vunpack.c.h.b16 %v987
        %v1263 = vunpack.c.l.b16 %v988
        %v1264 = vunpack.c.h.b16 %v988
        %v1265 = vunpack.c.l.b16 %v989
        %v1266 = vunpack.c.h.b16 %v989
        %v1267 = vunpack.c.l.b16 %v990
        %v1268 = vunpack.c.h.b16 %v990
        %v1269 = vpack.c.b16 %v1261, %v1261
        %v1270 = vpack.c.b16 %v1262, %v1262
        %v1271 = vpack.c.b16 %v1263, %v1263
        %v1272 = vpack.c.b16 %v1264, %v1264
        %v1273 = vpack.c.b16 %v1265, %v1265
        %v1274 = vpack.c.b16 %v1266, %v1266
        %v1275 = vpack.c.b16 %v1267, %v1267
        %v1276 = vpack.c.b16 %v1268, %v1268
        %v1541 = vunpack.c.l.b16 %v991
        %v1542 = vunpack.c.h.b16 %v991
        %v1543 = vunpack.c.l.b16 %v992
        %v1544 = vunpack.c.h.b16 %v992
        %v1545 = vunpack.c.l.b16 %v993
        %v1546 = vunpack.c.h.b16 %v993
        %v1547 = vunpack.c.l.b16 %v994
        %v1548 = vunpack.c.h.b16 %v994
        %v1549 = vunpack.c.l.b16 %v995
        %v1550 = vunpack.c.h.b16 %v995
        %v1551 = vunpack.c.l.b16 %v996
        %v1552 = vunpack.c.h.b16 %v996
        %v1553 = vunpack.c.l.b16 %v997
        %v1554 = vunpack.c.h.b16 %v997
        %v1555 = vunpack.c.l.b16 %v998
        %v1556 = vunpack.c.h.b16 %v998
        %v1557 = vunpack.c.l.b16 %v999
        %v1558 = vunpack.c.h.b16 %v999
        %v1559 = vunpack.c.l.b16 %v1000
        %v1560 = vunpack.c.h.b16 %v1000
        %v1561 = vunpack.c.l.b16 %v1001
        %v1562 = vunpack.c.h.b16 %v1001
        %v1563 = vunpack.c.l.b16 %v1002
        %v1564 = vunpack.c.h.b16 %v1002
        %v1565 = vunpack.c.l.b16 %v1003
        %v1566 = vunpack.c.h.b16 %v1003
        %v1567 = vunpack.c.l.b16 %v1004
        %v1568 = vunpack.c.h.b16 %v1004
        %v1569 = vunpack.c.l.b16 %v1005
        %v1570 = vunpack.c.h.b16 %v1005
        %v1571 = vunpack.c.l.b16 %v1006
        %v1572 = vunpack.c.h.b16 %v1006
        %v1573 = vunpack.c.l.b16 %v1007
        %v1574 = vunpack.c.h.b16 %v1007
        %v1575 = vunpack.c.l.b16 %v1008
        %v1576 = vunpack.c.h.b16 %v1008
        %v1577 = vunpack.c.l.b16 %v1009
        %v1578 = vunpack.c.h.b16 %v1009
        %v1579 = vunpack.c.l.b16 %v1010
        %v1580 = vunpack.c.h.b16 %v1010
        %v1581 = vunpack.c.l.b16 %v1011
        %v1582 = vunpack.c.h.b16 %v1011
        %v1583 = vunpack.c.l.b16 %v1012
        %v1584 = vunpack.c.h.b16 %v1012
        %v1585 = vunpack.c.l.b16 %v1013
        %v1586 = vunpack.c.h.b16 %v1013
        %v1587 = vunpack.c.l.b16 %v1014
        %v1588 = vunpack.c.h.b16 %v1014
        %v1589 = vunpack.c.l.b16 %v1015
        %v1590 = vunpack.c.h.b16 %v1015
        %v1591 = vunpack.c.l.b16 %v1016
        %v1592 = vunpack.c.h.b16 %v1016
        %v1593 = vunpack.c.l.b16 %v1017
        %v1594 = vunpack.c.h.b16 %v1017
        %v1595 = vunpack.c.l.b16 %v1018
        %v1596 = vunpack.c.h.b16 %v1018
        %v1597 = vunpack.c.l.b16 %v1019
        %v1598 = vunpack.c.h.b16 %v1019
        %v1599 = vunpack.c.l.b16 %v1020
        %v1600 = vunpack.c.h.b16 %v1020
        %v1601 = vunpack.c.l.b16 %v1021
        %v1602 = vunpack.c.h.b16 %v1021
        %v1603 = vunpack.c.l.b16 %v1022
        %v1604 = vunpack.c.h.b16 %v1022
        %v1605 = vunpack.c.l.b16 %v1023
        %v1606 = vunpack.c.h.b16 %v1023
        %v1607 = vunpack.c.l.b16 %v1024
        %v1608 = vunpack.c.h.b16 %v1024
        %v1609 = vunpack.c.l.b16 %v1025
        %v1610 = vunpack.c.h.b16 %v1025
        %v1611 = vunpack.c.l.b16 %v1026
        %v1612 = vunpack.c.h.b16 %v1026
        %v1613 = vunpack.c.l.b16 %v1027
        %v1614 = vunpack.c.h.b16 %v1027
        %v1615 = vunpack.c.l.b16 %v1028
        %v1616 = vunpack.c.h.b16 %v1028
        %v1617 = vunpack.c.l.b16 %v1029
        %v1618 = vunpack.c.h.b16 %v1029
        %v1619 = vunpack.c.l.b16 %v1030
        %v1620 = vunpack.c.h.b16 %v1030
        %v1621 = vunpack.c.l.b16 %v1031
        %v1622 = vunpack.c.h.b16 %v1031
        %v1623 = vunpack.c.l.b16 %v1032
        %v1624 = vunpack.c.h.b16 %v1032
        %v1625 = vunpack.c.l.b16 %v1033
        %v1626 = vunpack.c.h.b16 %v1033
        %v1627 = vunpack.c.l.b16 %v1034
        %v1628 = vunpack.c.h.b16 %v1034
        %v1629 = vunpack.c.l.b16 %v1035
        %v1630 = vunpack.c.h.b16 %v1035
        %v1631 = vunpack.c.l.b16 %v1036
        %v1632 = vunpack.c.h.b16 %v1036
        %v1633 = vunpack.c.l.b16 %v1037
        %v1634 = vunpack.c.h.b16 %v1037
        %v1635 = vunpack.c.l.b16 %v1038
        %v1636 = vunpack.c.h.b16 %v1038
        %v1637 = vunpack.c.l.b16 %v1039
        %v1638 = vunpack.c.h.b16 %v1039
        %v1639 = vunpack.c.l.b16 %v1040
        %v1640 = vunpack.c.h.b16 %v1040
        %v1641 = vunpack.c.l.b16 %v1041
        %v1642 = vunpack.c.h.b16 %v1041
        %v1643 = vunpack.c.l.b16 %v1042
        %v1644 = vunpack.c.h.b16 %v1042
        %v1645 = vunpack.c.l.b16 %v1043
        %v1646 = vunpack.c.h.b16 %v1043
        %v1647 = vunpack.c.l.b16 %v1044
        %v1648 = vunpack.c.h.b16 %v1044
        %v1649 = vunpack.c.l.b16 %v1045
        %v1650 = vunpack.c.h.b16 %v1045
        %v1651 = vunpack.c.l.b16 %v1046
        %v1652 = vunpack.c.h.b16 %v1046
        %v1653 = vunpack.c.l.b16 %v1047
        %v1654 = vunpack.c.h.b16 %v1047
        %v1655 = vunpack.c.l.b16 %v1048
        %v1656 = vunpack.c.h.b16 %v1048
        %v1657 = vunpack.c.l.b16 %v1049
        %v1658 = vunpack.c.h.b16 %v1049
        %v1659 = vunpack.c.l.b16 %v1050
        %v1660 = vunpack.c.h.b16 %v1050
        %v1661 = vunpack.c.l.b16 %v1051
        %v1662 = vunpack.c.h.b16 %v1051
        %v1663 = vunpack.c.l.b16 %v1052
        %v1664 = vunpack.c.h.b16 %v1052
        %v1665 = vunpack.c.l.b16 %v1053
        %v1666 = vunpack.c.h.b16 %v1053
        %v1667 = vunpack.c.l.b16 %v1054
        %v1668 = vunpack.c.h.b16 %v1054
        %v1669 = vunpack.c.l.b16 %v1055
        %v1670 = vunpack.c.h.b16 %v1055
        %v1671 = vunpack.c.l.b16 %v1056
        %v1672 = vunpack.c.h.b16 %v1056
        %v1673 = vunpack.c.l.b16 %v1057
        %v1674 = vunpack.c.h.b16 %v1057
        %v1675 = vunpack.c.l.b16 %v1058
        %v1676 = vunpack.c.h.b16 %v1058
        %v1677 = vunpack.c.l.b16 %v1059
        %v1678 = vunpack.c.h.b16 %v1059
        %v1679 = vunpack.c.l.b16 %v1060
        %v1680 = vunpack.c.h.b16 %v1060
        %v1681 = vunpack.c.l.b16 %v1061
        %v1682 = vunpack.c.h.b16 %v1061
        %v1683 = vunpack.c.l.b16 %v1062
        %v1684 = vunpack.c.h.b16 %v1062
        %v1685 = vunpack.c.l.b16 %v1063
        %v1686 = vunpack.c.h.b16 %v1063
        %v1687 = vunpack.c.l.b16 %v1064
        %v1688 = vunpack.c.h.b16 %v1064
        %v1689 = vunpack.c.l.b16 %v1065
        %v1690 = vunpack.c.h.b16 %v1065
        %v1691 = vunpack.c.l.b16 %v1066
        %v1692 = vunpack.c.h.b16 %v1066
        %v1693 = vunpack.c.l.b16 %v1067
        %v1694 = vunpack.c.h.b16 %v1067
        %v1695 = vunpack.c.l.b16 %v1068
        %v1696 = vunpack.c.h.b16 %v1068
        %v1697 = vunpack.c.l.b16 %v1069
        %v1698 = vunpack.c.h.b16 %v1069
        %v1699 = vunpack.c.l.b16 %v1070
        %v1700 = vunpack.c.h.b16 %v1070
        %v1701 = vunpack.c.l.b16 %v1071
        %v1702 = vunpack.c.h.b16 %v1071
        %v1703 = vunpack.c.l.b16 %v1072
        %v1704 = vunpack.c.h.b16 %v1072
        %v1705 = vunpack.c.l.b16 %v1073
        %v1706 = vunpack.c.h.b16 %v1073
        %v1707 = vunpack.c.l.b16 %v1074
        %v1708 = vunpack.c.h.b16 %v1074
        %v1709 = vunpack.c.l.b16 %v1075
        %v1710 = vunpack.c.h.b16 %v1075
        %v1711 = vunpack.c.l.b16 %v1076
        %v1712 = vunpack.c.h.b16 %v1076
        %v1713 = vunpack.c.l.b16 %v1077
        %v1714 = vunpack.c.h.b16 %v1077
        %v1715 = vunpack.c.l.b16 %v1078
        %v1716 = vunpack.c.h.b16 %v1078
        %v1717 = vunpack.c.l.b16 %v1079
        %v1718 = vunpack.c.h.b16 %v1079
        %v1719 = vunpack.c.l.b16 %v1080
        %v1720 = vunpack.c.h.b16 %v1080
        %v1721 = vunpack.c.l.b16 %v1081
        %v1722 = vunpack.c.h.b16 %v1081
        %v1723 = vunpack.c.l.b16 %v1082
        %v1724 = vunpack.c.h.b16 %v1082
        %v1725 = vunpack.c.l.b16 %v1083
        %v1726 = vunpack.c.h.b16 %v1083
        %v1727 = vunpack.c.l.b16 %v1084
        %v1728 = vunpack.c.h.b16 %v1084
        %v1729 = vunpack.c.l.b16 %v1085
        %v1730 = vunpack.c.h.b16 %v1085
        %v1731 = vunpack.c.l.b16 %v1086
        %v1732 = vunpack.c.h.b16 %v1086
        %v1733 = vunpack.c.l.b16 %v1087
        %v1734 = vunpack.c.h.b16 %v1087
        %v1735 = vunpack.c.l.b16 %v1088
        %v1736 = vunpack.c.h.b16 %v1088
        %v1737 = vunpack.c.l.b16 %v1089
        %v1738 = vunpack.c.h.b16 %v1089
        %v1739 = vunpack.c.l.b16 %v1090
        %v1740 = vunpack.c.h.b16 %v1090
        %v1741 = vunpack.c.l.b16 %v1091
        %v1742 = vunpack.c.h.b16 %v1091
        %v1743 = vunpack.c.l.b16 %v1092
        %v1744 = vunpack.c.h.b16 %v1092
        %v1745 = vunpack.c.l.b16 %v1093
        %v1746 = vunpack.c.h.b16 %v1093
        %v1747 = vunpack.c.l.b16 %v1094
        %v1748 = vunpack.c.h.b16 %v1094
        %v1749 = vunpack.c.l.b16 %v1095
        %v1750 = vunpack.c.h.b16 %v1095
        %v1751 = vunpack.c.l.b16 %v1096
        %v1752 = vunpack.c.h.b16 %v1096
        %v1753 = vunpack.c.l.b16 %v1097
        %v1754 = vunpack.c.h.b16 %v1097
        %v1755 = vunpack.c.l.b16 %v1098
        %v1756 = vunpack.c.h.b16 %v1098
        %v1757 = vunpack.c.l.b16 %v1099
        %v1758 = vunpack.c.h.b16 %v1099
        %v1759 = vunpack.c.l.b16 %v1100
        %v1760 = vunpack.c.h.b16 %v1100
        %v1761 = vunpack.c.l.b16 %v1101
        %v1762 = vunpack.c.h.b16 %v1101
        %v1763 = vunpack.c.l.b16 %v1102
        %v1764 = vunpack.c.h.b16 %v1102
        %v1765 = vunpack.c.l.b16 %v1103
        %v1766 = vunpack.c.h.b16 %v1103
        %v1767 = vunpack.c.l.b16 %v1104
        %v1768 = vunpack.c.h.b16 %v1104
        %v1769 = vunpack.c.l.b16 %v1105
        %v1770 = vunpack.c.h.b16 %v1105
        %v1771 = vunpack.c.l.b16 %v1106
        %v1772 = vunpack.c.h.b16 %v1106
        %v1773 = vunpack.c.l.b16 %v1107
        %v1774 = vunpack.c.h.b16 %v1107
        %v1775 = vunpack.c.l.b16 %v1108
        %v1776 = vunpack.c.h.b16 %v1108
        %v1777 = vunpack.c.l.b16 %v1109
        %v1778 = vunpack.c.h.b16 %v1109
        %v1779 = vunpack.c.l.b16 %v1110
        %v1780 = vunpack.c.h.b16 %v1110
        %v1781 = vunpack.c.l.b16 %v1111
        %v1782 = vunpack.c.h.b16 %v1111
        %v1783 = vunpack.c.l.b16 %v1112
        %v1784 = vunpack.c.h.b16 %v1112
        %v1785 = vunpack.c.l.b16 %v1113
        %v1786 = vunpack.c.h.b16 %v1113
        %v1787 = vunpack.c.l.b16 %v1114
        %v1788 = vunpack.c.h.b16 %v1114
        %v1789 = vunpack.c.l.b16 %v1115
        %v1790 = vunpack.c.h.b16 %v1115
        %v1791 = vunpack.c.l.b16 %v1116
        %v1792 = vunpack.c.h.b16 %v1116
        %v1793 = vunpack.c.l.b16 %v1117
        %v1794 = vunpack.c.h.b16 %v1117
        %v1795 = vunpack.c.l.b16 %v1118
        %v1796 = vunpack.c.h.b16 %v1118
        %v1797 = vunpack.c.l.b16 %v1119
        %v1798 = vunpack.c.h.b16 %v1119
        %v1799 = vunpack.c.l.b16 %v1120
        %v1800 = vunpack.c.h.b16 %v1120
        %v1801 = vunpack.c.l.b16 %v1121
        %v1802 = vunpack.c.h.b16 %v1121
        %v1803 = vunpack.c.l.b16 %v1122
        %v1804 = vunpack.c.h.b16 %v1122
        %v1805 = vunpack.c.l.b16 %v1123
        %v1806 = vunpack.c.h.b16 %v1123
        %v1807 = vunpack.c.l.b16 %v1124
        %v1808 = vunpack.c.h.b16 %v1124
        %v1809 = vunpack.c.l.b16 %v1125
        %v1810 = vunpack.c.h.b16 %v1125
        %v1811 = vunpack.c.l.b16 %v1126
        %v1812 = vunpack.c.h.b16 %v1126
        %v1813 = vunpack.c.l.b16 %v1127
        %v1814 = vunpack.c.h.b16 %v1127
        %v1815 = vunpack.c.l.b16 %v1128
        %v1816 = vunpack.c.h.b16 %v1128
        %v1817 = vunpack.c.l.b16 %v1129
        %v1818 = vunpack.c.h.b16 %v1129
        %v1819 = vunpack.c.l.b16 %v1130
        %v1820 = vunpack.c.h.b16 %v1130
        %v1821 = vunpack.c.l.b16 %v1131
        %v1822 = vunpack.c.h.b16 %v1131
        %v1823 = vunpack.c.l.b16 %v1132
        %v1824 = vunpack.c.h.b16 %v1132
        %v1825 = vunpack.c.l.b16 %v1133
        %v1826 = vunpack.c.h.b16 %v1133
        %v1827 = vunpack.c.l.b16 %v1134
        %v1828 = vunpack.c.h.b16 %v1134
        %v1829 = vunpack.c.l.b16 %v1135
        %v1830 = vunpack.c.h.b16 %v1135
        %v1831 = vunpack.c.l.b16 %v1136
        %v1832 = vunpack.c.h.b16 %v1136
        %v1833 = vunpack.c.l.b16 %v1137
        %v1834 = vunpack.c.h.b16 %v1137
        %v1835 = vunpack.c.l.b16 %v1138
        %v1836 = vunpack.c.h.b16 %v1138
        %v1837 = vunpack.c.l.b16 %v1139
        %v1838 = vunpack.c.h.b16 %v1139
        %v1839 = vunpack.c.l.b16 %v1140
        %v1840 = vunpack.c.h.b16 %v1140
        %v1841 = vunpack.c.l.b16 %v1141
        %v1842 = vunpack.c.h.b16 %v1141
        %v1843 = vunpack.c.l.b16 %v1142
        %v1844 = vunpack.c.h.b16 %v1142
        %v1845 = vunpack.c.l.b16 %v1143
        %v1846 = vunpack.c.h.b16 %v1143
        %v1847 = vunpack.c.l.b16 %v1144
        %v1848 = vunpack.c.h.b16 %v1144
        %v1849 = vunpack.c.l.b16 %v1145
        %v1850 = vunpack.c.h.b16 %v1145
        %v1851 = vunpack.c.l.b16 %v1146
        %v1852 = vunpack.c.h.b16 %v1146
        %v1853 = vunpack.c.l.b16 %v1147
        %v1854 = vunpack.c.h.b16 %v1147
        %v1855 = vunpack.c.l.b16 %v1148
        %v1856 = vunpack.c.h.b16 %v1148
        %v1857 = vunpack.c.l.b16 %v1149
        %v1858 = vunpack.c.h.b16 %v1149
        %v1859 = vunpack.c.l.b16 %v1150
        %v1860 = vunpack.c.h.b16 %v1150
        %v1861 = vunpack.c.l.b16 %v1151
        %v1862 = vunpack.c.h.b16 %v1151
        %v1863 = vunpack.c.l.b16 %v1152
        %v1864 = vunpack.c.h.b16 %v1152
        %v1865 = vunpack.c.l.b16 %v1153
        %v1866 = vunpack.c.h.b16 %v1153
        %v1867 = vunpack.c.l.b16 %v1154
        %v1868 = vunpack.c.h.b16 %v1154
        %v1869 = vunpack.c.l.b16 %v1155
        %v1870 = vunpack.c.h.b16 %v1155
        %v1871 = vunpack.c.l.b16 %v1156
        %v1872 = vunpack.c.h.b16 %v1156
        %v1873 = vunpack.c.l.b16 %v1157
        %v1874 = vunpack.c.h.b16 %v1157
        %v1875 = vunpack.c.l.b16 %v1158
        %v1876 = vunpack.c.h.b16 %v1158
        %v1877 = vunpack.c.l.b16 %v1159
        %v1878 = vunpack.c.h.b16 %v1159
        %v1879 = vunpack.c.l.b16 %v1160
        %v1880 = vunpack.c.h.b16 %v1160
        %v1881 = vunpack.c.l.b16 %v1161
        %v1882 = vunpack.c.h.b16 %v1161
        %v1883 = vunpack.c.l.b16 %v1162
        %v1884 = vunpack.c.h.b16 %v1162
        %v1885 = vunpack.c.l.b16 %v1163
        %v1886 = vunpack.c.h.b16 %v1163
        %v1887 = vunpack.c.l.b16 %v1164
        %v1888 = vunpack.c.h.b16 %v1164
        %v1889 = vunpack.c.l.b16 %v1165
        %v1890 = vunpack.c.h.b16 %v1165
        %v1891 = vunpack.c.l.b16 %v1166
        %v1892 = vunpack.c.h.b16 %v1166
        %v1893 = vunpack.c.l.b16 %v1167
        %v1894 = vunpack.c.h.b16 %v1167
        %v1895 = vunpack.c.l.b16 %v1168
        %v1896 = vunpack.c.h.b16 %v1168
        %v1897 = vunpack.c.l.b16 %v1169
        %v1898 = vunpack.c.h.b16 %v1169
        %v1899 = vunpack.c.l.b16 %v1170
        %v1900 = vunpack.c.h.b16 %v1170
        %v1901 = vunpack.c.l.b16 %v1171
        %v1902 = vunpack.c.h.b16 %v1171
        %v1903 = vunpack.c.l.b16 %v1172
        %v1904 = vunpack.c.h.b16 %v1172
        %v1905 = vunpack.c.l.b16 %v1173
        %v1906 = vunpack.c.h.b16 %v1173
        %v1907 = vunpack.c.l.b16 %v1174
        %v1908 = vunpack.c.h.b16 %v1174
        %v1909 = vunpack.c.l.b16 %v1175
        %v1910 = vunpack.c.h.b16 %v1175
        %v1911 = vunpack.c.l.b16 %v1176
        %v1912 = vunpack.c.h.b16 %v1176
        %v1913 = vunpack.c.l.b16 %v1177
        %v1914 = vunpack.c.h.b16 %v1177
        %v1915 = vunpack.c.l.b16 %v1178
        %v1916 = vunpack.c.h.b16 %v1178
        %v1917 = vunpack.c.l.b16 %v1179
        %v1918 = vunpack.c.h.b16 %v1179
        %v1919 = vunpack.c.l.b16 %v1180
        %v1920 = vunpack.c.h.b16 %v1180
        %v1921 = vunpack.c.l.b16 %v1181
        %v1922 = vunpack.c.h.b16 %v1181
        %v1923 = vunpack.c.l.b16 %v1182
        %v1924 = vunpack.c.h.b16 %v1182
        %v1925 = vunpack.c.l.b16 %v1183
        %v1926 = vunpack.c.h.b16 %v1183
        %v1927 = vunpack.c.l.b16 %v1184
        %v1928 = vunpack.c.h.b16 %v1184
        %v1929 = vunpack.c.l.b16 %v1185
        %v1930 = vunpack.c.h.b16 %v1185
        %v1931 = vunpack.c.l.b16 %v1186
        %v1932 = vunpack.c.h.b16 %v1186
        %v1933 = vunpack.c.l.b16 %v1187
        %v1934 = vunpack.c.h.b16 %v1187
        %v1935 = vunpack.c.l.b16 %v1188
        %v1936 = vunpack.c.h.b16 %v1188
        %v1937 = vunpack.c.l.b16 %v1189
        %v1938 = vunpack.c.h.b16 %v1189
        %v1939 = vunpack.c.l.b16 %v1190
        %v1940 = vunpack.c.h.b16 %v1190
        %v1941 = vunpack.c.l.b16 %v1191
        %v1942 = vunpack.c.h.b16 %v1191
        %v1943 = vunpack.c.l.b16 %v1192
        %v1944 = vunpack.c.h.b16 %v1192
        %v1945 = vunpack.c.l.b16 %v1193
        %v1946 = vunpack.c.h.b16 %v1193
        %v1947 = vunpack.c.l.b16 %v1194
        %v1948 = vunpack.c.h.b16 %v1194
        %v1949 = vunpack.c.l.b16 %v1195
        %v1950 = vunpack.c.h.b16 %v1195
        %v1951 = vunpack.c.l.b16 %v1196
        %v1952 = vunpack.c.h.b16 %v1196
        %v1953 = vunpack.c.l.b16 %v1197
        %v1954 = vunpack.c.h.b16 %v1197
        %v1955 = vunpack.c.l.b16 %v1198
        %v1956 = vunpack.c.h.b16 %v1198
        %v1957 = vunpack.c.l.b16 %v1199
        %v1958 = vunpack.c.h.b16 %v1199
        %v1959 = vunpack.c.l.b16 %v1200
        %v1960 = vunpack.c.h.b16 %v1200
        %v1961 = vunpack.c.l.b16 %v1201
        %v1962 = vunpack.c.h.b16 %v1201
        %v1963 = vunpack.c.l.b16 %v1202
        %v1964 = vunpack.c.h.b16 %v1202
        %v1965 = vunpack.c.l.b16 %v1203
        %v1966 = vunpack.c.h.b16 %v1203
        %v1967 = vunpack.c.l.b16 %v1204
        %v1968 = vunpack.c.h.b16 %v1204
        %v1969 = vunpack.c.l.b16 %v1205
        %v1970 = vunpack.c.h.b16 %v1205
        %v1971 = vunpack.c.l.b16 %v1206
        %v1972 = vunpack.c.h.b16 %v1206
        %v1973 = vunpack.c.l.b16 %v1207
        %v1974 = vunpack.c.h.b16 %v1207
        %v1975 = vunpack.c.l.b16 %v1208
        %v1976 = vunpack.c.h.b16 %v1208
        %v1977 = vunpack.c.l.b16 %v1209
        %v1978 = vunpack.c.h.b16 %v1209
        %v1979 = vunpack.c.l.b16 %v1210
        %v1980 = vunpack.c.h.b16 %v1210
        %v1981 = vunpack.c.l.b16 %v1211
        %v1982 = vunpack.c.h.b16 %v1211
        %v1983 = vunpack.c.l.b16 %v1212
        %v1984 = vunpack.c.h.b16 %v1212
        %v1985 = vunpack.c.l.b16 %v1213
        %v1986 = vunpack.c.h.b16 %v1213
        %v1987 = vunpack.c.l.b16 %v1214
        %v1988 = vunpack.c.h.b16 %v1214
        %v1989 = vunpack.c.l.b16 %v1215
        %v1990 = vunpack.c.h.b16 %v1215
        %v1991 = vunpack.c.l.b16 %v1216
        %v1992 = vunpack.c.h.b16 %v1216
        %v1993 = vunpack.c.l.b16 %v1217
        %v1994 = vunpack.c.h.b16 %v1217
        %v1995 = vunpack.c.l.b16 %v1218
        %v1996 = vunpack.c.h.b16 %v1218
        %v1997 = vunpack.c.l.b16 %v1219
        %v1998 = vunpack.c.h.b16 %v1219
        %v1999 = vunpack.c.l.b16 %v1220
        %v2000 = vunpack.c.h.b16 %v1220
        %v2001 = vunpack.c.l.b16 %v1221
        %v2002 = vunpack.c.h.b16 %v1221
        %v2003 = vunpack.c.l.b16 %v1222
        %v2004 = vunpack.c.h.b16 %v1222
        %v2005 = vunpack.c.l.b16 %v1223
        %v2006 = vunpack.c.h.b16 %v1223
        %v2007 = vunpack.c.l.b16 %v1224
        %v2008 = vunpack.c.h.b16 %v1224
        %v2009 = vunpack.c.l.b16 %v1225
        %v2010 = vunpack.c.h.b16 %v1225
        %v2011 = vunpack.c.l.b16 %v1226
        %v2012 = vunpack.c.h.b16 %v1226
        %v2013 = vunpack.c.l.b16 %v1227
        %v2014 = vunpack.c.h.b16 %v1227
        %v2015 = vunpack.c.l.b16 %v1228
        %v2016 = vunpack.c.h.b16 %v1228
        %v2017 = vunpack.c.l.b16 %v1229
        %v2018 = vunpack.c.h.b16 %v1229
        %v2019 = vunpack.c.l.b16 %v1230
        %v2020 = vunpack.c.h.b16 %v1230
        %v2021 = vunpack.c.l.b16 %v1231
        %v2022 = vunpack.c.h.b16 %v1231
        %v2023 = vunpack.c.l.b16 %v1232
        %v2024 = vunpack.c.h.b16 %v1232
        %v2025 = vunpack.c.l.b16 %v1233
        %v2026 = vunpack.c.h.b16 %v1233
        %v2027 = vunpack.c.l.b16 %v1234
        %v2028 = vunpack.c.h.b16 %v1234
        %v2029 = vunpack.c.l.b16 %v1235
        %v2030 = vunpack.c.h.b16 %v1235
        %v2031 = vunpack.c.l.b16 %v1236
        %v2032 = vunpack.c.h.b16 %v1236
        %v2033 = vunpack.c.l.b16 %v1237
        %v2034 = vunpack.c.h.b16 %v1237
        %v2035 = vunpack.c.l.b16 %v1238
        %v2036 = vunpack.c.h.b16 %v1238
        %v2037 = vunpack.c.l.b16 %v1239
        %v2038 = vunpack.c.h.b16 %v1239
        %v2039 = vunpack.c.l.b16 %v1240
        %v2040 = vunpack.c.h.b16 %v1240
        %v2041 = vunpack.c.l.b16 %v1241
        %v2042 = vunpack.c.h.b16 %v1241
        %v2043 = vunpack.c.l.b16 %v1242
        %v2044 = vunpack.c.h.b16 %v1242
        %v2045 = vunpack.c.l.b16 %v1243
        %v2046 = vunpack.c.h.b16 %v1243
        %v2047 = vunpack.c.l.b16 %v1244
        %v2048 = vunpack.c.h.b16 %v1244
        %v2049 = vunpack.c.l.b16 %v1245
        %v2050 = vunpack.c.h.b16 %v1245
        %v2051 = vunpack.c.l.b16 %v1246
        %v2052 = vunpack.c.h.b16 %v1246
        %v2053 = vpack.c.b16 %v1545, %v1541
        %v2054 = vpack.c.b16 %v1546, %v1542
        %v2055 = vpack.c.b16 %v1547, %v1543
        %v2056 = vpack.c.b16 %v1548, %v1544
        %v2057 = vpack.c.b16 %v1553, %v1549
        %v2058 = vpack.c.b16 %v1554, %v1550
        %v2059 = vpack.c.b16 %v1555, %v1551
        %v2060 = vpack.c.b16 %v1556, %v1552
        %v2061 = vpack.c.b16 %v1561, %v1557
        %v2062 = vpack.c.b16 %v1562, %v1558
        %v2063 = vpack.c.b16 %v1563, %v1559
        %v2064 = vpack.c.b16 %v1564, %v1560
        %v2065 = vpack.c.b16 %v1569, %v1565
        %v2066 = vpack.c.b16 %v1570, %v1566
        %v2067 = vpack.c.b16 %v1571, %v1567
        %v2068 = vpack.c.b16 %v1572, %v1568
        %v2069 = vpack.c.b16 %v1577, %v1573
        %v2070 = vpack.c.b16 %v1578, %v1574
        %v2071 = vpack.c.b16 %v1579, %v1575
        %v2072 = vpack.c.b16 %v1580, %v1576
        %v2073 = vpack.c.b16 %v1585, %v1581
        %v2074 = vpack.c.b16 %v1586, %v1582
        %v2075 = vpack.c.b16 %v1587, %v1583
        %v2076 = vpack.c.b16 %v1588, %v1584
        %v2077 = vpack.c.b16 %v1593, %v1589
        %v2078 = vpack.c.b16 %v1594, %v1590
        %v2079 = vpack.c.b16 %v1595, %v1591
        %v2080 = vpack.c.b16 %v1596, %v1592
        %v2081 = vpack.c.b16 %v1601, %v1597
        %v2082 = vpack.c.b16 %v1602, %v1598
        %v2083 = vpack.c.b16 %v1603, %v1599
        %v2084 = vpack.c.b16 %v1604, %v1600
        %v2085 = vpack.c.b16 %v1609, %v1605
        %v2086 = vpack.c.b16 %v1610, %v1606
        %v2087 = vpack.c.b16 %v1611, %v1607
        %v2088 = vpack.c.b16 %v1612, %v1608
        %v2089 = vpack.c.b16 %v1617, %v1613
        %v2090 = vpack.c.b16 %v1618, %v1614
        %v2091 = vpack.c.b16 %v1619, %v1615
        %v2092 = vpack.c.b16 %v1620, %v1616
        %v2093 = vpack.c.b16 %v1625, %v1621
        %v2094 = vpack.c.b16 %v1626, %v1622
        %v2095 = vpack.c.b16 %v1627, %v1623
        %v2096 = vpack.c.b16 %v1628, %v1624
        %v2097 = vpack.c.b16 %v1633, %v1629
        %v2098 = vpack.c.b16 %v1634, %v1630
        %v2099 = vpack.c.b16 %v1635, %v1631
        %v2100 = vpack.c.b16 %v1636, %v1632
        %v2101 = vpack.c.b16 %v1641, %v1637
        %v2102 = vpack.c.b16 %v1642, %v1638
        %v2103 = vpack.c.b16 %v1643, %v1639
        %v2104 = vpack.c.b16 %v1644, %v1640
        %v2105 = vpack.c.b16 %v1649, %v1645
        %v2106 = vpack.c.b16 %v1650, %v1646
        %v2107 = vpack.c.b16 %v1651, %v1647
        %v2108 = vpack.c.b16 %v1652, %v1648
        %v2109 = vpack.c.b16 %v1657, %v1653
        %v2110 = vpack.c.b16 %v1658, %v1654
        %v2111 = vpack.c.b16 %v1659, %v1655
        %v2112 = vpack.c.b16 %v1660, %v1656
        %v2113 = vpack.c.b16 %v1665, %v1661
        %v2114 = vpack.c.b16 %v1666, %v1662
        %v2115 = vpack.c.b16 %v1667, %v1663
        %v2116 = vpack.c.b16 %v1668, %v1664
        %v2117 = vpack.c.b16 %v1673, %v1669
        %v2118 = vpack.c.b16 %v1674, %v1670
        %v2119 = vpack.c.b16 %v1675, %v1671
        %v2120 = vpack.c.b16 %v1676, %v1672
        %v2121 = vpack.c.b16 %v1681, %v1677
        %v2122 = vpack.c.b16 %v1682, %v1678
        %v2123 = vpack.c.b16 %v1683, %v1679
        %v2124 = vpack.c.b16 %v1684, %v1680
        %v2125 = vpack.c.b16 %v1689, %v1685
        %v2126 = vpack.c.b16 %v1690, %v1686
        %v2127 = vpack.c.b16 %v1691, %v1687
        %v2128 = vpack.c.b16 %v1692, %v1688
        %v2129 = vpack.c.b16 %v1697, %v1693
        %v2130 = vpack.c.b16 %v1698, %v1694
        %v2131 = vpack.c.b16 %v1699, %v1695
        %v2132 = vpack.c.b16 %v1700, %v1696
        %v2133 = vpack.c.b16 %v1705, %v1701
        %v2134 = vpack.c.b16 %v1706, %v1702
        %v2135 = vpack.c.b16 %v1707, %v1703
        %v2136 = vpack.c.b16 %v1708, %v1704
        %v2137 = vpack.c.b16 %v1713, %v1709
        %v2138 = vpack.c.b16 %v1714, %v1710
        %v2139 = vpack.c.b16 %v1715, %v1711
        %v2140 = vpack.c.b16 %v1716, %v1712
        %v2141 = vpack.c.b16 %v1721, %v1717
        %v2142 = vpack.c.b16 %v1722, %v1718
        %v2143 = vpack.c.b16 %v1723, %v1719
        %v2144 = vpack.c.b16 %v1724, %v1720
        %v2145 = vpack.c.b16 %v1729, %v1725
        %v2146 = vpack.c.b16 %v1730, %v1726
        %v2147 = vpack.c.b16 %v1731, %v1727
        %v2148 = vpack.c.b16 %v1732, %v1728
        %v2149 = vpack.c.b16 %v1737, %v1733
        %v2150 = vpack.c.b16 %v1738, %v1734
        %v2151 = vpack.c.b16 %v1739, %v1735
        %v2152 = vpack.c.b16 %v1740, %v1736
        %v2153 = vpack.c.b16 %v1745, %v1741
        %v2154 = vpack.c.b16 %v1746, %v1742
        %v2155 = vpack.c.b16 %v1747, %v1743
        %v2156 = vpack.c.b16 %v1748, %v1744
        %v2157 = vpack.c.b16 %v1753, %v1749
        %v2158 = vpack.c.b16 %v1754, %v1750
        %v2159 = vpack.c.b16 %v1755, %v1751
        %v2160 = vpack.c.b16 %v1756, %v1752
        %v2161 = vpack.c.b16 %v1761, %v1757
        %v2162 = vpack.c.b16 %v1762, %v1758
        %v2163 = vpack.c.b16 %v1763, %v1759
        %v2164 = vpack.c.b16 %v1764, %v1760
        %v2165 = vpack.c.b16 %v1769, %v1765
        %v2166 = vpack.c.b16 %v1770, %v1766
        %v2167 = vpack.c.b16 %v1771, %v1767
        %v2168 = vpack.c.b16 %v1772, %v1768
        %v2169 = vpack.c.b16 %v1777, %v1773
        %v2170 = vpack.c.b16 %v1778, %v1774
        %v2171 = vpack.c.b16 %v1779, %v1775
        %v2172 = vpack.c.b16 %v1780, %v1776
        %v2173 = vpack.c.b16 %v1785, %v1781
        %v2174 = vpack.c.b16 %v1786, %v1782
        %v2175 = vpack.c.b16 %v1787, %v1783
        %v2176 = vpack.c.b16 %v1788, %v1784
        %v2177 = vpack.c.b16 %v1793, %v1789
        %v2178 = vpack.c.b16 %v1794, %v1790
        %v2179 = vpack.c.b16 %v1795, %v1791
        %v2180 = vpack.c.b16 %v1796, %v1792
        %v2181 = vpack.c.b16 %v1801, %v1797
        %v2182 = vpack.c.b16 %v1802, %v1798
        %v2183 = vpack.c.b16 %v1803, %v1799
        %v2184 = vpack.c.b16 %v1804, %v1800
        %v2185 = vpack.c.b16 %v1809, %v1805
        %v2186 = vpack.c.b16 %v1810, %v1806
        %v2187 = vpack.c.b16 %v1811, %v1807
        %v2188 = vpack.c.b16 %v1812, %v1808
        %v2189 = vpack.c.b16 %v1817, %v1813
        %v2190 = vpack.c.b16 %v1818, %v1814
        %v2191 = vpack.c.b16 %v1819, %v1815
        %v2192 = vpack.c.b16 %v1820, %v1816
        %v2193 = vpack.c.b16 %v1825, %v1821
        %v2194 = vpack.c.b16 %v1826, %v1822
        %v2195 = vpack.c.b16 %v1827, %v1823
        %v2196 = vpack.c.b16 %v1828, %v1824
        %v2197 = vpack.c.b16 %v1833, %v1829
        %v2198 = vpack.c.b16 %v1834, %v1830
        %v2199 = vpack.c.b16 %v1835, %v1831
        %v2200 = vpack.c.b16 %v1836, %v1832
        %v2201 = vpack.c.b16 %v1841, %v1837
        %v2202 = vpack.c.b16 %v1842, %v1838
        %v2203 = vpack.c.b16 %v1843, %v1839
        %v2204 = vpack.c.b16 %v1844, %v1840
        %v2205 = vpack.c.b16 %v1849, %v1845
        %v2206 = vpack.c.b16 %v1850, %v1846
        %v2207 = vpack.c.b16 %v1851, %v1847
        %v2208 = vpack.c.b16 %v1852, %v1848
        %v2209 = vpack.c.b16 %v1857, %v1853
        %v2210 = vpack.c.b16 %v1858, %v1854
        %v2211 = vpack.c.b16 %v1859, %v1855
        %v2212 = vpack.c.b16 %v1860, %v1856
        %v2213 = vpack.c.b16 %v1865, %v1861
        %v2214 = vpack.c.b16 %v1866, %v1862
        %v2215 = vpack.c.b16 %v1867, %v1863
        %v2216 = vpack.c.b16 %v1868, %v1864
        %v2217 = vpack.c.b16 %v1873, %v1869
        %v2218 = vpack.c.b16 %v1874, %v1870
        %v2219 = vpack.c.b16 %v1875, %v1871
        %v2220 = vpack.c.b16 %v1876, %v1872
        %v2221 = vpack.c.b16 %v1881, %v1877
        %v2222 = vpack.c.b16 %v1882, %v1878
        %v2223 = vpack.c.b16 %v1883, %v1879
        %v2224 = vpack.c.b16 %v1884, %v1880
        %v2225 = vpack.c.b16 %v1889, %v1885
        %v2226 = vpack.c.b16 %v1890, %v1886
        %v2227 = vpack.c.b16 %v1891, %v1887
        %v2228 = vpack.c.b16 %v1892, %v1888
        %v2229 = vpack.c.b16 %v1897, %v1893
        %v2230 = vpack.c.b16 %v1898, %v1894
        %v2231 = vpack.c.b16 %v1899, %v1895
        %v2232 = vpack.c.b16 %v1900, %v1896
        %v2233 = vpack.c.b16 %v1905, %v1901
        %v2234 = vpack.c.b16 %v1906, %v1902
        %v2235 = vpack.c.b16 %v1907, %v1903
        %v2236 = vpack.c.b16 %v1908, %v1904
        %v2237 = vpack.c.b16 %v1913, %v1909
        %v2238 = vpack.c.b16 %v1914, %v1910
        %v2239 = vpack.c.b16 %v1915, %v1911
        %v2240 = vpack.c.b16 %v1916, %v1912
        %v2241 = vpack.c.b16 %v1921, %v1917
        %v2242 = vpack.c.b16 %v1922, %v1918
        %v2243 = vpack.c.b16 %v1923, %v1919
        %v2244 = vpack.c.b16 %v1924, %v1920
        %v2245 = vpack.c.b16 %v1929, %v1925
        %v2246 = vpack.c.b16 %v1930, %v1926
        %v2247 = vpack.c.b16 %v1931, %v1927
        %v2248 = vpack.c.b16 %v1932, %v1928
        %v2249 = vpack.c.b16 %v1937, %v1933
        %v2250 = vpack.c.b16 %v1938, %v1934
        %v2251 = vpack.c.b16 %v1939, %v1935
        %v2252 = vpack.c.b16 %v1940, %v1936
        %v2253 = vpack.c.b16 %v1945, %v1941
        %v2254 = vpack.c.b16 %v1946, %v1942
        %v2255 = vpack.c.b16 %v1947, %v1943
        %v2256 = vpack.c.b16 %v1948, %v1944
        %v2257 = vpack.c.b16 %v1953, %v1949
        %v2258 = vpack.c.b16 %v1954, %v1950
        %v2259 = vpack.c.b16 %v1955, %v1951
        %v2260 = vpack.c.b16 %v1956, %v1952
        %v2261 = vpack.c.b16 %v1961, %v1957
        %v2262 = vpack.c.b16 %v1962, %v1958
        %v2263 = vpack.c.b16 %v1963, %v1959
        %v2264 = vpack.c.b16 %v1964, %v1960
        %v2265 = vpack.c.b16 %v1969, %v1965
        %v2266 = vpack.c.b16 %v1970, %v1966
        %v2267 = vpack.c.b16 %v1971, %v1967
        %v2268 = vpack.c.b16 %v1972, %v1968
        %v2269 = vpack.c.b16 %v1977, %v1973
        %v2270 = vpack.c.b16 %v1978, %v1974
        %v2271 = vpack.c.b16 %v1979, %v1975
        %v2272 = vpack.c.b16 %v1980, %v1976
        %v2273 = vpack.c.b16 %v1985, %v1981
        %v2274 = vpack.c.b16 %v1986, %v1982
        %v2275 = vpack.c.b16 %v1987, %v1983
        %v2276 = vpack.c.b16 %v1988, %v1984
        %v2277 = vpack.c.b16 %v1993, %v1989
        %v2278 = vpack.c.b16 %v1994, %v1990
        %v2279 = vpack.c.b16 %v1995, %v1991
        %v2280 = vpack.c.b16 %v1996, %v1992
        %v2281 = vpack.c.b16 %v2001, %v1997
        %v2282 = vpack.c.b16 %v2002, %v1998
        %v2283 = vpack.c.b16 %v2003, %v1999
        %v2284 = vpack.c.b16 %v2004, %v2000
        %v2285 = vpack.c.b16 %v2009, %v2005
        %v2286 = vpack.c.b16 %v2010, %v2006
        %v2287 = vpack.c.b16 %v2011, %v2007
        %v2288 = vpack.c.b16 %v2012, %v2008
        %v2289 = vpack.c.b16 %v2017, %v2013
        %v2290 = vpack.c.b16 %v2018, %v2014
        %v2291 = vpack.c.b16 %v2019, %v2015
        %v2292 = vpack.c.b16 %v2020, %v2016
        %v2293 = vpack.c.b16 %v2025, %v2021
        %v2294 = vpack.c.b16 %v2026, %v2022
        %v2295 = vpack.c.b16 %v2027, %v2023
        %v2296 = vpack.c.b16 %v2028, %v2024
        %v2297 = vpack.c.b16 %v2033, %v2029
        %v2298 = vpack.c.b16 %v2034, %v2030
        %v2299 = vpack.c.b16 %v2035, %v2031
        %v2300 = vpack.c.b16 %v2036, %v2032
        %v2301 = vpack.c.b16 %v2041, %v2037
        %v2302 = vpack.c.b16 %v2042, %v2038
        %v2303 = vpack.c.b16 %v2043, %v2039
        %v2304 = vpack.c.b16 %v2044, %v2040
        %v2305 = vpack.c.b16 %v2049, %v2045
        %v2306 = vpack.c.b16 %v2050, %v2046
        %v2307 = vpack.c.b16 %v2051, %v2047
        %v2308 = vpack.c.b16 %v2052, %v2048
        %2565 = vmatpush.bf16.msra.mxu0 %v2081
        %2566 = vmatpush.bf16.msra.mxu0 %v2077
        %2567 = vmatpush.bf16.msra.mxu0 %v2073
        %2568 = vmatpush.bf16.msra.mxu0 %v2069
        %2569 = vmatpush.bf16.msra.mxu0 %v2065
        %2570 = vmatpush.bf16.msra.mxu0 %v2061
        %2571 = vmatpush.bf16.msra.mxu0 %v2057
        %2572 = vmatpush.bf16.msra.mxu0 %v2053
        %2573 = vmatmul.bf16.gmra.mxu0 %v1269
        %v2574 = vpop.f32.mrf.mxu0
        %v2575 = vadd.f32 %v1249, %v2574
        %v2576 = vpop.f32.mrf.mxu0
        %2577 = vdwg.mxu0
        %2578 = vmatpush.bf16.msra.mxu0 %v2113
        %2579 = vmatpush.bf16.msra.mxu0 %v2109
        %2580 = vmatpush.bf16.msra.mxu0 %v2105
        %2581 = vmatpush.bf16.msra.mxu0 %v2101
        %2582 = vmatpush.bf16.msra.mxu0 %v2097
        %2583 = vmatpush.bf16.msra.mxu0 %v2093
        %2584 = vmatpush.bf16.msra.mxu0 %v2089
        %2585 = vmatpush.bf16.msra.mxu0 %v2085
        %2586 = vmatmul.bf16.gmra.mxu0 %v1270
        %v2587 = vpop.f32.mrf.mxu0
        %v2588 = vadd.f32 %v2575, %v2587
        %v2589 = vpop.f32.mrf.mxu0
        %2590 = vdwg.mxu0
        %2591 = vmatpush.bf16.msra.mxu0 %v2145
        %2592 = vmatpush.bf16.msra.mxu0 %v2141
        %2593 = vmatpush.bf16.msra.mxu0 %v2137
        %2594 = vmatpush.bf16.msra.mxu0 %v2133
        %2595 = vmatpush.bf16.msra.mxu0 %v2129
        %2596 = vmatpush.bf16.msra.mxu0 %v2125
        %2597 = vmatpush.bf16.msra.mxu0 %v2121
        %2598 = vmatpush.bf16.msra.mxu0 %v2117
        %2599 = vmatmul.bf16.gmra.mxu0 %v1271
        %v2600 = vpop.f32.mrf.mxu0
        %v2601 = vadd.f32 %v2588, %v2600
        %v2602 = vpop.f32.mrf.mxu0
        %2603 = vdwg.mxu0
        %2604 = vmatpush.bf16.msra.mxu0 %v2177
        %2605 = vmatpush.bf16.msra.mxu0 %v2173
        %2606 = vmatpush.bf16.msra.mxu0 %v2169
        %2607 = vmatpush.bf16.msra.mxu0 %v2165
        %2608 = vmatpush.bf16.msra.mxu0 %v2161
        %2609 = vmatpush.bf16.msra.mxu0 %v2157
        %2610 = vmatpush.bf16.msra.mxu0 %v2153
        %2611 = vmatpush.bf16.msra.mxu0 %v2149
        %2612 = vmatmul.bf16.gmra.mxu0 %v1272
        %v2613 = vpop.f32.mrf.mxu0
        %v2614 = vadd.f32 %v2601, %v2613
        %v2615 = vpop.f32.mrf.mxu0
        %2616 = vdwg.mxu0
        %2617 = vmatpush.bf16.msra.mxu0 %v2209
        %2618 = vmatpush.bf16.msra.mxu0 %v2205
        %2619 = vmatpush.bf16.msra.mxu0 %v2201
        %2620 = vmatpush.bf16.msra.mxu0 %v2197
        %2621 = vmatpush.bf16.msra.mxu0 %v2193
        %2622 = vmatpush.bf16.msra.mxu0 %v2189
        %2623 = vmatpush.bf16.msra.mxu0 %v2185
        %2624 = vmatpush.bf16.msra.mxu0 %v2181
        %2625 = vmatmul.bf16.gmra.mxu0 %v1273
        %v2626 = vpop.f32.mrf.mxu0
        %v2627 = vadd.f32 %v2614, %v2626
        %v2628 = vpop.f32.mrf.mxu0
        %2629 = vdwg.mxu0
        %2630 = vmatpush.bf16.msra.mxu0 %v2241
        %2631 = vmatpush.bf16.msra.mxu0 %v2237
        %2632 = vmatpush.bf16.msra.mxu0 %v2233
        %2633 = vmatpush.bf16.msra.mxu0 %v2229
        %2634 = vmatpush.bf16.msra.mxu0 %v2225
        %2635 = vmatpush.bf16.msra.mxu0 %v2221
        %2636 = vmatpush.bf16.msra.mxu0 %v2217
        %2637 = vmatpush.bf16.msra.mxu0 %v2213
        %2638 = vmatmul.bf16.gmra.mxu0 %v1274
        %v2639 = vpop.f32.mrf.mxu0
        %v2640 = vadd.f32 %v2627, %v2639
        %v2641 = vpop.f32.mrf.mxu0
        %2642 = vdwg.mxu0
        %2643 = vmatpush.bf16.msra.mxu0 %v2273
        %2644 = vmatpush.bf16.msra.mxu0 %v2269
        %2645 = vmatpush.bf16.msra.mxu0 %v2265
        %2646 = vmatpush.bf16.msra.mxu0 %v2261
        %2647 = vmatpush.bf16.msra.mxu0 %v2257
        %2648 = vmatpush.bf16.msra.mxu0 %v2253
        %2649 = vmatpush.bf16.msra.mxu0 %v2249
        %2650 = vmatpush.bf16.msra.mxu0 %v2245
        %2651 = vmatmul.bf16.gmra.mxu0 %v1275
        %v2652 = vpop.f32.mrf.mxu0
        %v2653 = vadd.f32 %v2640, %v2652
        %v2654 = vpop.f32.mrf.mxu0
        %2655 = vdwg.mxu0
        %2656 = vmatpush.bf16.msra.mxu0 %v2305
        %2657 = vmatpush.bf16.msra.mxu0 %v2301
        %2658 = vmatpush.bf16.msra.mxu0 %v2297
        %2659 = vmatpush.bf16.msra.mxu0 %v2293
        %2660 = vmatpush.bf16.msra.mxu0 %v2289
        %2661 = vmatpush.bf16.msra.mxu0 %v2285
        %2662 = vmatpush.bf16.msra.mxu0 %v2281
        %2663 = vmatpush.bf16.msra.mxu0 %v2277
        %2664 = vmatmul.bf16.gmra.mxu0 %v1276
        %v2665 = vpop.f32.mrf.mxu0
        %v2666 = vadd.f32 %v2653, %v2665
        %v2667 = vpop.f32.mrf.mxu0
        %2668 = vdwg.mxu0
        %2669 = vmatpush.bf16.msra.mxu0 %v2082
        %2670 = vmatpush.bf16.msra.mxu0 %v2078
        %2671 = vmatpush.bf16.msra.mxu0 %v2074
        %2672 = vmatpush.bf16.msra.mxu0 %v2070
        %2673 = vmatpush.bf16.msra.mxu0 %v2066
        %2674 = vmatpush.bf16.msra.mxu0 %v2062
        %2675 = vmatpush.bf16.msra.mxu0 %v2058
        %2676 = vmatpush.bf16.msra.mxu0 %v2054
        %2677 = vmatmul.bf16.gmra.mxu0 %v1269
        %v2678 = vpop.f32.mrf.mxu0
        %v2679 = vadd.f32 %v1250, %v2678
        %v2680 = vpop.f32.mrf.mxu0
        %2681 = vdwg.mxu0
        %2682 = vmatpush.bf16.msra.mxu0 %v2114
        %2683 = vmatpush.bf16.msra.mxu0 %v2110
        %2684 = vmatpush.bf16.msra.mxu0 %v2106
        %2685 = vmatpush.bf16.msra.mxu0 %v2102
        %2686 = vmatpush.bf16.msra.mxu0 %v2098
        %2687 = vmatpush.bf16.msra.mxu0 %v2094
        %2688 = vmatpush.bf16.msra.mxu0 %v2090
        %2689 = vmatpush.bf16.msra.mxu0 %v2086
        %2690 = vmatmul.bf16.gmra.mxu0 %v1270
        %v2691 = vpop.f32.mrf.mxu0
        %v2692 = vadd.f32 %v2679, %v2691
        %v2693 = vpop.f32.mrf.mxu0
        %2694 = vdwg.mxu0
        %2695 = vmatpush.bf16.msra.mxu0 %v2146
        %2696 = vmatpush.bf16.msra.mxu0 %v2142
        %2697 = vmatpush.bf16.msra.mxu0 %v2138
        %2698 = vmatpush.bf16.msra.mxu0 %v2134
        %2699 = vmatpush.bf16.msra.mxu0 %v2130
        %2700 = vmatpush.bf16.msra.mxu0 %v2126
        %2701 = vmatpush.bf16.msra.mxu0 %v2122
        %2702 = vmatpush.bf16.msra.mxu0 %v2118
        %2703 = vmatmul.bf16.gmra.mxu0 %v1271
        %v2704 = vpop.f32.mrf.mxu0
        %v2705 = vadd.f32 %v2692, %v2704
        %v2706 = vpop.f32.mrf.mxu0
        %2707 = vdwg.mxu0
        %2708 = vmatpush.bf16.msra.mxu0 %v2178
        %2709 = vmatpush.bf16.msra.mxu0 %v2174
        %2710 = vmatpush.bf16.msra.mxu0 %v2170
        %2711 = vmatpush.bf16.msra.mxu0 %v2166
        %2712 = vmatpush.bf16.msra.mxu0 %v2162
        %2713 = vmatpush.bf16.msra.mxu0 %v2158
        %2714 = vmatpush.bf16.msra.mxu0 %v2154
        %2715 = vmatpush.bf16.msra.mxu0 %v2150
        %2716 = vmatmul.bf16.gmra.mxu0 %v1272
        %v2717 = vpop.f32.mrf.mxu0
        %v2718 = vadd.f32 %v2705, %v2717
        %v2719 = vpop.f32.mrf.mxu0
        %2720 = vdwg.mxu0
        %2721 = vmatpush.bf16.msra.mxu0 %v2210
        %2722 = vmatpush.bf16.msra.mxu0 %v2206
        %2723 = vmatpush.bf16.msra.mxu0 %v2202
        %2724 = vmatpush.bf16.msra.mxu0 %v2198
        %2725 = vmatpush.bf16.msra.mxu0 %v2194
        %2726 = vmatpush.bf16.msra.mxu0 %v2190
        %2727 = vmatpush.bf16.msra.mxu0 %v2186
        %2728 = vmatpush.bf16.msra.mxu0 %v2182
        %2729 = vmatmul.bf16.gmra.mxu0 %v1273
        %v2730 = vpop.f32.mrf.mxu0
        %v2731 = vadd.f32 %v2718, %v2730
        %v2732 = vpop.f32.mrf.mxu0
        %2733 = vdwg.mxu0
        %2734 = vmatpush.bf16.msra.mxu0 %v2242
        %2735 = vmatpush.bf16.msra.mxu0 %v2238
        %2736 = vmatpush.bf16.msra.mxu0 %v2234
        %2737 = vmatpush.bf16.msra.mxu0 %v2230
        %2738 = vmatpush.bf16.msra.mxu0 %v2226
        %2739 = vmatpush.bf16.msra.mxu0 %v2222
        %2740 = vmatpush.bf16.msra.mxu0 %v2218
        %2741 = vmatpush.bf16.msra.mxu0 %v2214
        %2742 = vmatmul.bf16.gmra.mxu0 %v1274
        %v2743 = vpop.f32.mrf.mxu0
        %v2744 = vadd.f32 %v2731, %v2743
        %v2745 = vpop.f32.mrf.mxu0
        %2746 = vdwg.mxu0
        %2747 = vmatpush.bf16.msra.mxu0 %v2274
        %2748 = vmatpush.bf16.msra.mxu0 %v2270
        %2749 = vmatpush.bf16.msra.mxu0 %v2266
        %2750 = vmatpush.bf16.msra.mxu0 %v2262
        %2751 = vmatpush.bf16.msra.mxu0 %v2258
        %2752 = vmatpush.bf16.msra.mxu0 %v2254
        %2753 = vmatpush.bf16.msra.mxu0 %v2250
        %2754 = vmatpush.bf16.msra.mxu0 %v2246
        %2755 = vmatmul.bf16.gmra.mxu0 %v1275
        %v2756 = vpop.f32.mrf.mxu0
        %v2757 = vadd.f32 %v2744, %v2756
        %v2758 = vpop.f32.mrf.mxu0
        %2759 = vdwg.mxu0
        %2760 = vmatpush.bf16.msra.mxu0 %v2306
        %2761 = vmatpush.bf16.msra.mxu0 %v2302
        %2762 = vmatpush.bf16.msra.mxu0 %v2298
        %2763 = vmatpush.bf16.msra.mxu0 %v2294
        %2764 = vmatpush.bf16.msra.mxu0 %v2290
        %2765 = vmatpush.bf16.msra.mxu0 %v2286
        %2766 = vmatpush.bf16.msra.mxu0 %v2282
        %2767 = vmatpush.bf16.msra.mxu0 %v2278
        %2768 = vmatmul.bf16.gmra.mxu0 %v1276
        %v2769 = vpop.f32.mrf.mxu0
        %v2770 = vadd.f32 %v2757, %v2769
        %v2771 = vpop.f32.mrf.mxu0
        %2772 = vdwg.mxu0
        %2773 = vmatpush.bf16.msra.mxu0 %v2083
        %2774 = vmatpush.bf16.msra.mxu0 %v2079
        %2775 = vmatpush.bf16.msra.mxu0 %v2075
        %2776 = vmatpush.bf16.msra.mxu0 %v2071
        %2777 = vmatpush.bf16.msra.mxu0 %v2067
        %2778 = vmatpush.bf16.msra.mxu0 %v2063
        %2779 = vmatpush.bf16.msra.mxu0 %v2059
        %2780 = vmatpush.bf16.msra.mxu0 %v2055
        %2781 = vmatmul.bf16.gmra.mxu0 %v1269
        %v2782 = vpop.f32.mrf.mxu0
        %v2783 = vadd.f32 %v1251, %v2782
        %v2784 = vpop.f32.mrf.mxu0
        %2785 = vdwg.mxu0
        %2786 = vmatpush.bf16.msra.mxu0 %v2115
        %2787 = vmatpush.bf16.msra.mxu0 %v2111
        %2788 = vmatpush.bf16.msra.mxu0 %v2107
        %2789 = vmatpush.bf16.msra.mxu0 %v2103
        %2790 = vmatpush.bf16.msra.mxu0 %v2099
        %2791 = vmatpush.bf16.msra.mxu0 %v2095
        %2792 = vmatpush.bf16.msra.mxu0 %v2091
        %2793 = vmatpush.bf16.msra.mxu0 %v2087
        %2794 = vmatmul.bf16.gmra.mxu0 %v1270
        %v2795 = vpop.f32.mrf.mxu0
        %v2796 = vadd.f32 %v2783, %v2795
        %v2797 = vpop.f32.mrf.mxu0
        %2798 = vdwg.mxu0
        %2799 = vmatpush.bf16.msra.mxu0 %v2147
        %2800 = vmatpush.bf16.msra.mxu0 %v2143
        %2801 = vmatpush.bf16.msra.mxu0 %v2139
        %2802 = vmatpush.bf16.msra.mxu0 %v2135
        %2803 = vmatpush.bf16.msra.mxu0 %v2131
        %2804 = vmatpush.bf16.msra.mxu0 %v2127
        %2805 = vmatpush.bf16.msra.mxu0 %v2123
        %2806 = vmatpush.bf16.msra.mxu0 %v2119
        %2807 = vmatmul.bf16.gmra.mxu0 %v1271
        %v2808 = vpop.f32.mrf.mxu0
        %v2809 = vadd.f32 %v2796, %v2808
        %v2810 = vpop.f32.mrf.mxu0
        %2811 = vdwg.mxu0
        %2812 = vmatpush.bf16.msra.mxu0 %v2179
        %2813 = vmatpush.bf16.msra.mxu0 %v2175
        %2814 = vmatpush.bf16.msra.mxu0 %v2171
        %2815 = vmatpush.bf16.msra.mxu0 %v2167
        %2816 = vmatpush.bf16.msra.mxu0 %v2163
        %2817 = vmatpush.bf16.msra.mxu0 %v2159
        %2818 = vmatpush.bf16.msra.mxu0 %v2155
        %2819 = vmatpush.bf16.msra.mxu0 %v2151
        %2820 = vmatmul.bf16.gmra.mxu0 %v1272
        %v2821 = vpop.f32.mrf.mxu0
        %v2822 = vadd.f32 %v2809, %v2821
        %v2823 = vpop.f32.mrf.mxu0
        %2824 = vdwg.mxu0
        %2825 = vmatpush.bf16.msra.mxu0 %v2211
        %2826 = vmatpush.bf16.msra.mxu0 %v2207
        %2827 = vmatpush.bf16.msra.mxu0 %v2203
        %2828 = vmatpush.bf16.msra.mxu0 %v2199
        %2829 = vmatpush.bf16.msra.mxu0 %v2195
        %2830 = vmatpush.bf16.msra.mxu0 %v2191
        %2831 = vmatpush.bf16.msra.mxu0 %v2187
        %2832 = vmatpush.bf16.msra.mxu0 %v2183
        %2833 = vmatmul.bf16.gmra.mxu0 %v1273
        %v2834 = vpop.f32.mrf.mxu0
        %v2835 = vadd.f32 %v2822, %v2834
        %v2836 = vpop.f32.mrf.mxu0
        %2837 = vdwg.mxu0
        %2838 = vmatpush.bf16.msra.mxu0 %v2243
        %2839 = vmatpush.bf16.msra.mxu0 %v2239
        %2840 = vmatpush.bf16.msra.mxu0 %v2235
        %2841 = vmatpush.bf16.msra.mxu0 %v2231
        %2842 = vmatpush.bf16.msra.mxu0 %v2227
        %2843 = vmatpush.bf16.msra.mxu0 %v2223
        %2844 = vmatpush.bf16.msra.mxu0 %v2219
        %2845 = vmatpush.bf16.msra.mxu0 %v2215
        %2846 = vmatmul.bf16.gmra.mxu0 %v1274
        %v2847 = vpop.f32.mrf.mxu0
        %v2848 = vadd.f32 %v2835, %v2847
        %v2849 = vpop.f32.mrf.mxu0
        %2850 = vdwg.mxu0
        %2851 = vmatpush.bf16.msra.mxu0 %v2275
        %2852 = vmatpush.bf16.msra.mxu0 %v2271
        %2853 = vmatpush.bf16.msra.mxu0 %v2267
        %2854 = vmatpush.bf16.msra.mxu0 %v2263
        %2855 = vmatpush.bf16.msra.mxu0 %v2259
        %2856 = vmatpush.bf16.msra.mxu0 %v2255
        %2857 = vmatpush.bf16.msra.mxu0 %v2251
        %2858 = vmatpush.bf16.msra.mxu0 %v2247
        %2859 = vmatmul.bf16.gmra.mxu0 %v1275
        %v2860 = vpop.f32.mrf.mxu0
        %v2861 = vadd.f32 %v2848, %v2860
        %v2862 = vpop.f32.mrf.mxu0
        %2863 = vdwg.mxu0
        %2864 = vmatpush.bf16.msra.mxu0 %v2307
        %2865 = vmatpush.bf16.msra.mxu0 %v2303
        %2866 = vmatpush.bf16.msra.mxu0 %v2299
        %2867 = vmatpush.bf16.msra.mxu0 %v2295
        %2868 = vmatpush.bf16.msra.mxu0 %v2291
        %2869 = vmatpush.bf16.msra.mxu0 %v2287
        %2870 = vmatpush.bf16.msra.mxu0 %v2283
        %2871 = vmatpush.bf16.msra.mxu0 %v2279
        %2872 = vmatmul.bf16.gmra.mxu0 %v1276
        %v2873 = vpop.f32.mrf.mxu0
        %v2874 = vadd.f32 %v2861, %v2873
        %v2875 = vpop.f32.mrf.mxu0
        %2876 = vdwg.mxu0
        %2877 = vmatpush.bf16.msra.mxu0 %v2084
        %2878 = vmatpush.bf16.msra.mxu0 %v2080
        %2879 = vmatpush.bf16.msra.mxu0 %v2076
        %2880 = vmatpush.bf16.msra.mxu0 %v2072
        %2881 = vmatpush.bf16.msra.mxu0 %v2068
        %2882 = vmatpush.bf16.msra.mxu0 %v2064
        %2883 = vmatpush.bf16.msra.mxu0 %v2060
        %2884 = vmatpush.bf16.msra.mxu0 %v2056
        %2885 = vmatmul.bf16.gmra.mxu0 %v1269
        %v2886 = vpop.f32.mrf.mxu0
        %v2887 = vadd.f32 %v1252, %v2886
        %v2888 = vpop.f32.mrf.mxu0
        %2889 = vdwg.mxu0
        %2890 = vmatpush.bf16.msra.mxu0 %v2116
        %2891 = vmatpush.bf16.msra.mxu0 %v2112
        %2892 = vmatpush.bf16.msra.mxu0 %v2108
        %2893 = vmatpush.bf16.msra.mxu0 %v2104
        %2894 = vmatpush.bf16.msra.mxu0 %v2100
        %2895 = vmatpush.bf16.msra.mxu0 %v2096
        %2896 = vmatpush.bf16.msra.mxu0 %v2092
        %2897 = vmatpush.bf16.msra.mxu0 %v2088
        %2898 = vmatmul.bf16.gmra.mxu0 %v1270
        %v2899 = vpop.f32.mrf.mxu0
        %v2900 = vadd.f32 %v2887, %v2899
        %v2901 = vpop.f32.mrf.mxu0
        %2902 = vdwg.mxu0
        %2903 = vmatpush.bf16.msra.mxu0 %v2148
        %2904 = vmatpush.bf16.msra.mxu0 %v2144
        %2905 = vmatpush.bf16.msra.mxu0 %v2140
        %2906 = vmatpush.bf16.msra.mxu0 %v2136
        %2907 = vmatpush.bf16.msra.mxu0 %v2132
        %2908 = vmatpush.bf16.msra.mxu0 %v2128
        %2909 = vmatpush.bf16.msra.mxu0 %v2124
        %2910 = vmatpush.bf16.msra.mxu0 %v2120
        %2911 = vmatmul.bf16.gmra.mxu0 %v1271
        %v2912 = vpop.f32.mrf.mxu0
        %v2913 = vadd.f32 %v2900, %v2912
        %v2914 = vpop.f32.mrf.mxu0
        %2915 = vdwg.mxu0
        %2916 = vmatpush.bf16.msra.mxu0 %v2180
        %2917 = vmatpush.bf16.msra.mxu0 %v2176
        %2918 = vmatpush.bf16.msra.mxu0 %v2172
        %2919 = vmatpush.bf16.msra.mxu0 %v2168
        %2920 = vmatpush.bf16.msra.mxu0 %v2164
        %2921 = vmatpush.bf16.msra.mxu0 %v2160
        %2922 = vmatpush.bf16.msra.mxu0 %v2156
        %2923 = vmatpush.bf16.msra.mxu0 %v2152
        %2924 = vmatmul.bf16.gmra.mxu0 %v1272
        %v2925 = vpop.f32.mrf.mxu0
        %v2926 = vadd.f32 %v2913, %v2925
        %v2927 = vpop.f32.mrf.mxu0
        %2928 = vdwg.mxu0
        %2929 = vmatpush.bf16.msra.mxu0 %v2212
        %2930 = vmatpush.bf16.msra.mxu0 %v2208
        %2931 = vmatpush.bf16.msra.mxu0 %v2204
        %2932 = vmatpush.bf16.msra.mxu0 %v2200
        %2933 = vmatpush.bf16.msra.mxu0 %v2196
        %2934 = vmatpush.bf16.msra.mxu0 %v2192
        %2935 = vmatpush.bf16.msra.mxu0 %v2188
        %2936 = vmatpush.bf16.msra.mxu0 %v2184
        %2937 = vmatmul.bf16.gmra.mxu0 %v1273
        %v2938 = vpop.f32.mrf.mxu0
        %v2939 = vadd.f32 %v2926, %v2938
        %v2940 = vpop.f32.mrf.mxu0
        %2941 = vdwg.mxu0
        %2942 = vmatpush.bf16.msra.mxu0 %v2244
        %2943 = vmatpush.bf16.msra.mxu0 %v2240
        %2944 = vmatpush.bf16.msra.mxu0 %v2236
        %2945 = vmatpush.bf16.msra.mxu0 %v2232
        %2946 = vmatpush.bf16.msra.mxu0 %v2228
        %2947 = vmatpush.bf16.msra.mxu0 %v2224
        %2948 = vmatpush.bf16.msra.mxu0 %v2220
        %2949 = vmatpush.bf16.msra.mxu0 %v2216
        %2950 = vmatmul.bf16.gmra.mxu0 %v1274
        %v2951 = vpop.f32.mrf.mxu0
        %v2952 = vadd.f32 %v2939, %v2951
        %v2953 = vpop.f32.mrf.mxu0
        %2954 = vdwg.mxu0
        %2955 = vmatpush.bf16.msra.mxu0 %v2276
        %2956 = vmatpush.bf16.msra.mxu0 %v2272
        %2957 = vmatpush.bf16.msra.mxu0 %v2268
        %2958 = vmatpush.bf16.msra.mxu0 %v2264
        %2959 = vmatpush.bf16.msra.mxu0 %v2260
        %2960 = vmatpush.bf16.msra.mxu0 %v2256
        %2961 = vmatpush.bf16.msra.mxu0 %v2252
        %2962 = vmatpush.bf16.msra.mxu0 %v2248
        %2963 = vmatmul.bf16.gmra.mxu0 %v1275
        %v2964 = vpop.f32.mrf.mxu0
        %v2965 = vadd.f32 %v2952, %v2964
        %v2966 = vpop.f32.mrf.mxu0
        %2967 = vdwg.mxu0
        %2968 = vmatpush.bf16.msra.mxu0 %v2308
        %2969 = vmatpush.bf16.msra.mxu0 %v2304
        %2970 = vmatpush.bf16.msra.mxu0 %v2300
        %2971 = vmatpush.bf16.msra.mxu0 %v2296
        %2972 = vmatpush.bf16.msra.mxu0 %v2292
        %2973 = vmatpush.bf16.msra.mxu0 %v2288
        %2974 = vmatpush.bf16.msra.mxu0 %v2284
        %2975 = vmatpush.bf16.msra.mxu0 %v2280
        %2976 = vmatmul.bf16.gmra.mxu0 %v1276
        %v2977 = vpop.f32.mrf.mxu0
        %v2978 = vadd.f32 %v2965, %v2977
        %v2979 = vpop.f32.mrf.mxu0
        %2980 = vdwg.mxu0
        %v2981 = vmax.f32 %v2666, 0.0
        %v2982 = vmax.f32 %v2770, 0.0
        %v2983 = vmax.f32 %v2874, 0.0
        %v2984 = vmax.f32 %v2978, 0.0
        %v2985 = vpack.c.bf16 %v2981, %v2981
        %v2986 = vpack.c.bf16 %v2982, %v2982
        %v2987 = vpack.c.bf16 %v2983, %v2983
        %v2988 = vpack.c.bf16 %v2984, %v2984
        %v2989 = vld [vmem:[#allocation3] sm:$0xff]
        %v2990 = vld [vmem:[#allocation3 + $0x8] sm:$0xff]
        %v2991 = vld [vmem:[#allocation3 + $0x10] sm:$0xff]
        %v2992 = vld [vmem:[#allocation3 + $0x18] sm:$0xff]
        %v2993 = vld [vmem:[#allocation3 + $0x20] sm:$0xff]
        %v2994 = vld [vmem:[#allocation3 + $0x28] sm:$0xff]
        %v2995 = vld [vmem:[#allocation3 + $0x30] sm:$0xff]
        %v2996 = vld [vmem:[%s408] sm:$0xff]
        %v2997 = vld [vmem:[%s408 + $0x8] sm:$0xff]
        %v2998 = vld [vmem:[%s408 + $0x10] sm:$0xff]
        %v2999 = vld [vmem:[%s408 + $0x18] sm:$0xf]
        %v3000 = vld [vmem:[%s408 + $0x1c] sm:$0xff]
        %v3001 = vld [vmem:[%s408 + $0x24] sm:$0xff]
        %v3002 = vld [vmem:[%s408 + $0x2c] sm:$0xff]
        %v3003 = vld [vmem:[%s408 + $0x34] sm:$0xf]
        %v3004 = vld [vmem:[%s408 + $0x38] sm:$0xff]
        %v3005 = vld [vmem:[%s408 + $0x40] sm:$0xff]
        %v3006 = vld [vmem:[%s408 + $0x48] sm:$0xff]
        %v3007 = vld [vmem:[%s408 + $0x50] sm:$0xf]
        %v3008 = vld [vmem:[%s408 + $0x54] sm:$0xff]
        %v3009 = vld [vmem:[%s408 + $0x5c] sm:$0xff]
        %v3010 = vld [vmem:[%s408 + $0x64] sm:$0xff]
        %v3011 = vld [vmem:[%s408 + $0x6c] sm:$0xf]
        %v3012 = vld [vmem:[%s408 + $0x70] sm:$0xff]
        %v3013 = vld [vmem:[%s408 + $0x78] sm:$0xff]
        %v3014 = vld [vmem:[%s408 + $0x80] sm:$0xff]
        %v3015 = vld [vmem:[%s408 + $0x88] sm:$0xf]
        %v3016 = vld [vmem:[%s408 + $0x8c] sm:$0xff]
        %v3017 = vld [vmem:[%s408 + $0x94] sm:$0xff]
        %v3018 = vld [vmem:[%s408 + $0x9c] sm:$0xff]
        %v3019 = vld [vmem:[%s408 + $0xa4] sm:$0xf]
        %v3020 = vld [vmem:[%s408 + $0xa8] sm:$0xff]
        %v3021 = vld [vmem:[%s408 + $0xb0] sm:$0xff]
        %v3022 = vld [vmem:[%s408 + $0xb8] sm:$0xff]
        %v3023 = vld [vmem:[%s408 + $0xc0] sm:$0xf]
        %v3024 = vld [vmem:[%s408 + $0xc4] sm:$0xff]
        %v3025 = vld [vmem:[%s408 + $0xcc] sm:$0xff]
        %v3026 = vld [vmem:[%s408 + $0xd4] sm:$0xff]
        %v3027 = vld [vmem:[%s408 + $0xdc] sm:$0xf]
        %v3028 = vld [vmem:[%s408 + $0xe0] sm:$0xff]
        %v3029 = vld [vmem:[%s408 + $0xe8] sm:$0xff]
        %v3030 = vld [vmem:[%s408 + $0xf0] sm:$0xff]
        %v3031 = vld [vmem:[%s408 + $0xf8] sm:$0xf]
        %v3032 = vld [vmem:[%s408 + $0xfc] sm:$0xff]
        %v3033 = vld [vmem:[%s408 + $0x104] sm:$0xff]
        %v3034 = vld [vmem:[%s408 + $0x10c] sm:$0xff]
        %v3035 = vld [vmem:[%s408 + $0x114] sm:$0xf]
        %v3036 = vld [vmem:[%s408 + $0x118] sm:$0xff]
        %v3037 = vld [vmem:[%s408 + $0x120] sm:$0xff]
        %v3038 = vld [vmem:[%s408 + $0x128] sm:$0xff]
        %v3039 = vld [vmem:[%s408 + $0x130] sm:$0xf]
        %v3040 = vld [vmem:[%s408 + $0x134] sm:$0xff]
        %v3041 = vld [vmem:[%s408 + $0x13c] sm:$0xff]
        %v3042 = vld [vmem:[%s408 + $0x144] sm:$0xff]
        %v3043 = vld [vmem:[%s408 + $0x14c] sm:$0xf]
        %v3044 = vld [vmem:[%s408 + $0x150] sm:$0xff]
        %v3045 = vld [vmem:[%s408 + $0x158] sm:$0xff]
        %v3046 = vld [vmem:[%s408 + $0x160] sm:$0xff]
        %v3047 = vld [vmem:[%s408 + $0x168] sm:$0xf]
        %v3048 = vld [vmem:[%s408 + $0x16c] sm:$0xff]
        %v3049 = vld [vmem:[%s408 + $0x174] sm:$0xff]
        %v3050 = vld [vmem:[%s408 + $0x17c] sm:$0xff]
        %v3051 = vld [vmem:[%s408 + $0x184] sm:$0xf]
        %v3052 = vld [vmem:[%s408 + $0x188] sm:$0xff]
        %v3053 = vld [vmem:[%s408 + $0x190] sm:$0xff]
        %v3054 = vld [vmem:[%s408 + $0x198] sm:$0xff]
        %v3055 = vld [vmem:[%s408 + $0x1a0] sm:$0xf]
        %v3056 = vld [vmem:[%s408 + $0x1a4] sm:$0xff]
        %v3057 = vld [vmem:[%s408 + $0x1ac] sm:$0xff]
        %v3058 = vld [vmem:[%s408 + $0x1b4] sm:$0xff]
        %v3059 = vld [vmem:[%s408 + $0x1bc] sm:$0xf]
        %v3060 = vld [vmem:[%s408 + $0x1c0] sm:$0xff]
        %v3061 = vld [vmem:[%s408 + $0x1c8] sm:$0xff]
        %v3062 = vld [vmem:[%s408 + $0x1d0] sm:$0xff]
        %v3063 = vld [vmem:[%s408 + $0x1d8] sm:$0xf]
        %v3064 = vld [vmem:[%s408 + $0x1dc] sm:$0xff]
        %v3065 = vld [vmem:[%s408 + $0x1e4] sm:$0xff]
        %v3066 = vld [vmem:[%s408 + $0x1ec] sm:$0xff]
        %v3067 = vld [vmem:[%s408 + $0x1f4] sm:$0xf]
        %v3068 = vld [vmem:[%s408 + $0x1f8] sm:$0xff]
        %v3069 = vld [vmem:[%s408 + $0x200] sm:$0xff]
        %v3070 = vld [vmem:[%s408 + $0x208] sm:$0xff]
        %v3071 = vld [vmem:[%s408 + $0x210] sm:$0xf]
        %v3072 = vld [vmem:[%s408 + $0x214] sm:$0xff]
        %v3073 = vld [vmem:[%s408 + $0x21c] sm:$0xff]
        %v3074 = vld [vmem:[%s408 + $0x224] sm:$0xff]
        %v3075 = vld [vmem:[%s408 + $0x22c] sm:$0xf]
        %v3076 = vld [vmem:[%s408 + $0x230] sm:$0xff]
        %v3077 = vld [vmem:[%s408 + $0x238] sm:$0xff]
        %v3078 = vld [vmem:[%s408 + $0x240] sm:$0xff]
        %v3079 = vld [vmem:[%s408 + $0x248] sm:$0xf]
        %v3080 = vld [vmem:[%s408 + $0x24c] sm:$0xff]
        %v3081 = vld [vmem:[%s408 + $0x254] sm:$0xff]
        %v3082 = vld [vmem:[%s408 + $0x25c] sm:$0xff]
        %v3083 = vld [vmem:[%s408 + $0x264] sm:$0xf]
        %v3084 = vld [vmem:[%s408 + $0x268] sm:$0xff]
        %v3085 = vld [vmem:[%s408 + $0x270] sm:$0xff]
        %v3086 = vld [vmem:[%s408 + $0x278] sm:$0xff]
        %v3087 = vld [vmem:[%s408 + $0x280] sm:$0xf]
        %v3088 = vld [vmem:[%s408 + $0x284] sm:$0xff]
        %v3089 = vld [vmem:[%s408 + $0x28c] sm:$0xff]
        %v3090 = vld [vmem:[%s408 + $0x294] sm:$0xff]
        %v3091 = vld [vmem:[%s408 + $0x29c] sm:$0xf]
        %v3092 = vld [vmem:[%s408 + $0x2a0] sm:$0xff]
        %v3093 = vld [vmem:[%s408 + $0x2a8] sm:$0xff]
        %v3094 = vld [vmem:[%s408 + $0x2b0] sm:$0xff]
        %v3095 = vld [vmem:[%s408 + $0x2b8] sm:$0xf]
        %v3096 = vld [vmem:[%s408 + $0x2bc] sm:$0xff]
        %v3097 = vld [vmem:[%s408 + $0x2c4] sm:$0xff]
        %v3098 = vld [vmem:[%s408 + $0x2cc] sm:$0xff]
        %v3099 = vld [vmem:[%s408 + $0x2d4] sm:$0xf]
        %v3100 = vld [vmem:[%s408 + $0x2d8] sm:$0xff]
        %v3101 = vld [vmem:[%s408 + $0x2e0] sm:$0xff]
        %v3102 = vld [vmem:[%s408 + $0x2e8] sm:$0xff]
        %v3103 = vld [vmem:[%s408 + $0x2f0] sm:$0xf]
        %v3104 = vld [vmem:[%s408 + $0x2f4] sm:$0xff]
        %v3105 = vld [vmem:[%s408 + $0x2fc] sm:$0xff]
        %v3106 = vld [vmem:[%s408 + $0x304] sm:$0xff]
        %v3107 = vld [vmem:[%s408 + $0x30c] sm:$0xf]
        %v3108 = vld [vmem:[%s408 + $0x310] sm:$0xff]
        %v3109 = vld [vmem:[%s408 + $0x318] sm:$0xff]
        %v3110 = vld [vmem:[%s408 + $0x320] sm:$0xff]
        %v3111 = vld [vmem:[%s408 + $0x328] sm:$0xf]
        %v3112 = vld [vmem:[%s408 + $0x32c] sm:$0xff]
        %v3113 = vld [vmem:[%s408 + $0x334] sm:$0xff]
        %v3114 = vld [vmem:[%s408 + $0x33c] sm:$0xff]
        %v3115 = vld [vmem:[%s408 + $0x344] sm:$0xf]
        %v3116 = vld [vmem:[%s408 + $0x348] sm:$0xff]
        %v3117 = vld [vmem:[%s408 + $0x350] sm:$0xff]
        %v3118 = vld [vmem:[%s408 + $0x358] sm:$0xff]
        %v3119 = vld [vmem:[%s408 + $0x360] sm:$0xf]
        %v3120 = vld [vmem:[%s408 + $0x364] sm:$0xff]
        %v3121 = vld [vmem:[%s408 + $0x36c] sm:$0xff]
        %v3122 = vld [vmem:[%s408 + $0x374] sm:$0xff]
        %v3123 = vld [vmem:[%s408 + $0x37c] sm:$0xf]
        %v3124 = vld [vmem:[%s408 + $0x380] sm:$0xff]
        %v3125 = vld [vmem:[%s408 + $0x388] sm:$0xff]
        %v3126 = vld [vmem:[%s408 + $0x390] sm:$0xff]
        %v3127 = vld [vmem:[%s408 + $0x398] sm:$0xf]
        %v3128 = vld [vmem:[%s408 + $0x39c] sm:$0xff]
        %v3129 = vld [vmem:[%s408 + $0x3a4] sm:$0xff]
        %v3130 = vld [vmem:[%s408 + $0x3ac] sm:$0xff]
        %v3131 = vld [vmem:[%s408 + $0x3b4] sm:$0xf]
        %v3132 = vld [vmem:[%s408 + $0x3b8] sm:$0xff]
        %v3133 = vld [vmem:[%s408 + $0x3c0] sm:$0xff]
        %v3134 = vld [vmem:[%s408 + $0x3c8] sm:$0xff]
        %v3135 = vld [vmem:[%s408 + $0x3d0] sm:$0xf]
        %v3136 = vld [vmem:[%s408 + $0x3d4] sm:$0xff]
        %v3137 = vld [vmem:[%s408 + $0x3dc] sm:$0xff]
        %v3138 = vld [vmem:[%s408 + $0x3e4] sm:$0xff]
        %v3139 = vld [vmem:[%s408 + $0x3ec] sm:$0xf]
        %v3140 = vld [vmem:[%s408 + $0x3f0] sm:$0xff]
        %v3141 = vld [vmem:[%s408 + $0x3f8] sm:$0xff]
        %v3142 = vld [vmem:[%s408 + $0x400] sm:$0xff]
        %v3143 = vld [vmem:[%s408 + $0x408] sm:$0xf]
        %v3144 = vld [vmem:[%s408 + $0x40c] sm:$0xff]
        %v3145 = vld [vmem:[%s408 + $0x414] sm:$0xff]
        %v3146 = vld [vmem:[%s408 + $0x41c] sm:$0xff]
        %v3147 = vld [vmem:[%s408 + $0x424] sm:$0xf]
        %v3148 = vld [vmem:[%s408 + $0x428] sm:$0xff]
        %v3149 = vld [vmem:[%s408 + $0x430] sm:$0xff]
        %v3150 = vld [vmem:[%s408 + $0x438] sm:$0xff]
        %v3151 = vld [vmem:[%s408 + $0x440] sm:$0xf]
        %v3152 = vld [vmem:[%s408 + $0x444] sm:$0xff]
        %v3153 = vld [vmem:[%s408 + $0x44c] sm:$0xff]
        %v3154 = vld [vmem:[%s408 + $0x454] sm:$0xff]
        %v3155 = vld [vmem:[%s408 + $0x45c] sm:$0xf]
        %v3156 = vld [vmem:[%s408 + $0x460] sm:$0xff]
        %v3157 = vld [vmem:[%s408 + $0x468] sm:$0xff]
        %v3158 = vld [vmem:[%s408 + $0x470] sm:$0xff]
        %v3159 = vld [vmem:[%s408 + $0x478] sm:$0xf]
        %v3160 = vld [vmem:[%s408 + $0x47c] sm:$0xff]
        %v3161 = vld [vmem:[%s408 + $0x484] sm:$0xff]
        %v3162 = vld [vmem:[%s408 + $0x48c] sm:$0xff]
        %v3163 = vld [vmem:[%s408 + $0x494] sm:$0xf]
        %v3164 = vld [vmem:[%s408 + $0x498] sm:$0xff]
        %v3165 = vld [vmem:[%s408 + $0x4a0] sm:$0xff]
        %v3166 = vld [vmem:[%s408 + $0x4a8] sm:$0xff]
        %v3167 = vld [vmem:[%s408 + $0x4b0] sm:$0xf]
        %v3168 = vld [vmem:[%s408 + $0x4b4] sm:$0xff]
        %v3169 = vld [vmem:[%s408 + $0x4bc] sm:$0xff]
        %v3170 = vld [vmem:[%s408 + $0x4c4] sm:$0xff]
        %v3171 = vld [vmem:[%s408 + $0x4cc] sm:$0xf]
        %v3172 = vld [vmem:[%s408 + $0x4d0] sm:$0xff]
        %v3173 = vld [vmem:[%s408 + $0x4d8] sm:$0xff]
        %v3174 = vld [vmem:[%s408 + $0x4e0] sm:$0xff]
        %v3175 = vld [vmem:[%s408 + $0x4e8] sm:$0xf]
        %v3176 = vld [vmem:[%s408 + $0x4ec] sm:$0xff]
        %v3177 = vld [vmem:[%s408 + $0x4f4] sm:$0xff]
        %v3178 = vld [vmem:[%s408 + $0x4fc] sm:$0xff]
        %v3179 = vld [vmem:[%s408 + $0x504] sm:$0xf]
        %v3180 = vld [vmem:[%s408 + $0x508] sm:$0xff]
        %v3181 = vld [vmem:[%s408 + $0x510] sm:$0xff]
        %v3182 = vld [vmem:[%s408 + $0x518] sm:$0xff]
        %v3183 = vld [vmem:[%s408 + $0x520] sm:$0xf]
        %v3184 = vld [vmem:[%s408 + $0x524] sm:$0xff]
        %v3185 = vld [vmem:[%s408 + $0x52c] sm:$0xff]
        %v3186 = vld [vmem:[%s408 + $0x534] sm:$0xff]
        %v3187 = vld [vmem:[%s408 + $0x53c] sm:$0xf]
        %v3188 = vld [vmem:[%s408 + $0x540] sm:$0xff]
        %v3189 = vld [vmem:[%s408 + $0x548] sm:$0xff]
        %v3190 = vld [vmem:[%s408 + $0x550] sm:$0xff]
        %v3191 = vld [vmem:[%s408 + $0x558] sm:$0xf]
        %v3192 = vld [vmem:[%s408 + $0x55c] sm:$0xff]
        %v3193 = vld [vmem:[%s408 + $0x564] sm:$0xff]
        %v3194 = vld [vmem:[%s408 + $0x56c] sm:$0xff]
        %v3195 = vld [vmem:[%s408 + $0x574] sm:$0xf]
        %v3196 = vld [vmem:[%s408 + $0x578] sm:$0xff]
        %v3197 = vld [vmem:[%s408 + $0x580] sm:$0xff]
        %v3198 = vld [vmem:[%s408 + $0x588] sm:$0xff]
        %v3199 = vld [vmem:[%s408 + $0x590] sm:$0xf]
        %v3200 = vld [vmem:[%s408 + $0x594] sm:$0xff]
        %v3201 = vld [vmem:[%s408 + $0x59c] sm:$0xff]
        %v3202 = vld [vmem:[%s408 + $0x5a4] sm:$0xff]
        %v3203 = vld [vmem:[%s408 + $0x5ac] sm:$0xf]
        %v3204 = vld [vmem:[%s408 + $0x5b0] sm:$0xff]
        %v3205 = vld [vmem:[%s408 + $0x5b8] sm:$0xff]
        %v3206 = vld [vmem:[%s408 + $0x5c0] sm:$0xff]
        %v3207 = vld [vmem:[%s408 + $0x5c8] sm:$0xf]
        %v3208 = vld [vmem:[%s408 + $0x5cc] sm:$0xff]
        %v3209 = vld [vmem:[%s408 + $0x5d4] sm:$0xff]
        %v3210 = vld [vmem:[%s408 + $0x5dc] sm:$0xff]
        %v3211 = vld [vmem:[%s408 + $0x5e4] sm:$0xf]
        %v3212 = vld [vmem:[%s408 + $0x5e8] sm:$0xff]
        %v3213 = vld [vmem:[%s408 + $0x5f0] sm:$0xff]
        %v3214 = vld [vmem:[%s408 + $0x5f8] sm:$0xff]
        %v3215 = vld [vmem:[%s408 + $0x600] sm:$0xf]
        %v3216 = vld [vmem:[%s408 + $0x604] sm:$0xff]
        %v3217 = vld [vmem:[%s408 + $0x60c] sm:$0xff]
        %v3218 = vld [vmem:[%s408 + $0x614] sm:$0xff]
        %v3219 = vld [vmem:[%s408 + $0x61c] sm:$0xf]
        %v3220 = vld [vmem:[%s408 + $0x620] sm:$0xff]
        %v3221 = vld [vmem:[%s408 + $0x628] sm:$0xff]
        %v3222 = vld [vmem:[%s408 + $0x630] sm:$0xff]
        %v3223 = vld [vmem:[%s408 + $0x638] sm:$0xf]
        %v3224 = vld [vmem:[%s408 + $0x63c] sm:$0xff]
        %v3225 = vld [vmem:[%s408 + $0x644] sm:$0xff]
        %v3226 = vld [vmem:[%s408 + $0x64c] sm:$0xff]
        %v3227 = vld [vmem:[%s408 + $0x654] sm:$0xf]
        %v3228 = vld [vmem:[%s408 + $0x658] sm:$0xff]
        %v3229 = vld [vmem:[%s408 + $0x660] sm:$0xff]
        %v3230 = vld [vmem:[%s408 + $0x668] sm:$0xff]
        %v3231 = vld [vmem:[%s408 + $0x670] sm:$0xf]
        %v3232 = vld [vmem:[%s408 + $0x674] sm:$0xff]
        %v3233 = vld [vmem:[%s408 + $0x67c] sm:$0xff]
        %v3234 = vld [vmem:[%s408 + $0x684] sm:$0xff]
        %v3235 = vld [vmem:[%s408 + $0x68c] sm:$0xf]
        %v3236 = vld [vmem:[%s408 + $0x690] sm:$0xff]
        %v3237 = vld [vmem:[%s408 + $0x698] sm:$0xff]
        %v3238 = vld [vmem:[%s408 + $0x6a0] sm:$0xff]
        %v3239 = vld [vmem:[%s408 + $0x6a8] sm:$0xf]
        %v3240 = vld [vmem:[%s408 + $0x6ac] sm:$0xff]
        %v3241 = vld [vmem:[%s408 + $0x6b4] sm:$0xff]
        %v3242 = vld [vmem:[%s408 + $0x6bc] sm:$0xff]
        %v3243 = vld [vmem:[%s408 + $0x6c4] sm:$0xf]
        %v3244 = vld [vmem:[%s408 + $0x6c8] sm:$0xff]
        %v3245 = vld [vmem:[%s408 + $0x6d0] sm:$0xff]
        %v3246 = vld [vmem:[%s408 + $0x6d8] sm:$0xff]
        %v3247 = vld [vmem:[%s408 + $0x6e0] sm:$0xf]
        %v3248 = vld [vmem:[%s408 + $0x6e4] sm:$0xff]
        %v3249 = vld [vmem:[%s408 + $0x6ec] sm:$0xff]
        %v3250 = vld [vmem:[%s408 + $0x6f4] sm:$0xff]
        %v3251 = vld [vmem:[%s408 + $0x6fc] sm:$0xf]
        %v3508 = vunpack.c.l.b16 %v2996
        %v3509 = vunpack.c.h.b16 %v2996
        %v3510 = vunpack.c.l.b16 %v2997
        %v3511 = vunpack.c.h.b16 %v2997
        %v3512 = vunpack.c.l.b16 %v2998
        %v3513 = vunpack.c.h.b16 %v2998
        %v3514 = vunpack.c.l.b16 %v2999
        %v3515 = vunpack.c.l.b16 %v3000
        %v3516 = vunpack.c.h.b16 %v3000
        %v3517 = vunpack.c.l.b16 %v3001
        %v3518 = vunpack.c.h.b16 %v3001
        %v3519 = vunpack.c.l.b16 %v3002
        %v3520 = vunpack.c.h.b16 %v3002
        %v3521 = vunpack.c.l.b16 %v3003
        %v3522 = vunpack.c.l.b16 %v3004
        %v3523 = vunpack.c.h.b16 %v3004
        %v3524 = vunpack.c.l.b16 %v3005
        %v3525 = vunpack.c.h.b16 %v3005
        %v3526 = vunpack.c.l.b16 %v3006
        %v3527 = vunpack.c.h.b16 %v3006
        %v3528 = vunpack.c.l.b16 %v3007
        %v3529 = vunpack.c.l.b16 %v3008
        %v3530 = vunpack.c.h.b16 %v3008
        %v3531 = vunpack.c.l.b16 %v3009
        %v3532 = vunpack.c.h.b16 %v3009
        %v3533 = vunpack.c.l.b16 %v3010
        %v3534 = vunpack.c.h.b16 %v3010
        %v3535 = vunpack.c.l.b16 %v3011
        %v3536 = vunpack.c.l.b16 %v3012
        %v3537 = vunpack.c.h.b16 %v3012
        %v3538 = vunpack.c.l.b16 %v3013
        %v3539 = vunpack.c.h.b16 %v3013
        %v3540 = vunpack.c.l.b16 %v3014
        %v3541 = vunpack.c.h.b16 %v3014
        %v3542 = vunpack.c.l.b16 %v3015
        %v3543 = vunpack.c.l.b16 %v3016
        %v3544 = vunpack.c.h.b16 %v3016
        %v3545 = vunpack.c.l.b16 %v3017
        %v3546 = vunpack.c.h.b16 %v3017
        %v3547 = vunpack.c.l.b16 %v3018
        %v3548 = vunpack.c.h.b16 %v3018
        %v3549 = vunpack.c.l.b16 %v3019
        %v3550 = vunpack.c.l.b16 %v3020
        %v3551 = vunpack.c.h.b16 %v3020
        %v3552 = vunpack.c.l.b16 %v3021
        %v3553 = vunpack.c.h.b16 %v3021
        %v3554 = vunpack.c.l.b16 %v3022
        %v3555 = vunpack.c.h.b16 %v3022
        %v3556 = vunpack.c.l.b16 %v3023
        %v3557 = vunpack.c.l.b16 %v3024
        %v3558 = vunpack.c.h.b16 %v3024
        %v3559 = vunpack.c.l.b16 %v3025
        %v3560 = vunpack.c.h.b16 %v3025
        %v3561 = vunpack.c.l.b16 %v3026
        %v3562 = vunpack.c.h.b16 %v3026
        %v3563 = vunpack.c.l.b16 %v3027
        %v3564 = vunpack.c.l.b16 %v3028
        %v3565 = vunpack.c.h.b16 %v3028
        %v3566 = vunpack.c.l.b16 %v3029
        %v3567 = vunpack.c.h.b16 %v3029
        %v3568 = vunpack.c.l.b16 %v3030
        %v3569 = vunpack.c.h.b16 %v3030
        %v3570 = vunpack.c.l.b16 %v3031
        %v3571 = vunpack.c.l.b16 %v3032
        %v3572 = vunpack.c.h.b16 %v3032
        %v3573 = vunpack.c.l.b16 %v3033
        %v3574 = vunpack.c.h.b16 %v3033
        %v3575 = vunpack.c.l.b16 %v3034
        %v3576 = vunpack.c.h.b16 %v3034
        %v3577 = vunpack.c.l.b16 %v3035
        %v3578 = vunpack.c.l.b16 %v3036
        %v3579 = vunpack.c.h.b16 %v3036
        %v3580 = vunpack.c.l.b16 %v3037
        %v3581 = vunpack.c.h.b16 %v3037
        %v3582 = vunpack.c.l.b16 %v3038
        %v3583 = vunpack.c.h.b16 %v3038
        %v3584 = vunpack.c.l.b16 %v3039
        %v3585 = vunpack.c.l.b16 %v3040
        %v3586 = vunpack.c.h.b16 %v3040
        %v3587 = vunpack.c.l.b16 %v3041
        %v3588 = vunpack.c.h.b16 %v3041
        %v3589 = vunpack.c.l.b16 %v3042
        %v3590 = vunpack.c.h.b16 %v3042
        %v3591 = vunpack.c.l.b16 %v3043
        %v3592 = vunpack.c.l.b16 %v3044
        %v3593 = vunpack.c.h.b16 %v3044
        %v3594 = vunpack.c.l.b16 %v3045
        %v3595 = vunpack.c.h.b16 %v3045
        %v3596 = vunpack.c.l.b16 %v3046
        %v3597 = vunpack.c.h.b16 %v3046
        %v3598 = vunpack.c.l.b16 %v3047
        %v3599 = vunpack.c.l.b16 %v3048
        %v3600 = vunpack.c.h.b16 %v3048
        %v3601 = vunpack.c.l.b16 %v3049
        %v3602 = vunpack.c.h.b16 %v3049
        %v3603 = vunpack.c.l.b16 %v3050
        %v3604 = vunpack.c.h.b16 %v3050
        %v3605 = vunpack.c.l.b16 %v3051
        %v3606 = vunpack.c.l.b16 %v3052
        %v3607 = vunpack.c.h.b16 %v3052
        %v3608 = vunpack.c.l.b16 %v3053
        %v3609 = vunpack.c.h.b16 %v3053
        %v3610 = vunpack.c.l.b16 %v3054
        %v3611 = vunpack.c.h.b16 %v3054
        %v3612 = vunpack.c.l.b16 %v3055
        %v3613 = vunpack.c.l.b16 %v3056
        %v3614 = vunpack.c.h.b16 %v3056
        %v3615 = vunpack.c.l.b16 %v3057
        %v3616 = vunpack.c.h.b16 %v3057
        %v3617 = vunpack.c.l.b16 %v3058
        %v3618 = vunpack.c.h.b16 %v3058
        %v3619 = vunpack.c.l.b16 %v3059
        %v3620 = vunpack.c.l.b16 %v3060
        %v3621 = vunpack.c.h.b16 %v3060
        %v3622 = vunpack.c.l.b16 %v3061
        %v3623 = vunpack.c.h.b16 %v3061
        %v3624 = vunpack.c.l.b16 %v3062
        %v3625 = vunpack.c.h.b16 %v3062
        %v3626 = vunpack.c.l.b16 %v3063
        %v3627 = vunpack.c.l.b16 %v3064
        %v3628 = vunpack.c.h.b16 %v3064
        %v3629 = vunpack.c.l.b16 %v3065
        %v3630 = vunpack.c.h.b16 %v3065
        %v3631 = vunpack.c.l.b16 %v3066
        %v3632 = vunpack.c.h.b16 %v3066
        %v3633 = vunpack.c.l.b16 %v3067
        %v3634 = vunpack.c.l.b16 %v3068
        %v3635 = vunpack.c.h.b16 %v3068
        %v3636 = vunpack.c.l.b16 %v3069
        %v3637 = vunpack.c.h.b16 %v3069
        %v3638 = vunpack.c.l.b16 %v3070
        %v3639 = vunpack.c.h.b16 %v3070
        %v3640 = vunpack.c.l.b16 %v3071
        %v3641 = vunpack.c.l.b16 %v3072
        %v3642 = vunpack.c.h.b16 %v3072
        %v3643 = vunpack.c.l.b16 %v3073
        %v3644 = vunpack.c.h.b16 %v3073
        %v3645 = vunpack.c.l.b16 %v3074
        %v3646 = vunpack.c.h.b16 %v3074
        %v3647 = vunpack.c.l.b16 %v3075
        %v3648 = vunpack.c.l.b16 %v3076
        %v3649 = vunpack.c.h.b16 %v3076
        %v3650 = vunpack.c.l.b16 %v3077
        %v3651 = vunpack.c.h.b16 %v3077
        %v3652 = vunpack.c.l.b16 %v3078
        %v3653 = vunpack.c.h.b16 %v3078
        %v3654 = vunpack.c.l.b16 %v3079
        %v3655 = vunpack.c.l.b16 %v3080
        %v3656 = vunpack.c.h.b16 %v3080
        %v3657 = vunpack.c.l.b16 %v3081
        %v3658 = vunpack.c.h.b16 %v3081
        %v3659 = vunpack.c.l.b16 %v3082
        %v3660 = vunpack.c.h.b16 %v3082
        %v3661 = vunpack.c.l.b16 %v3083
        %v3662 = vunpack.c.l.b16 %v3084
        %v3663 = vunpack.c.h.b16 %v3084
        %v3664 = vunpack.c.l.b16 %v3085
        %v3665 = vunpack.c.h.b16 %v3085
        %v3666 = vunpack.c.l.b16 %v3086
        %v3667 = vunpack.c.h.b16 %v3086
        %v3668 = vunpack.c.l.b16 %v3087
        %v3669 = vunpack.c.l.b16 %v3088
        %v3670 = vunpack.c.h.b16 %v3088
        %v3671 = vunpack.c.l.b16 %v3089
        %v3672 = vunpack.c.h.b16 %v3089
        %v3673 = vunpack.c.l.b16 %v3090
        %v3674 = vunpack.c.h.b16 %v3090
        %v3675 = vunpack.c.l.b16 %v3091
        %v3676 = vunpack.c.l.b16 %v3092
        %v3677 = vunpack.c.h.b16 %v3092
        %v3678 = vunpack.c.l.b16 %v3093
        %v3679 = vunpack.c.h.b16 %v3093
        %v3680 = vunpack.c.l.b16 %v3094
        %v3681 = vunpack.c.h.b16 %v3094
        %v3682 = vunpack.c.l.b16 %v3095
        %v3683 = vunpack.c.l.b16 %v3096
        %v3684 = vunpack.c.h.b16 %v3096
        %v3685 = vunpack.c.l.b16 %v3097
        %v3686 = vunpack.c.h.b16 %v3097
        %v3687 = vunpack.c.l.b16 %v3098
        %v3688 = vunpack.c.h.b16 %v3098
        %v3689 = vunpack.c.l.b16 %v3099
        %v3690 = vunpack.c.l.b16 %v3100
        %v3691 = vunpack.c.h.b16 %v3100
        %v3692 = vunpack.c.l.b16 %v3101
        %v3693 = vunpack.c.h.b16 %v3101
        %v3694 = vunpack.c.l.b16 %v3102
        %v3695 = vunpack.c.h.b16 %v3102
        %v3696 = vunpack.c.l.b16 %v3103
        %v3697 = vunpack.c.l.b16 %v3104
        %v3698 = vunpack.c.h.b16 %v3104
        %v3699 = vunpack.c.l.b16 %v3105
        %v3700 = vunpack.c.h.b16 %v3105
        %v3701 = vunpack.c.l.b16 %v3106
        %v3702 = vunpack.c.h.b16 %v3106
        %v3703 = vunpack.c.l.b16 %v3107
        %v3704 = vunpack.c.l.b16 %v3108
        %v3705 = vunpack.c.h.b16 %v3108
        %v3706 = vunpack.c.l.b16 %v3109
        %v3707 = vunpack.c.h.b16 %v3109
        %v3708 = vunpack.c.l.b16 %v3110
        %v3709 = vunpack.c.h.b16 %v3110
        %v3710 = vunpack.c.l.b16 %v3111
        %v3711 = vunpack.c.l.b16 %v3112
        %v3712 = vunpack.c.h.b16 %v3112
        %v3713 = vunpack.c.l.b16 %v3113
        %v3714 = vunpack.c.h.b16 %v3113
        %v3715 = vunpack.c.l.b16 %v3114
        %v3716 = vunpack.c.h.b16 %v3114
        %v3717 = vunpack.c.l.b16 %v3115
        %v3718 = vunpack.c.l.b16 %v3116
        %v3719 = vunpack.c.h.b16 %v3116
        %v3720 = vunpack.c.l.b16 %v3117
        %v3721 = vunpack.c.h.b16 %v3117
        %v3722 = vunpack.c.l.b16 %v3118
        %v3723 = vunpack.c.h.b16 %v3118
        %v3724 = vunpack.c.l.b16 %v3119
        %v3725 = vunpack.c.l.b16 %v3120
        %v3726 = vunpack.c.h.b16 %v3120
        %v3727 = vunpack.c.l.b16 %v3121
        %v3728 = vunpack.c.h.b16 %v3121
        %v3729 = vunpack.c.l.b16 %v3122
        %v3730 = vunpack.c.h.b16 %v3122
        %v3731 = vunpack.c.l.b16 %v3123
        %v3732 = vunpack.c.l.b16 %v3124
        %v3733 = vunpack.c.h.b16 %v3124
        %v3734 = vunpack.c.l.b16 %v3125
        %v3735 = vunpack.c.h.b16 %v3125
        %v3736 = vunpack.c.l.b16 %v3126
        %v3737 = vunpack.c.h.b16 %v3126
        %v3738 = vunpack.c.l.b16 %v3127
        %v3739 = vunpack.c.l.b16 %v3128
        %v3740 = vunpack.c.h.b16 %v3128
        %v3741 = vunpack.c.l.b16 %v3129
        %v3742 = vunpack.c.h.b16 %v3129
        %v3743 = vunpack.c.l.b16 %v3130
        %v3744 = vunpack.c.h.b16 %v3130
        %v3745 = vunpack.c.l.b16 %v3131
        %v3746 = vunpack.c.l.b16 %v3132
        %v3747 = vunpack.c.h.b16 %v3132
        %v3748 = vunpack.c.l.b16 %v3133
        %v3749 = vunpack.c.h.b16 %v3133
        %v3750 = vunpack.c.l.b16 %v3134
        %v3751 = vunpack.c.h.b16 %v3134
        %v3752 = vunpack.c.l.b16 %v3135
        %v3753 = vunpack.c.l.b16 %v3136
        %v3754 = vunpack.c.h.b16 %v3136
        %v3755 = vunpack.c.l.b16 %v3137
        %v3756 = vunpack.c.h.b16 %v3137
        %v3757 = vunpack.c.l.b16 %v3138
        %v3758 = vunpack.c.h.b16 %v3138
        %v3759 = vunpack.c.l.b16 %v3139
        %v3760 = vunpack.c.l.b16 %v3140
        %v3761 = vunpack.c.h.b16 %v3140
        %v3762 = vunpack.c.l.b16 %v3141
        %v3763 = vunpack.c.h.b16 %v3141
        %v3764 = vunpack.c.l.b16 %v3142
        %v3765 = vunpack.c.h.b16 %v3142
        %v3766 = vunpack.c.l.b16 %v3143
        %v3767 = vunpack.c.l.b16 %v3144
        %v3768 = vunpack.c.h.b16 %v3144
        %v3769 = vunpack.c.l.b16 %v3145
        %v3770 = vunpack.c.h.b16 %v3145
        %v3771 = vunpack.c.l.b16 %v3146
        %v3772 = vunpack.c.h.b16 %v3146
        %v3773 = vunpack.c.l.b16 %v3147
        %v3774 = vunpack.c.l.b16 %v3148
        %v3775 = vunpack.c.h.b16 %v3148
        %v3776 = vunpack.c.l.b16 %v3149
        %v3777 = vunpack.c.h.b16 %v3149
        %v3778 = vunpack.c.l.b16 %v3150
        %v3779 = vunpack.c.h.b16 %v3150
        %v3780 = vunpack.c.l.b16 %v3151
        %v3781 = vunpack.c.l.b16 %v3152
        %v3782 = vunpack.c.h.b16 %v3152
        %v3783 = vunpack.c.l.b16 %v3153
        %v3784 = vunpack.c.h.b16 %v3153
        %v3785 = vunpack.c.l.b16 %v3154
        %v3786 = vunpack.c.h.b16 %v3154
        %v3787 = vunpack.c.l.b16 %v3155
        %v3788 = vunpack.c.l.b16 %v3156
        %v3789 = vunpack.c.h.b16 %v3156
        %v3790 = vunpack.c.l.b16 %v3157
        %v3791 = vunpack.c.h.b16 %v3157
        %v3792 = vunpack.c.l.b16 %v3158
        %v3793 = vunpack.c.h.b16 %v3158
        %v3794 = vunpack.c.l.b16 %v3159
        %v3795 = vunpack.c.l.b16 %v3160
        %v3796 = vunpack.c.h.b16 %v3160
        %v3797 = vunpack.c.l.b16 %v3161
        %v3798 = vunpack.c.h.b16 %v3161
        %v3799 = vunpack.c.l.b16 %v3162
        %v3800 = vunpack.c.h.b16 %v3162
        %v3801 = vunpack.c.l.b16 %v3163
        %v3802 = vunpack.c.l.b16 %v3164
        %v3803 = vunpack.c.h.b16 %v3164
        %v3804 = vunpack.c.l.b16 %v3165
        %v3805 = vunpack.c.h.b16 %v3165
        %v3806 = vunpack.c.l.b16 %v3166
        %v3807 = vunpack.c.h.b16 %v3166
        %v3808 = vunpack.c.l.b16 %v3167
        %v3809 = vunpack.c.l.b16 %v3168
        %v3810 = vunpack.c.h.b16 %v3168
        %v3811 = vunpack.c.l.b16 %v3169
        %v3812 = vunpack.c.h.b16 %v3169
        %v3813 = vunpack.c.l.b16 %v3170
        %v3814 = vunpack.c.h.b16 %v3170
        %v3815 = vunpack.c.l.b16 %v3171
        %v3816 = vunpack.c.l.b16 %v3172
        %v3817 = vunpack.c.h.b16 %v3172
        %v3818 = vunpack.c.l.b16 %v3173
        %v3819 = vunpack.c.h.b16 %v3173
        %v3820 = vunpack.c.l.b16 %v3174
        %v3821 = vunpack.c.h.b16 %v3174
        %v3822 = vunpack.c.l.b16 %v3175
        %v3823 = vunpack.c.l.b16 %v3176
        %v3824 = vunpack.c.h.b16 %v3176
        %v3825 = vunpack.c.l.b16 %v3177
        %v3826 = vunpack.c.h.b16 %v3177
        %v3827 = vunpack.c.l.b16 %v3178
        %v3828 = vunpack.c.h.b16 %v3178
        %v3829 = vunpack.c.l.b16 %v3179
        %v3830 = vunpack.c.l.b16 %v3180
        %v3831 = vunpack.c.h.b16 %v3180
        %v3832 = vunpack.c.l.b16 %v3181
        %v3833 = vunpack.c.h.b16 %v3181
        %v3834 = vunpack.c.l.b16 %v3182
        %v3835 = vunpack.c.h.b16 %v3182
        %v3836 = vunpack.c.l.b16 %v3183
        %v3837 = vunpack.c.l.b16 %v3184
        %v3838 = vunpack.c.h.b16 %v3184
        %v3839 = vunpack.c.l.b16 %v3185
        %v3840 = vunpack.c.h.b16 %v3185
        %v3841 = vunpack.c.l.b16 %v3186
        %v3842 = vunpack.c.h.b16 %v3186
        %v3843 = vunpack.c.l.b16 %v3187
        %v3844 = vunpack.c.l.b16 %v3188
        %v3845 = vunpack.c.h.b16 %v3188
        %v3846 = vunpack.c.l.b16 %v3189
        %v3847 = vunpack.c.h.b16 %v3189
        %v3848 = vunpack.c.l.b16 %v3190
        %v3849 = vunpack.c.h.b16 %v3190
        %v3850 = vunpack.c.l.b16 %v3191
        %v3851 = vunpack.c.l.b16 %v3192
        %v3852 = vunpack.c.h.b16 %v3192
        %v3853 = vunpack.c.l.b16 %v3193
        %v3854 = vunpack.c.h.b16 %v3193
        %v3855 = vunpack.c.l.b16 %v3194
        %v3856 = vunpack.c.h.b16 %v3194
        %v3857 = vunpack.c.l.b16 %v3195
        %v3858 = vunpack.c.l.b16 %v3196
        %v3859 = vunpack.c.h.b16 %v3196
        %v3860 = vunpack.c.l.b16 %v3197
        %v3861 = vunpack.c.h.b16 %v3197
        %v3862 = vunpack.c.l.b16 %v3198
        %v3863 = vunpack.c.h.b16 %v3198
        %v3864 = vunpack.c.l.b16 %v3199
        %v3865 = vunpack.c.l.b16 %v3200
        %v3866 = vunpack.c.h.b16 %v3200
        %v3867 = vunpack.c.l.b16 %v3201
        %v3868 = vunpack.c.h.b16 %v3201
        %v3869 = vunpack.c.l.b16 %v3202
        %v3870 = vunpack.c.h.b16 %v3202
        %v3871 = vunpack.c.l.b16 %v3203
        %v3872 = vunpack.c.l.b16 %v3204
        %v3873 = vunpack.c.h.b16 %v3204
        %v3874 = vunpack.c.l.b16 %v3205
        %v3875 = vunpack.c.h.b16 %v3205
        %v3876 = vunpack.c.l.b16 %v3206
        %v3877 = vunpack.c.h.b16 %v3206
        %v3878 = vunpack.c.l.b16 %v3207
        %v3879 = vunpack.c.l.b16 %v3208
        %v3880 = vunpack.c.h.b16 %v3208
        %v3881 = vunpack.c.l.b16 %v3209
        %v3882 = vunpack.c.h.b16 %v3209
        %v3883 = vunpack.c.l.b16 %v3210
        %v3884 = vunpack.c.h.b16 %v3210
        %v3885 = vunpack.c.l.b16 %v3211
        %v3886 = vunpack.c.l.b16 %v3212
        %v3887 = vunpack.c.h.b16 %v3212
        %v3888 = vunpack.c.l.b16 %v3213
        %v3889 = vunpack.c.h.b16 %v3213
        %v3890 = vunpack.c.l.b16 %v3214
        %v3891 = vunpack.c.h.b16 %v3214
        %v3892 = vunpack.c.l.b16 %v3215
        %v3893 = vunpack.c.l.b16 %v3216
        %v3894 = vunpack.c.h.b16 %v3216
        %v3895 = vunpack.c.l.b16 %v3217
        %v3896 = vunpack.c.h.b16 %v3217
        %v3897 = vunpack.c.l.b16 %v3218
        %v3898 = vunpack.c.h.b16 %v3218
        %v3899 = vunpack.c.l.b16 %v3219
        %v3900 = vunpack.c.l.b16 %v3220
        %v3901 = vunpack.c.h.b16 %v3220
        %v3902 = vunpack.c.l.b16 %v3221
        %v3903 = vunpack.c.h.b16 %v3221
        %v3904 = vunpack.c.l.b16 %v3222
        %v3905 = vunpack.c.h.b16 %v3222
        %v3906 = vunpack.c.l.b16 %v3223
        %v3907 = vunpack.c.l.b16 %v3224
        %v3908 = vunpack.c.h.b16 %v3224
        %v3909 = vunpack.c.l.b16 %v3225
        %v3910 = vunpack.c.h.b16 %v3225
        %v3911 = vunpack.c.l.b16 %v3226
        %v3912 = vunpack.c.h.b16 %v3226
        %v3913 = vunpack.c.l.b16 %v3227
        %v3914 = vunpack.c.l.b16 %v3228
        %v3915 = vunpack.c.h.b16 %v3228
        %v3916 = vunpack.c.l.b16 %v3229
        %v3917 = vunpack.c.h.b16 %v3229
        %v3918 = vunpack.c.l.b16 %v3230
        %v3919 = vunpack.c.h.b16 %v3230
        %v3920 = vunpack.c.l.b16 %v3231
        %v3921 = vunpack.c.l.b16 %v3232
        %v3922 = vunpack.c.h.b16 %v3232
        %v3923 = vunpack.c.l.b16 %v3233
        %v3924 = vunpack.c.h.b16 %v3233
        %v3925 = vunpack.c.l.b16 %v3234
        %v3926 = vunpack.c.h.b16 %v3234
        %v3927 = vunpack.c.l.b16 %v3235
        %v3928 = vunpack.c.l.b16 %v3236
        %v3929 = vunpack.c.h.b16 %v3236
        %v3930 = vunpack.c.l.b16 %v3237
        %v3931 = vunpack.c.h.b16 %v3237
        %v3932 = vunpack.c.l.b16 %v3238
        %v3933 = vunpack.c.h.b16 %v3238
        %v3934 = vunpack.c.l.b16 %v3239
        %v3935 = vunpack.c.l.b16 %v3240
        %v3936 = vunpack.c.h.b16 %v3240
        %v3937 = vunpack.c.l.b16 %v3241
        %v3938 = vunpack.c.h.b16 %v3241
        %v3939 = vunpack.c.l.b16 %v3242
        %v3940 = vunpack.c.h.b16 %v3242
        %v3941 = vunpack.c.l.b16 %v3243
        %v3942 = vunpack.c.l.b16 %v3244
        %v3943 = vunpack.c.h.b16 %v3244
        %v3944 = vunpack.c.l.b16 %v3245
        %v3945 = vunpack.c.h.b16 %v3245
        %v3946 = vunpack.c.l.b16 %v3246
        %v3947 = vunpack.c.h.b16 %v3246
        %v3948 = vunpack.c.l.b16 %v3247
        %v3949 = vunpack.c.l.b16 %v3248
        %v3950 = vunpack.c.h.b16 %v3248
        %v3951 = vunpack.c.l.b16 %v3249
        %v3952 = vunpack.c.h.b16 %v3249
        %v3953 = vunpack.c.l.b16 %v3250
        %v3954 = vunpack.c.h.b16 %v3250
        %v3955 = vunpack.c.l.b16 %v3251
        %v3956 = vpack.c.b16 %v3515, %v3508
        %v3957 = vpack.c.b16 %v3516, %v3509
        %v3958 = vpack.c.b16 %v3517, %v3510
        %v3959 = vpack.c.b16 %v3518, %v3511
        %v3960 = vpack.c.b16 %v3519, %v3512
        %v3961 = vpack.c.b16 %v3520, %v3513
        %v3962 = vpack.c.b16 %v3521, %v3514
        %v3963 = vpack.c.b16 %v3529, %v3522
        %v3964 = vpack.c.b16 %v3530, %v3523
        %v3965 = vpack.c.b16 %v3531, %v3524
        %v3966 = vpack.c.b16 %v3532, %v3525
        %v3967 = vpack.c.b16 %v3533, %v3526
        %v3968 = vpack.c.b16 %v3534, %v3527
        %v3969 = vpack.c.b16 %v3535, %v3528
        %v3970 = vpack.c.b16 %v3543, %v3536
        %v3971 = vpack.c.b16 %v3544, %v3537
        %v3972 = vpack.c.b16 %v3545, %v3538
        %v3973 = vpack.c.b16 %v3546, %v3539
        %v3974 = vpack.c.b16 %v3547, %v3540
        %v3975 = vpack.c.b16 %v3548, %v3541
        %v3976 = vpack.c.b16 %v3549, %v3542
        %v3977 = vpack.c.b16 %v3557, %v3550
        %v3978 = vpack.c.b16 %v3558, %v3551
        %v3979 = vpack.c.b16 %v3559, %v3552
        %v3980 = vpack.c.b16 %v3560, %v3553
        %v3981 = vpack.c.b16 %v3561, %v3554
        %v3982 = vpack.c.b16 %v3562, %v3555
        %v3983 = vpack.c.b16 %v3563, %v3556
        %v3984 = vpack.c.b16 %v3571, %v3564
        %v3985 = vpack.c.b16 %v3572, %v3565
        %v3986 = vpack.c.b16 %v3573, %v3566
        %v3987 = vpack.c.b16 %v3574, %v3567
        %v3988 = vpack.c.b16 %v3575, %v3568
        %v3989 = vpack.c.b16 %v3576, %v3569
        %v3990 = vpack.c.b16 %v3577, %v3570
        %v3991 = vpack.c.b16 %v3585, %v3578
        %v3992 = vpack.c.b16 %v3586, %v3579
        %v3993 = vpack.c.b16 %v3587, %v3580
        %v3994 = vpack.c.b16 %v3588, %v3581
        %v3995 = vpack.c.b16 %v3589, %v3582
        %v3996 = vpack.c.b16 %v3590, %v3583
        %v3997 = vpack.c.b16 %v3591, %v3584
        %v3998 = vpack.c.b16 %v3599, %v3592
        %v3999 = vpack.c.b16 %v3600, %v3593
        %v4000 = vpack.c.b16 %v3601, %v3594
        %v4001 = vpack.c.b16 %v3602, %v3595
        %v4002 = vpack.c.b16 %v3603, %v3596
        %v4003 = vpack.c.b16 %v3604, %v3597
        %v4004 = vpack.c.b16 %v3605, %v3598
        %v4005 = vpack.c.b16 %v3613, %v3606
        %v4006 = vpack.c.b16 %v3614, %v3607
        %v4007 = vpack.c.b16 %v3615, %v3608
        %v4008 = vpack.c.b16 %v3616, %v3609
        %v4009 = vpack.c.b16 %v3617, %v3610
        %v4010 = vpack.c.b16 %v3618, %v3611
        %v4011 = vpack.c.b16 %v3619, %v3612
        %v4012 = vpack.c.b16 %v3627, %v3620
        %v4013 = vpack.c.b16 %v3628, %v3621
        %v4014 = vpack.c.b16 %v3629, %v3622
        %v4015 = vpack.c.b16 %v3630, %v3623
        %v4016 = vpack.c.b16 %v3631, %v3624
        %v4017 = vpack.c.b16 %v3632, %v3625
        %v4018 = vpack.c.b16 %v3633, %v3626
        %v4019 = vpack.c.b16 %v3641, %v3634
        %v4020 = vpack.c.b16 %v3642, %v3635
        %v4021 = vpack.c.b16 %v3643, %v3636
        %v4022 = vpack.c.b16 %v3644, %v3637
        %v4023 = vpack.c.b16 %v3645, %v3638
        %v4024 = vpack.c.b16 %v3646, %v3639
        %v4025 = vpack.c.b16 %v3647, %v3640
        %v4026 = vpack.c.b16 %v3655, %v3648
        %v4027 = vpack.c.b16 %v3656, %v3649
        %v4028 = vpack.c.b16 %v3657, %v3650
        %v4029 = vpack.c.b16 %v3658, %v3651
        %v4030 = vpack.c.b16 %v3659, %v3652
        %v4031 = vpack.c.b16 %v3660, %v3653
        %v4032 = vpack.c.b16 %v3661, %v3654
        %v4033 = vpack.c.b16 %v3669, %v3662
        %v4034 = vpack.c.b16 %v3670, %v3663
        %v4035 = vpack.c.b16 %v3671, %v3664
        %v4036 = vpack.c.b16 %v3672, %v3665
        %v4037 = vpack.c.b16 %v3673, %v3666
        %v4038 = vpack.c.b16 %v3674, %v3667
        %v4039 = vpack.c.b16 %v3675, %v3668
        %v4040 = vpack.c.b16 %v3683, %v3676
        %v4041 = vpack.c.b16 %v3684, %v3677
        %v4042 = vpack.c.b16 %v3685, %v3678
        %v4043 = vpack.c.b16 %v3686, %v3679
        %v4044 = vpack.c.b16 %v3687, %v3680
        %v4045 = vpack.c.b16 %v3688, %v3681
        %v4046 = vpack.c.b16 %v3689, %v3682
        %v4047 = vpack.c.b16 %v3697, %v3690
        %v4048 = vpack.c.b16 %v3698, %v3691
        %v4049 = vpack.c.b16 %v3699, %v3692
        %v4050 = vpack.c.b16 %v3700, %v3693
        %v4051 = vpack.c.b16 %v3701, %v3694
        %v4052 = vpack.c.b16 %v3702, %v3695
        %v4053 = vpack.c.b16 %v3703, %v3696
        %v4054 = vpack.c.b16 %v3711, %v3704
        %v4055 = vpack.c.b16 %v3712, %v3705
        %v4056 = vpack.c.b16 %v3713, %v3706
        %v4057 = vpack.c.b16 %v3714, %v3707
        %v4058 = vpack.c.b16 %v3715, %v3708
        %v4059 = vpack.c.b16 %v3716, %v3709
        %v4060 = vpack.c.b16 %v3717, %v3710
        %v4061 = vpack.c.b16 %v3725, %v3718
        %v4062 = vpack.c.b16 %v3726, %v3719
        %v4063 = vpack.c.b16 %v3727, %v3720
        %v4064 = vpack.c.b16 %v3728, %v3721
        %v4065 = vpack.c.b16 %v3729, %v3722
        %v4066 = vpack.c.b16 %v3730, %v3723
        %v4067 = vpack.c.b16 %v3731, %v3724
        %v4068 = vpack.c.b16 %v3739, %v3732
        %v4069 = vpack.c.b16 %v3740, %v3733
        %v4070 = vpack.c.b16 %v3741, %v3734
        %v4071 = vpack.c.b16 %v3742, %v3735
        %v4072 = vpack.c.b16 %v3743, %v3736
        %v4073 = vpack.c.b16 %v3744, %v3737
        %v4074 = vpack.c.b16 %v3745, %v3738
        %v4075 = vpack.c.b16 %v3753, %v3746
        %v4076 = vpack.c.b16 %v3754, %v3747
        %v4077 = vpack.c.b16 %v3755, %v3748
        %v4078 = vpack.c.b16 %v3756, %v3749
        %v4079 = vpack.c.b16 %v3757, %v3750
        %v4080 = vpack.c.b16 %v3758, %v3751
        %v4081 = vpack.c.b16 %v3759, %v3752
        %v4082 = vpack.c.b16 %v3767, %v3760
        %v4083 = vpack.c.b16 %v3768, %v3761
        %v4084 = vpack.c.b16 %v3769, %v3762
        %v4085 = vpack.c.b16 %v3770, %v3763
        %v4086 = vpack.c.b16 %v3771, %v3764
        %v4087 = vpack.c.b16 %v3772, %v3765
        %v4088 = vpack.c.b16 %v3773, %v3766
        %v4089 = vpack.c.b16 %v3781, %v3774
        %v4090 = vpack.c.b16 %v3782, %v3775
        %v4091 = vpack.c.b16 %v3783, %v3776
        %v4092 = vpack.c.b16 %v3784, %v3777
        %v4093 = vpack.c.b16 %v3785, %v3778
        %v4094 = vpack.c.b16 %v3786, %v3779
        %v4095 = vpack.c.b16 %v3787, %v3780
        %v4096 = vpack.c.b16 %v3795, %v3788
        %v4097 = vpack.c.b16 %v3796, %v3789
        %v4098 = vpack.c.b16 %v3797, %v3790
        %v4099 = vpack.c.b16 %v3798, %v3791
        %v4100 = vpack.c.b16 %v3799, %v3792
        %v4101 = vpack.c.b16 %v3800, %v3793
        %v4102 = vpack.c.b16 %v3801, %v3794
        %v4103 = vpack.c.b16 %v3809, %v3802
        %v4104 = vpack.c.b16 %v3810, %v3803
        %v4105 = vpack.c.b16 %v3811, %v3804
        %v4106 = vpack.c.b16 %v3812, %v3805
        %v4107 = vpack.c.b16 %v3813, %v3806
        %v4108 = vpack.c.b16 %v3814, %v3807
        %v4109 = vpack.c.b16 %v3815, %v3808
        %v4110 = vpack.c.b16 %v3823, %v3816
        %v4111 = vpack.c.b16 %v3824, %v3817
        %v4112 = vpack.c.b16 %v3825, %v3818
        %v4113 = vpack.c.b16 %v3826, %v3819
        %v4114 = vpack.c.b16 %v3827, %v3820
        %v4115 = vpack.c.b16 %v3828, %v3821
        %v4116 = vpack.c.b16 %v3829, %v3822
        %v4117 = vpack.c.b16 %v3837, %v3830
        %v4118 = vpack.c.b16 %v3838, %v3831
        %v4119 = vpack.c.b16 %v3839, %v3832
        %v4120 = vpack.c.b16 %v3840, %v3833
        %v4121 = vpack.c.b16 %v3841, %v3834
        %v4122 = vpack.c.b16 %v3842, %v3835
        %v4123 = vpack.c.b16 %v3843, %v3836
        %v4124 = vpack.c.b16 %v3851, %v3844
        %v4125 = vpack.c.b16 %v3852, %v3845
        %v4126 = vpack.c.b16 %v3853, %v3846
        %v4127 = vpack.c.b16 %v3854, %v3847
        %v4128 = vpack.c.b16 %v3855, %v3848
        %v4129 = vpack.c.b16 %v3856, %v3849
        %v4130 = vpack.c.b16 %v3857, %v3850
        %v4131 = vpack.c.b16 %v3865, %v3858
        %v4132 = vpack.c.b16 %v3866, %v3859
        %v4133 = vpack.c.b16 %v3867, %v3860
        %v4134 = vpack.c.b16 %v3868, %v3861
        %v4135 = vpack.c.b16 %v3869, %v3862
        %v4136 = vpack.c.b16 %v3870, %v3863
        %v4137 = vpack.c.b16 %v3871, %v3864
        %v4138 = vpack.c.b16 %v3879, %v3872
        %v4139 = vpack.c.b16 %v3880, %v3873
        %v4140 = vpack.c.b16 %v3881, %v3874
        %v4141 = vpack.c.b16 %v3882, %v3875
        %v4142 = vpack.c.b16 %v3883, %v3876
        %v4143 = vpack.c.b16 %v3884, %v3877
        %v4144 = vpack.c.b16 %v3885, %v3878
        %v4145 = vpack.c.b16 %v3893, %v3886
        %v4146 = vpack.c.b16 %v3894, %v3887
        %v4147 = vpack.c.b16 %v3895, %v3888
        %v4148 = vpack.c.b16 %v3896, %v3889
        %v4149 = vpack.c.b16 %v3897, %v3890
        %v4150 = vpack.c.b16 %v3898, %v3891
        %v4151 = vpack.c.b16 %v3899, %v3892
        %v4152 = vpack.c.b16 %v3907, %v3900
        %v4153 = vpack.c.b16 %v3908, %v3901
        %v4154 = vpack.c.b16 %v3909, %v3902
        %v4155 = vpack.c.b16 %v3910, %v3903
        %v4156 = vpack.c.b16 %v3911, %v3904
        %v4157 = vpack.c.b16 %v3912, %v3905
        %v4158 = vpack.c.b16 %v3913, %v3906
        %v4159 = vpack.c.b16 %v3921, %v3914
        %v4160 = vpack.c.b16 %v3922, %v3915
        %v4161 = vpack.c.b16 %v3923, %v3916
        %v4162 = vpack.c.b16 %v3924, %v3917
        %v4163 = vpack.c.b16 %v3925, %v3918
        %v4164 = vpack.c.b16 %v3926, %v3919
        %v4165 = vpack.c.b16 %v3927, %v3920
        %v4166 = vpack.c.b16 %v3935, %v3928
        %v4167 = vpack.c.b16 %v3936, %v3929
        %v4168 = vpack.c.b16 %v3937, %v3930
        %v4169 = vpack.c.b16 %v3938, %v3931
        %v4170 = vpack.c.b16 %v3939, %v3932
        %v4171 = vpack.c.b16 %v3940, %v3933
        %v4172 = vpack.c.b16 %v3941, %v3934
        %v4173 = vpack.c.b16 %v3949, %v3942
        %v4174 = vpack.c.b16 %v3950, %v3943
        %v4175 = vpack.c.b16 %v3951, %v3944
        %v4176 = vpack.c.b16 %v3952, %v3945
        %v4177 = vpack.c.b16 %v3953, %v3946
        %v4178 = vpack.c.b16 %v3954, %v3947
        %v4179 = vpack.c.b16 %v3955, %v3948
        %4404 = vmatpush.bf16.msra.mxu0 %v4005
        %4405 = vmatpush.bf16.msra.mxu0 %v3998
        %4406 = vmatpush.bf16.msra.mxu0 %v3991
        %4407 = vmatpush.bf16.msra.mxu0 %v3984
        %4408 = vmatpush.bf16.msra.mxu0 %v3977
        %4409 = vmatpush.bf16.msra.mxu0 %v3970
        %4410 = vmatpush.bf16.msra.mxu0 %v3963
        %4411 = vmatpush.bf16.msra.mxu0 %v3956
        %4412 = vmatmul.bf16.gmra.mxu0 %v2985
        %v4413 = vpop.f32.mrf.mxu0
        %v4414 = vadd.f32 0.0, %v4413
        %v4415 = vpop.f32.mrf.mxu0
        %4416 = vdwg.mxu0
        %4417 = vmatpush.bf16.msra.mxu0 %v4061
        %4418 = vmatpush.bf16.msra.mxu0 %v4054
        %4419 = vmatpush.bf16.msra.mxu0 %v4047
        %4420 = vmatpush.bf16.msra.mxu0 %v4040
        %4421 = vmatpush.bf16.msra.mxu0 %v4033
        %4422 = vmatpush.bf16.msra.mxu0 %v4026
        %4423 = vmatpush.bf16.msra.mxu0 %v4019
        %4424 = vmatpush.bf16.msra.mxu0 %v4012
        %4425 = vmatmul.bf16.gmra.mxu0 %v2986
        %v4426 = vpop.f32.mrf.mxu0
        %v4427 = vadd.f32 %v4414, %v4426
        %v4428 = vpop.f32.mrf.mxu0
        %4429 = vdwg.mxu0
        %4430 = vmatpush.bf16.msra.mxu0 %v4117
        %4431 = vmatpush.bf16.msra.mxu0 %v4110
        %4432 = vmatpush.bf16.msra.mxu0 %v4103
        %4433 = vmatpush.bf16.msra.mxu0 %v4096
        %4434 = vmatpush.bf16.msra.mxu0 %v4089
        %4435 = vmatpush.bf16.msra.mxu0 %v4082
        %4436 = vmatpush.bf16.msra.mxu0 %v4075
        %4437 = vmatpush.bf16.msra.mxu0 %v4068
        %4438 = vmatmul.bf16.gmra.mxu0 %v2987
        %v4439 = vpop.f32.mrf.mxu0
        %v4440 = vadd.f32 %v4427, %v4439
        %v4441 = vpop.f32.mrf.mxu0
        %4442 = vdwg.mxu0
        %4443 = vmatpush.bf16.msra.mxu0 %v4173
        %4444 = vmatpush.bf16.msra.mxu0 %v4166
        %4445 = vmatpush.bf16.msra.mxu0 %v4159
        %4446 = vmatpush.bf16.msra.mxu0 %v4152
        %4447 = vmatpush.bf16.msra.mxu0 %v4145
        %4448 = vmatpush.bf16.msra.mxu0 %v4138
        %4449 = vmatpush.bf16.msra.mxu0 %v4131
        %4450 = vmatpush.bf16.msra.mxu0 %v4124
        %4451 = vmatmul.bf16.gmra.mxu0 %v2988
        %v4452 = vpop.f32.mrf.mxu0
        %v4453 = vadd.f32 %v4440, %v4452
        %v4454 = vpop.f32.mrf.mxu0
        %4455 = vdwg.mxu0
        %4456 = vmatpush.bf16.msra.mxu0 %v4006
        %4457 = vmatpush.bf16.msra.mxu0 %v3999
        %4458 = vmatpush.bf16.msra.mxu0 %v3992
        %4459 = vmatpush.bf16.msra.mxu0 %v3985
        %4460 = vmatpush.bf16.msra.mxu0 %v3978
        %4461 = vmatpush.bf16.msra.mxu0 %v3971
        %4462 = vmatpush.bf16.msra.mxu0 %v3964
        %4463 = vmatpush.bf16.msra.mxu0 %v3957
        %4464 = vmatmul.bf16.gmra.mxu0 %v2985
        %v4465 = vpop.f32.mrf.mxu0
        %v4466 = vadd.f32 0.0, %v4465
        %v4467 = vpop.f32.mrf.mxu0
        %4468 = vdwg.mxu0
        %4469 = vmatpush.bf16.msra.mxu0 %v4062
        %4470 = vmatpush.bf16.msra.mxu0 %v4055
        %4471 = vmatpush.bf16.msra.mxu0 %v4048
        %4472 = vmatpush.bf16.msra.mxu0 %v4041
        %4473 = vmatpush.bf16.msra.mxu0 %v4034
        %4474 = vmatpush.bf16.msra.mxu0 %v4027
        %4475 = vmatpush.bf16.msra.mxu0 %v4020
        %4476 = vmatpush.bf16.msra.mxu0 %v4013
        %4477 = vmatmul.bf16.gmra.mxu0 %v2986
        %v4478 = vpop.f32.mrf.mxu0
        %v4479 = vadd.f32 %v4466, %v4478
        %v4480 = vpop.f32.mrf.mxu0
        %4481 = vdwg.mxu0
        %4482 = vmatpush.bf16.msra.mxu0 %v4118
        %4483 = vmatpush.bf16.msra.mxu0 %v4111
        %4484 = vmatpush.bf16.msra.mxu0 %v4104
        %4485 = vmatpush.bf16.msra.mxu0 %v4097
        %4486 = vmatpush.bf16.msra.mxu0 %v4090
        %4487 = vmatpush.bf16.msra.mxu0 %v4083
        %4488 = vmatpush.bf16.msra.mxu0 %v4076
        %4489 = vmatpush.bf16.msra.mxu0 %v4069
        %4490 = vmatmul.bf16.gmra.mxu0 %v2987
        %v4491 = vpop.f32.mrf.mxu0
        %v4492 = vadd.f32 %v4479, %v4491
        %v4493 = vpop.f32.mrf.mxu0
        %4494 = vdwg.mxu0
        %4495 = vmatpush.bf16.msra.mxu0 %v4174
        %4496 = vmatpush.bf16.msra.mxu0 %v4167
        %4497 = vmatpush.bf16.msra.mxu0 %v4160
        %4498 = vmatpush.bf16.msra.mxu0 %v4153
        %4499 = vmatpush.bf16.msra.mxu0 %v4146
        %4500 = vmatpush.bf16.msra.mxu0 %v4139
        %4501 = vmatpush.bf16.msra.mxu0 %v4132
        %4502 = vmatpush.bf16.msra.mxu0 %v4125
        %4503 = vmatmul.bf16.gmra.mxu0 %v2988
        %v4504 = vpop.f32.mrf.mxu0
        %v4505 = vadd.f32 %v4492, %v4504
        %v4506 = vpop.f32.mrf.mxu0
        %4507 = vdwg.mxu0
        %4508 = vmatpush.bf16.msra.mxu0 %v4007
        %4509 = vmatpush.bf16.msra.mxu0 %v4000
        %4510 = vmatpush.bf16.msra.mxu0 %v3993
        %4511 = vmatpush.bf16.msra.mxu0 %v3986
        %4512 = vmatpush.bf16.msra.mxu0 %v3979
        %4513 = vmatpush.bf16.msra.mxu0 %v3972
        %4514 = vmatpush.bf16.msra.mxu0 %v3965
        %4515 = vmatpush.bf16.msra.mxu0 %v3958
        %4516 = vmatmul.bf16.gmra.mxu0 %v2985
        %v4517 = vpop.f32.mrf.mxu0
        %v4518 = vadd.f32 0.0, %v4517
        %v4519 = vpop.f32.mrf.mxu0
        %4520 = vdwg.mxu0
        %4521 = vmatpush.bf16.msra.mxu0 %v4063
        %4522 = vmatpush.bf16.msra.mxu0 %v4056
        %4523 = vmatpush.bf16.msra.mxu0 %v4049
        %4524 = vmatpush.bf16.msra.mxu0 %v4042
        %4525 = vmatpush.bf16.msra.mxu0 %v4035
        %4526 = vmatpush.bf16.msra.mxu0 %v4028
        %4527 = vmatpush.bf16.msra.mxu0 %v4021
        %4528 = vmatpush.bf16.msra.mxu0 %v4014
        %4529 = vmatmul.bf16.gmra.mxu0 %v2986
        %v4530 = vpop.f32.mrf.mxu0
        %v4531 = vadd.f32 %v4518, %v4530
        %v4532 = vpop.f32.mrf.mxu0
        %4533 = vdwg.mxu0
        %4534 = vmatpush.bf16.msra.mxu0 %v4119
        %4535 = vmatpush.bf16.msra.mxu0 %v4112
        %4536 = vmatpush.bf16.msra.mxu0 %v4105
        %4537 = vmatpush.bf16.msra.mxu0 %v4098
        %4538 = vmatpush.bf16.msra.mxu0 %v4091
        %4539 = vmatpush.bf16.msra.mxu0 %v4084
        %4540 = vmatpush.bf16.msra.mxu0 %v4077
        %4541 = vmatpush.bf16.msra.mxu0 %v4070
        %4542 = vmatmul.bf16.gmra.mxu0 %v2987
        %v4543 = vpop.f32.mrf.mxu0
        %v4544 = vadd.f32 %v4531, %v4543
        %v4545 = vpop.f32.mrf.mxu0
        %4546 = vdwg.mxu0
        %4547 = vmatpush.bf16.msra.mxu0 %v4175
        %4548 = vmatpush.bf16.msra.mxu0 %v4168
        %4549 = vmatpush.bf16.msra.mxu0 %v4161
        %4550 = vmatpush.bf16.msra.mxu0 %v4154
        %4551 = vmatpush.bf16.msra.mxu0 %v4147
        %4552 = vmatpush.bf16.msra.mxu0 %v4140
        %4553 = vmatpush.bf16.msra.mxu0 %v4133
        %4554 = vmatpush.bf16.msra.mxu0 %v4126
        %4555 = vmatmul.bf16.gmra.mxu0 %v2988
        %v4556 = vpop.f32.mrf.mxu0
        %v4557 = vadd.f32 %v4544, %v4556
        %v4558 = vpop.f32.mrf.mxu0
        %4559 = vdwg.mxu0
        %4560 = vmatpush.bf16.msra.mxu0 %v4008
        %4561 = vmatpush.bf16.msra.mxu0 %v4001
        %4562 = vmatpush.bf16.msra.mxu0 %v3994
        %4563 = vmatpush.bf16.msra.mxu0 %v3987
        %4564 = vmatpush.bf16.msra.mxu0 %v3980
        %4565 = vmatpush.bf16.msra.mxu0 %v3973
        %4566 = vmatpush.bf16.msra.mxu0 %v3966
        %4567 = vmatpush.bf16.msra.mxu0 %v3959
        %4568 = vmatmul.bf16.gmra.mxu0 %v2985
        %v4569 = vpop.f32.mrf.mxu0
        %v4570 = vadd.f32 0.0, %v4569
        %v4571 = vpop.f32.mrf.mxu0
        %4572 = vdwg.mxu0
        %4573 = vmatpush.bf16.msra.mxu0 %v4064
        %4574 = vmatpush.bf16.msra.mxu0 %v4057
        %4575 = vmatpush.bf16.msra.mxu0 %v4050
        %4576 = vmatpush.bf16.msra.mxu0 %v4043
        %4577 = vmatpush.bf16.msra.mxu0 %v4036
        %4578 = vmatpush.bf16.msra.mxu0 %v4029
        %4579 = vmatpush.bf16.msra.mxu0 %v4022
        %4580 = vmatpush.bf16.msra.mxu0 %v4015
        %4581 = vmatmul.bf16.gmra.mxu0 %v2986
        %v4582 = vpop.f32.mrf.mxu0
        %v4583 = vadd.f32 %v4570, %v4582
        %v4584 = vpop.f32.mrf.mxu0
        %4585 = vdwg.mxu0
        %4586 = vmatpush.bf16.msra.mxu0 %v4120
        %4587 = vmatpush.bf16.msra.mxu0 %v4113
        %4588 = vmatpush.bf16.msra.mxu0 %v4106
        %4589 = vmatpush.bf16.msra.mxu0 %v4099
        %4590 = vmatpush.bf16.msra.mxu0 %v4092
        %4591 = vmatpush.bf16.msra.mxu0 %v4085
        %4592 = vmatpush.bf16.msra.mxu0 %v4078
        %4593 = vmatpush.bf16.msra.mxu0 %v4071
        %4594 = vmatmul.bf16.gmra.mxu0 %v2987
        %v4595 = vpop.f32.mrf.mxu0
        %v4596 = vadd.f32 %v4583, %v4595
        %v4597 = vpop.f32.mrf.mxu0
        %4598 = vdwg.mxu0
        %4599 = vmatpush.bf16.msra.mxu0 %v4176
        %4600 = vmatpush.bf16.msra.mxu0 %v4169
        %4601 = vmatpush.bf16.msra.mxu0 %v4162
        %4602 = vmatpush.bf16.msra.mxu0 %v4155
        %4603 = vmatpush.bf16.msra.mxu0 %v4148
        %4604 = vmatpush.bf16.msra.mxu0 %v4141
        %4605 = vmatpush.bf16.msra.mxu0 %v4134
        %4606 = vmatpush.bf16.msra.mxu0 %v4127
        %4607 = vmatmul.bf16.gmra.mxu0 %v2988
        %v4608 = vpop.f32.mrf.mxu0
        %v4609 = vadd.f32 %v4596, %v4608
        %v4610 = vpop.f32.mrf.mxu0
        %4611 = vdwg.mxu0
        %4612 = vmatpush.bf16.msra.mxu0 %v4009
        %4613 = vmatpush.bf16.msra.mxu0 %v4002
        %4614 = vmatpush.bf16.msra.mxu0 %v3995
        %4615 = vmatpush.bf16.msra.mxu0 %v3988
        %4616 = vmatpush.bf16.msra.mxu0 %v3981
        %4617 = vmatpush.bf16.msra.mxu0 %v3974
        %4618 = vmatpush.bf16.msra.mxu0 %v3967
        %4619 = vmatpush.bf16.msra.mxu0 %v3960
        %4620 = vmatmul.bf16.gmra.mxu0 %v2985
        %v4621 = vpop.f32.mrf.mxu0
        %v4622 = vadd.f32 0.0, %v4621
        %v4623 = vpop.f32.mrf.mxu0
        %4624 = vdwg.mxu0
        %4625 = vmatpush.bf16.msra.mxu0 %v4065
        %4626 = vmatpush.bf16.msra.mxu0 %v4058
        %4627 = vmatpush.bf16.msra.mxu0 %v4051
        %4628 = vmatpush.bf16.msra.mxu0 %v4044
        %4629 = vmatpush.bf16.msra.mxu0 %v4037
        %4630 = vmatpush.bf16.msra.mxu0 %v4030
        %4631 = vmatpush.bf16.msra.mxu0 %v4023
        %4632 = vmatpush.bf16.msra.mxu0 %v4016
        %4633 = vmatmul.bf16.gmra.mxu0 %v2986
        %v4634 = vpop.f32.mrf.mxu0
        %v4635 = vadd.f32 %v4622, %v4634
        %v4636 = vpop.f32.mrf.mxu0
        %4637 = vdwg.mxu0
        %4638 = vmatpush.bf16.msra.mxu0 %v4121
        %4639 = vmatpush.bf16.msra.mxu0 %v4114
        %4640 = vmatpush.bf16.msra.mxu0 %v4107
        %4641 = vmatpush.bf16.msra.mxu0 %v4100
        %4642 = vmatpush.bf16.msra.mxu0 %v4093
        %4643 = vmatpush.bf16.msra.mxu0 %v4086
        %4644 = vmatpush.bf16.msra.mxu0 %v4079
        %4645 = vmatpush.bf16.msra.mxu0 %v4072
        %4646 = vmatmul.bf16.gmra.mxu0 %v2987
        %v4647 = vpop.f32.mrf.mxu0
        %v4648 = vadd.f32 %v4635, %v4647
        %v4649 = vpop.f32.mrf.mxu0
        %4650 = vdwg.mxu0
        %4651 = vmatpush.bf16.msra.mxu0 %v4177
        %4652 = vmatpush.bf16.msra.mxu0 %v4170
        %4653 = vmatpush.bf16.msra.mxu0 %v4163
        %4654 = vmatpush.bf16.msra.mxu0 %v4156
        %4655 = vmatpush.bf16.msra.mxu0 %v4149
        %4656 = vmatpush.bf16.msra.mxu0 %v4142
        %4657 = vmatpush.bf16.msra.mxu0 %v4135
        %4658 = vmatpush.bf16.msra.mxu0 %v4128
        %4659 = vmatmul.bf16.gmra.mxu0 %v2988
        %v4660 = vpop.f32.mrf.mxu0
        %v4661 = vadd.f32 %v4648, %v4660
        %v4662 = vpop.f32.mrf.mxu0
        %4663 = vdwg.mxu0
        %4664 = vmatpush.bf16.msra.mxu0 %v4010
        %4665 = vmatpush.bf16.msra.mxu0 %v4003
        %4666 = vmatpush.bf16.msra.mxu0 %v3996
        %4667 = vmatpush.bf16.msra.mxu0 %v3989
        %4668 = vmatpush.bf16.msra.mxu0 %v3982
        %4669 = vmatpush.bf16.msra.mxu0 %v3975
        %4670 = vmatpush.bf16.msra.mxu0 %v3968
        %4671 = vmatpush.bf16.msra.mxu0 %v3961
        %4672 = vmatmul.bf16.gmra.mxu0 %v2985
        %v4673 = vpop.f32.mrf.mxu0
        %v4674 = vadd.f32 0.0, %v4673
        %v4675 = vpop.f32.mrf.mxu0
        %4676 = vdwg.mxu0
        %4677 = vmatpush.bf16.msra.mxu0 %v4066
        %4678 = vmatpush.bf16.msra.mxu0 %v4059
        %4679 = vmatpush.bf16.msra.mxu0 %v4052
        %4680 = vmatpush.bf16.msra.mxu0 %v4045
        %4681 = vmatpush.bf16.msra.mxu0 %v4038
        %4682 = vmatpush.bf16.msra.mxu0 %v4031
        %4683 = vmatpush.bf16.msra.mxu0 %v4024
        %4684 = vmatpush.bf16.msra.mxu0 %v4017
        %4685 = vmatmul.bf16.gmra.mxu0 %v2986
        %v4686 = vpop.f32.mrf.mxu0
        %v4687 = vadd.f32 %v4674, %v4686
        %v4688 = vpop.f32.mrf.mxu0
        %4689 = vdwg.mxu0
        %4690 = vmatpush.bf16.msra.mxu0 %v4122
        %4691 = vmatpush.bf16.msra.mxu0 %v4115
        %4692 = vmatpush.bf16.msra.mxu0 %v4108
        %4693 = vmatpush.bf16.msra.mxu0 %v4101
        %4694 = vmatpush.bf16.msra.mxu0 %v4094
        %4695 = vmatpush.bf16.msra.mxu0 %v4087
        %4696 = vmatpush.bf16.msra.mxu0 %v4080
        %4697 = vmatpush.bf16.msra.mxu0 %v4073
        %4698 = vmatmul.bf16.gmra.mxu0 %v2987
        %v4699 = vpop.f32.mrf.mxu0
        %v4700 = vadd.f32 %v4687, %v4699
        %v4701 = vpop.f32.mrf.mxu0
        %4702 = vdwg.mxu0
        %4703 = vmatpush.bf16.msra.mxu0 %v4178
        %4704 = vmatpush.bf16.msra.mxu0 %v4171
        %4705 = vmatpush.bf16.msra.mxu0 %v4164
        %4706 = vmatpush.bf16.msra.mxu0 %v4157
        %4707 = vmatpush.bf16.msra.mxu0 %v4150
        %4708 = vmatpush.bf16.msra.mxu0 %v4143
        %4709 = vmatpush.bf16.msra.mxu0 %v4136
        %4710 = vmatpush.bf16.msra.mxu0 %v4129
        %4711 = vmatmul.bf16.gmra.mxu0 %v2988
        %v4712 = vpop.f32.mrf.mxu0
        %v4713 = vadd.f32 %v4700, %v4712
        %v4714 = vpop.f32.mrf.mxu0
        %4715 = vdwg.mxu0
        %4716 = vmatpush.bf16.msra.mxu0 %v4011
        %4717 = vmatpush.bf16.msra.mxu0 %v4004
        %4718 = vmatpush.bf16.msra.mxu0 %v3997
        %4719 = vmatpush.bf16.msra.mxu0 %v3990
        %4720 = vmatpush.bf16.msra.mxu0 %v3983
        %4721 = vmatpush.bf16.msra.mxu0 %v3976
        %4722 = vmatpush.bf16.msra.mxu0 %v3969
        %4723 = vmatpush.bf16.msra.mxu0 %v3962
        %4724 = vmatmul.bf16.gmra.mxu0 %v2985
        %v4725 = vpop.f32.mrf.mxu0
        %v4726 = vadd.f32 0.0, %v4725
        %v4727 = vpop.f32.mrf.mxu0
        %4728 = vdwg.mxu0
        %4729 = vmatpush.bf16.msra.mxu0 %v4067
        %4730 = vmatpush.bf16.msra.mxu0 %v4060
        %4731 = vmatpush.bf16.msra.mxu0 %v4053
        %4732 = vmatpush.bf16.msra.mxu0 %v4046
        %4733 = vmatpush.bf16.msra.mxu0 %v4039
        %4734 = vmatpush.bf16.msra.mxu0 %v4032
        %4735 = vmatpush.bf16.msra.mxu0 %v4025
        %4736 = vmatpush.bf16.msra.mxu0 %v4018
        %4737 = vmatmul.bf16.gmra.mxu0 %v2986
        %v4738 = vpop.f32.mrf.mxu0
        %v4739 = vadd.f32 %v4726, %v4738
        %v4740 = vpop.f32.mrf.mxu0
        %4741 = vdwg.mxu0
        %4742 = vmatpush.bf16.msra.mxu0 %v4123
        %4743 = vmatpush.bf16.msra.mxu0 %v4116
        %4744 = vmatpush.bf16.msra.mxu0 %v4109
        %4745 = vmatpush.bf16.msra.mxu0 %v4102
        %4746 = vmatpush.bf16.msra.mxu0 %v4095
        %4747 = vmatpush.bf16.msra.mxu0 %v4088
        %4748 = vmatpush.bf16.msra.mxu0 %v4081
        %4749 = vmatpush.bf16.msra.mxu0 %v4074
        %4750 = vmatmul.bf16.gmra.mxu0 %v2987
        %v4751 = vpop.f32.mrf.mxu0
        %v4752 = vadd.f32 %v4739, %v4751
        %v4753 = vpop.f32.mrf.mxu0
        %4754 = vdwg.mxu0
        %4755 = vmatpush.bf16.msra.mxu0 %v4179
        %4756 = vmatpush.bf16.msra.mxu0 %v4172
        %4757 = vmatpush.bf16.msra.mxu0 %v4165
        %4758 = vmatpush.bf16.msra.mxu0 %v4158
        %4759 = vmatpush.bf16.msra.mxu0 %v4151
        %4760 = vmatpush.bf16.msra.mxu0 %v4144
        %4761 = vmatpush.bf16.msra.mxu0 %v4137
        %4762 = vmatpush.bf16.msra.mxu0 %v4130
        %4763 = vmatmul.bf16.gmra.mxu0 %v2988
        %v4764 = vpop.f32.mrf.mxu0
        %v4765 = vadd.f32 %v4752, %v4764
        %v4766 = vpop.f32.mrf.mxu0
        %4767 = vdwg.mxu0
        %v4768 = vadd.f32 %v2989, %v4453
        %v4769 = vadd.f32 %v2990, %v4505
        %v4770 = vadd.f32 %v2991, %v4557
        %v4771 = vadd.f32 %v2992, %v4609
        %v4772 = vadd.f32 %v2993, %v4661
        %v4773 = vadd.f32 %v2994, %v4713
        %v4774 = vadd.f32 %v2995, %v4765
        %4775 = vst [vmem:[#allocation3] sm:$0xff] %v4768
        %4776 = vst [vmem:[#allocation3 + $0x8] sm:$0xff] %v4769
        %4777 = vst [vmem:[#allocation3 + $0x10] sm:$0xff] %v4770
        %4778 = vst [vmem:[#allocation3 + $0x18] sm:$0xff] %v4771
        %4779 = vst [vmem:[#allocation3 + $0x20] sm:$0xff] %v4772
        %4780 = vst [vmem:[#allocation3 + $0x28] sm:$0xff] %v4773
        %4781 = vst [vmem:[#allocation3 + $0x30] sm:$0xff] %v4774
        %p4782 = scmp.eq.s32.totalorder %s32, 3
        // Predicated region
        $region81: #{tpu_custom_call.1} parent=47 // pred_check
          %p4783 = pneg %p4782
        $region82: #{tpu_custom_call.1} parent=47 // pred_check_branch
          %4785 = sbr.rel (%p4783) target = $region84
        $region83: #{tpu_custom_call.1} parent=47 // pred_region
          %v4786 = vld [vmem:[#allocation3] sm:$0xff]
          %v4787 = vld [vmem:[#allocation3 + $0x8] sm:$0xff]
          %v4788 = vld [vmem:[#allocation3 + $0x10] sm:$0xff]
          %v4789 = vld [vmem:[#allocation3 + $0x18] sm:$0xff]
          %v4790 = vld [vmem:[#allocation3 + $0x20] sm:$0xff]
          %v4791 = vld [vmem:[#allocation3 + $0x28] sm:$0xff]
          %v4792 = vld [vmem:[#allocation3 + $0x30] sm:$0xff]
          %v4793 = vld [vmem:[#allocation15] sm:$0xff]
          %v4795 = vperm.slane %v4793, 0
          %v4796 = vperm.slane %v4793, 1
          %v4797 = vperm.slane %v4793, 2
          %v4798 = vperm.slane %v4793, 3
          %v4799 = vperm.slane %v4793, 4
          %v4800 = vperm.slane %v4793, 5
          %v4801 = vperm.slane %v4793, 6
          %v4809 = vadd.f32 %v4786, %v4795
          %v4810 = vadd.f32 %v4787, %v4796
          %v4811 = vadd.f32 %v4788, %v4797
          %v4812 = vadd.f32 %v4789, %v4798
          %v4813 = vadd.f32 %v4790, %v4799
          %v4814 = vadd.f32 %v4791, %v4800
          %v4815 = vadd.f32 %v4792, %v4801
          %v4816 = vtanh.pop %v4809
          %v4817 = vtanh.pop %v4810
          %v4818 = vtanh.pop %v4811
          %v4819 = vtanh.pop %v4812
          %v4820 = vtanh.pop %v4813
          %v4821 = vtanh.pop %v4814
          %v4822 = vtanh.pop %v4815
          %4823 = vst [vmem:[#allocation16] sm:$0xff] %v4816
          %4824 = vst [vmem:[#allocation16 + $0x8] sm:$0xff] %v4817
          %4825 = vst [vmem:[#allocation16 + $0x10] sm:$0xff] %v4818
          %4826 = vst [vmem:[#allocation16 + $0x18] sm:$0xff] %v4819
          %4827 = vst [vmem:[#allocation16 + $0x20] sm:$0xff] %v4820
          %4828 = vst [vmem:[#allocation16 + $0x28] sm:$0xff] %v4821
          %4829 = vst [vmem:[#allocation16 + $0x30] sm:$0xff] %v4822
        $region84: #{tpu_custom_call.1} parent=47 // pred_fallthru
          _
        // Predicated region
        $region85: #{tpu_custom_call.1} parent=47 // pred_check
          %p4830 = pneg %p224
        $region86: #{tpu_custom_call.1} parent=47 // pred_check_branch
          %4832 = sbr.rel (%p4830) target = $region88
        $region87: #{tpu_custom_call.1} parent=47 // pred_region
          %4834 = vsyncadd [#allocation6], 0
          %s4835 = smul.addr %s31, 7
          %s4836 = smul.addr %s4835, 8
          %s4837 = scalar_lea.hbm %s7, %s4836
          %s4839 = sshll.u32 [#allocation16], 4
          %s4840 = int_to_ptr.vmem [resolvable:$true] %s4839
          %s4841 = sshll.u32 %s4837, 4
          %s4842 = int_to_ptr.hbm [resolvable:$true] %s4841
          %4844 = dma.vmem_to_hbm [thread:$0]  %s4840, 896, %s4842, [#allocation6]
        $region88: #{tpu_custom_call.1} parent=47 // pred_fallthru
          _
        // Predicated region
        $region89: #{tpu_custom_call.1} parent=47 // pred_check
          %p4845 = pneg %p224
        $region90: #{tpu_custom_call.1} parent=47 // pred_check_branch
          %4847 = sbr.rel (%p4845) target = $region92
        $region91: #{tpu_custom_call.1} parent=47 // pred_region
          %4849 = dma.done [#allocation6], 896
        $region92: #{tpu_custom_call.1} parent=47 // pred_fallthru
          _
      $region48: #{tpu_custom_call.1} parent=5 // pred_fallthru
        _
      %p4850 = scmp.le.s32.totalorder 2, %s22
      // Predicated region
      $region93: #{tpu_custom_call.1} parent=5 // pred_check
        %p4851 = pneg %p4850
      $region94: #{tpu_custom_call.1} parent=5 // pred_check_branch
        %4853 = sbr.rel (%p4851) target = $region96
      $region95: #{tpu_custom_call.1} parent=5 // pred_region
        %s4854 = ssub.s32 %s22, 2
      $region96: #{tpu_custom_call.1} parent=5 // pred_fallthru
        _
    $region6: #{tpu_custom_call.1} parent=1 // loop_footer
      %s26 = sadd.s32 1, %s22
    $region7: #{tpu_custom_call.1} parent=1 // loop_footer_branch
      %21 = sbr.rel target = $region3
    $region8: #{tpu_custom_call.1} parent=1 // loop_exit
      _
    %4855 = vsyncpa [#allocation5], 1
    %s4856 = scalar_lea.sflag [#allocation5], 1
    %4857 = vsyncpa %s4856, 1
    %4858 = vsyncpa [#allocation8], 1
    %4859 = vsyncpa [#allocation11], 1
    %s4860 = scalar_lea.sflag [#allocation11], 1
    %4861 = vsyncpa %s4860, 1
    %4862 = vsyncpa [#allocation14], 1
    %s4863 = scalar_lea.sflag [#allocation14], 1
    %4864 = vsyncpa %s4863, 1
    %4865 = vsyncpa [#allocation6], 1
    %s4866 = scalar_lea.sflag [#allocation6], 1
    %4867 = vsyncpa %s4866, 1

</llo_original>
